<compile_context>
chip_gen: v7x
topology: tpu7x:2x2x1
jax: 0.10.0
libtpu: 0.0.40
codegen_flags: <defaults>
</compile_context>

<pallas_src>
import functools

import jax
import jax.numpy as jnp
from jax import lax
from jax.experimental import pallas as pl
from jax.experimental.pallas import tpu as pltpu


# ----------------------------------------------------------------------------
# Pallas kernel: fused  (M,K) @ (K,N) [+ bias] [+ ReLU]   (bf16 in, f32 acc)
# ----------------------------------------------------------------------------
def _mm_bias_kernel(a_ref, b_ref, bias_ref, o_ref, *, relu):
    acc = jnp.dot(a_ref[...], b_ref[...], preferred_element_type=jnp.float32)
    acc = acc + bias_ref[...]
    if relu:
        acc = jnp.maximum(acc, 0.0)
    o_ref[...] = acc


def _mm_kernel(a_ref, b_ref, o_ref, *, relu):
    acc = jnp.dot(a_ref[...], b_ref[...], preferred_element_type=jnp.float32)
    if relu:
        acc = jnp.maximum(acc, 0.0)
    o_ref[...] = acc


def pallas_linear(a, b, bias=None, relu=False, tile_m=512):
    """y = a @ b (+ bias) (+ ReLU). Operands in bf16, accumulation in f32.

    Rows (M) are tiled onto a "parallel" grid when large (lets v7x split the work
    over its two TensorCores); otherwise a single full-array VMEM block is used,
    since the total working set is tiny and one big block beats per-step overhead.
    """
    M, K = a.shape
    K2, N = b.shape
    assert K == K2, (K, K2)
    a = a.astype(jnp.bfloat16)
    b = b.astype(jnp.bfloat16)

    if M > tile_m and M % tile_m == 0:
        bm, grid_m = tile_m, M // tile_m
    else:
        bm, grid_m = M, 1

    in_specs = [
        pl.BlockSpec((bm, K), lambda i: (i, 0)),
        pl.BlockSpec((K, N), lambda i: (0, 0)),
    ]
    args = [a, b]
    if bias is not None:
        in_specs.append(pl.BlockSpec((1, N), lambda i: (0, 0)))
        args.append(bias.reshape(1, N).astype(jnp.float32))
        kernel = functools.partial(_mm_bias_kernel, relu=relu)
    else:
        kernel = functools.partial(_mm_kernel, relu=relu)

    return pl.pallas_call(
        kernel,
        out_shape=jax.ShapeDtypeStruct((M, N), jnp.float32),
        grid=(grid_m,),
        in_specs=in_specs,
        out_specs=pl.BlockSpec((bm, N), lambda i: (i, 0)),
        compiler_params=pltpu.CompilerParams(dimension_semantics=("parallel",)),
    )(*args)


# ----------------------------------------------------------------------------
# Conv2d (NHWC) = channel-last im2col (glue, no transposes) + Pallas matmul
# ----------------------------------------------------------------------------
def conv2d_nhwc(x, w, b, stride=1, padding=1, relu=True):
    # x: (N, H, W, Cin), w: (kh, kw, Cin, Cout)  [HWIO]
    N, H, W, Cin = x.shape
    kh, kw, _, Cout = w.shape
    xp = jnp.pad(x, ((0, 0), (padding, padding), (padding, padding), (0, 0)))
    Ho = (H + 2 * padding - kh) // stride + 1
    Wo = (W + 2 * padding - kw) // stride + 1
    patches = [
        xp[:, i:i + stride * Ho:stride, j:j + stride * Wo:stride, :]
        for i in range(kh) for j in range(kw)
    ]
    cols = jnp.concatenate(patches, axis=-1)            # (N, Ho, Wo, kh*kw*Cin)
    cols = cols.reshape(N * Ho * Wo, kh * kw * Cin)     # channels already trailing
    wmat = w.reshape(kh * kw * Cin, Cout)               # matches (i, j, cin) order
    out = pallas_linear(cols, wmat, b, relu=relu)       # (N*Ho*Wo, Cout)
    return out.reshape(N, Ho, Wo, Cout)                 # stays NHWC, no transpose


# ----------------------------------------------------------------------------
# Fused classifier kernel: build all S filters + correlate all train/test rows
# ----------------------------------------------------------------------------
def _clf_scores_kernel(feat_ref, lab_ref, o_ref, *, nt_rows, num_seq):
    rows = []
    for s in range(num_seq):                       # S is tiny & static -> unrolled
        fall = feat_ref[s]                         # ((Nt+Nq)*H*W, C)  bf16
        lab = lab_ref[s]                           # (1, Nt*H*W)       f32
        norm = jnp.sum(lab) + 1e-6                 # filter normalisation kept in f32
        ftr = fall[:nt_rows]                       # train rows only
        filt = jnp.dot(lab.astype(jnp.bfloat16), ftr,
                       preferred_element_type=jnp.float32)      # (1, C)
        filt = (filt / norm).astype(jnp.bfloat16)
        sc = jnp.dot(filt, fall.T,
                     preferred_element_type=jnp.float32)        # (1, (Nt+Nq)*H*W)
        rows.append(sc)
    o_ref[...] = jnp.concatenate(rows, axis=0)     # (S, rows)  lane-dense output


def classifier_scores(feat_all, labels, nt_rows):
    """feat_all: (S, (Nt+Nq)*H*W, C); labels: (S, 1, Nt*H*W) -> (S, (Nt+Nq)*H*W)."""
    S, R, _ = feat_all.shape
    kernel = functools.partial(_clf_scores_kernel, nt_rows=nt_rows, num_seq=S)
    return pl.pallas_call(
        kernel,
        out_shape=jax.ShapeDtypeStruct((S, R), jnp.float32),
    )(feat_all.astype(jnp.bfloat16), labels.astype(jnp.float32))


# ----------------------------------------------------------------------------
# Fused IoU head kernel: bbox modulation + fc1(ReLU) + fc2 (as lane reduction)
# ----------------------------------------------------------------------------
def _iou_head_kernel(tr_ref, bb_ref, te_ref, prop_ref, wbb_ref, w1a_ref, w1b_ref,
                     b1_ref, w2_ref, b2_ref, o_ref, *, num_prop):
    bb_emb = jnp.dot(bb_ref[...], wbb_ref[...],
                     preferred_element_type=jnp.float32)           # (NS, F)
    mod = tr_ref[...] + bb_emb
    modfeat = te_ref[...] * mod                                    # (NS, F)
    mc = jnp.dot(modfeat, w1a_ref[...],
                 preferred_element_type=jnp.float32)               # (NS, Hd)
    pc = jnp.dot(prop_ref[...], w1b_ref[...],
                 preferred_element_type=jnp.float32)               # (NS*P, Hd)
    ns, hd = mc.shape
    h = pc.reshape(ns, num_prop, hd) + mc[:, None, :] + b1_ref[...]
    h = jnp.maximum(h, 0.0)
    # fc2 (N=1 projection) folded in as a lane reduction -> direct (NS, P) output
    iou = jnp.sum(h * w2_ref[...].reshape(1, 1, hd), axis=-1) + b2_ref[...]
    o_ref[...] = iou


def iou_head(tr_tiled, bb_tiled, te_flat, prop_flat,
             w_bb, w_fc1, b_fc1, w_fc2, b_fc2, num_prop):
    ns, feat_dim = te_flat.shape
    hidden = w_fc1.shape[1]
    w1a = w_fc1[:feat_dim]          # feature part of fc1
    w1b = w_fc1[feat_dim:]          # proposal part of fc1
    kernel = functools.partial(_iou_head_kernel, num_prop=num_prop)
    return pl.pallas_call(
        kernel,
        out_shape=jax.ShapeDtypeStruct((ns, num_prop), jnp.float32),
    )(tr_tiled.astype(jnp.float32), bb_tiled.astype(jnp.float32),
      te_flat.astype(jnp.float32), prop_flat.astype(jnp.float32),
      w_bb.astype(jnp.float32), w1a.astype(jnp.float32), w1b.astype(jnp.float32),
      b_fc1.reshape(1, hidden).astype(jnp.float32),
      w_fc2.reshape(1, hidden).astype(jnp.float32),
      b_fc2.reshape(1, 1).astype(jnp.float32))


# ----------------------------------------------------------------------------
# Synthetic sub-modules (deterministic init) mirroring the mfDiMP components
# ----------------------------------------------------------------------------
class FeatureExtractor:
    """Tiny 2-stage backbone producing 'layer2' (C=8, /2) and 'layer3' (C=16, /4).

    Features are kept NHWC internally (lane-friendly, no per-conv transposes).
    """

    def __init__(self, key):
        k1, k2 = jax.random.split(key)
        self.w1 = 0.1 * jax.random.normal(k1, (3, 3, 3, 8), jnp.float32)    # HWIO
        self.b1 = jnp.zeros((8,), jnp.float32)
        self.w2 = 0.1 * jax.random.normal(k2, (3, 3, 8, 16), jnp.float32)   # HWIO
        self.b2 = jnp.zeros((16,), jnp.float32)

    def __call__(self, im_nhwc, layers):
        feats = {}
        l2 = conv2d_nhwc(im_nhwc, self.w1, self.b1, stride=2, padding=1, relu=True)
        if 'layer2' in layers:
            feats['layer2'] = l2
        l3 = conv2d_nhwc(l2, self.w2, self.b2, stride=2, padding=1, relu=True)
        if 'layer3' in layers:
            feats['layer3'] = l3
        return feats


class Classifier:
    """DiMP-style classifier: clf-feature conv, label-weighted filter, correlation."""
    # TODO(synk): the full DiMP steepest-descent filter optimizer is approximated
    # by a single label-weighted least-squares-style filter construction step.

    def __init__(self, key):
        self.w_clf = 0.1 * jax.random.normal(key, (3, 3, 16, 16), jnp.float32)  # HWIO
        self.b_clf = jnp.zeros((16,), jnp.float32)

    def extract_classification_feat(self, feat_nhwc):
        return conv2d_nhwc(feat_nhwc, self.w_clf, self.b_clf, stride=1, padding=1, relu=True)

    def __call__(self, train_feat, test_feat, train_bb, train_label,
                 is_distractor=None, test_label=None, test_anno=None):
        # train_feat: (Nt, S, H, W, C) NHWC, test_feat: (Nq, S, H, W, C)
        Nt, S, H, W, C = train_feat.shape
        Nq = test_feat.shape[0]

        # One clf-feature conv over train + test frames together (single launch).
        all_in = jnp.concatenate(
            [train_feat.reshape(Nt * S, H, W, C),
             test_feat.reshape(Nq * S, H, W, C)], axis=0)
        all_clf = self.extract_classification_feat(all_in)
        tr = all_clf[:Nt * S].reshape(Nt, S, H, W, C)
        te = all_clf[Nt * S:].reshape(Nq, S, H, W, C)

        # Per-sequence matrices, channels trailing; train rows first, then test.
        tr_s = tr.transpose(1, 0, 2, 3, 4).reshape(S, Nt * H * W, C)
        te_s = te.transpose(1, 0, 2, 3, 4).reshape(S, Nq * H * W, C)
        feat_all = jnp.concatenate([tr_s, te_s], axis=1)          # (S, (Nt+Nq)*HW, C)
        labels = train_label.transpose(1, 0, 2, 3).reshape(S, 1, Nt * H * W)

        # ONE fused kernel: all S filters + all train/test correlations.
        scores = classifier_scores(feat_all, labels, nt_rows=Nt * H * W)

        train_scores = scores[:, :Nt * H * W].reshape(S, Nt, H, W).transpose(1, 0, 2, 3)
        target_scores = scores[:, Nt * H * W:].reshape(S, Nq, H, W).transpose(1, 0, 2, 3)
        clf_losses = [jnp.mean((train_scores - train_label.astype(jnp.float32)) ** 2)]
        return target_scores, clf_losses


class BBRegressor:
    """IoUNet-style head: modulation from train feats + bbox, MLP over proposals."""
    # TODO(synk): PrRoIPooling of the original IoUNet is replaced by global
    # average pooling; the modulation / MLP matmuls run in one fused Pallas kernel.

    def __init__(self, key, hidden=32):
        k1, k2, k3 = jax.random.split(key, 3)
        self.feat_dim = 8 + 16
        self.w_bb = 0.1 * jax.random.normal(k1, (4, self.feat_dim), jnp.float32)
        self.w_fc1 = 0.1 * jax.random.normal(k2, (self.feat_dim + 4, hidden), jnp.float32)
        self.b_fc1 = jnp.zeros((hidden,), jnp.float32)
        self.w_fc2 = 0.1 * jax.random.normal(k3, (hidden, 1), jnp.float32)
        self.b_fc2 = jnp.zeros((1,), jnp.float32)

    def __call__(self, train_feats, test_feats, train_bb, test_proposals):
        # train_feats/test_feats: list of (frames, S, H, W, C) NHWC for layer2, layer3
        Nq, S = test_feats[0].shape[:2]
        P = test_proposals.shape[2]
        tr_vec = jnp.concatenate([f.mean(axis=(0, 2, 3)) for f in train_feats], axis=-1)  # (S, 24)
        te_vec = jnp.concatenate([f.mean(axis=(2, 3)) for f in test_feats], axis=-1)      # (Nq, S, 24)
        bb_mean = train_bb.mean(axis=0).astype(jnp.float32)                               # (S, 4)

        fd = tr_vec.shape[-1]
        tr_tiled = jnp.broadcast_to(tr_vec[None], (Nq, S, fd)).reshape(Nq * S, fd)
        bb_tiled = jnp.broadcast_to(bb_mean[None], (Nq, S, 4)).reshape(Nq * S, 4)
        te_flat = te_vec.reshape(Nq * S, fd)
        prop_flat = test_proposals.reshape(Nq * S * P, 4).astype(jnp.float32)

        iou = iou_head(tr_tiled, bb_tiled, te_flat, prop_flat,
                       self.w_bb, self.w_fc1, self.b_fc1, self.w_fc2, self.b_fc2,
                       num_prop=P)                                                        # (Nq*S, P)
        return iou.reshape(Nq, S, P)


# ----------------------------------------------------------------------------
# OptimTracker (forward semantics of the PyTorch module)
# ----------------------------------------------------------------------------
class OptimTracker:
    def __init__(self, feature_extractor, classifier, bb_regressor,
                 classification_layer, bb_regressor_layer,
                 train_feature_extractor=True):
        self.feature_extractor = feature_extractor
        self.classifier = classifier
        self.bb_regressor = bb_regressor
        self.classification_layer = classification_layer
        self.bb_regressor_layer = bb_regressor_layer
        self.output_layers = sorted(list(set([classification_layer] + bb_regressor_layer)))
        # train_feature_extractor only toggles requires_grad in PyTorch -> no-op here.

    def extract_backbone_features(self, im, layers=None):
        if layers is None:
            layers = self.output_layers
        return self.feature_extractor(im, layers)

    def forward(self, train_imgs, test_imgs, train_bb, test_proposals, train_label,
                is_distractor=None, test_label=None, test_anno=None):
        assert train_imgs.ndim == 5 and test_imgs.ndim == 5, 'Expect 5 dimensional inputs'
        num_sequences = train_imgs.shape[1]
        num_train_images = train_imgs.shape[0]
        num_test_images = test_imgs.shape[0]

        # NCHW (PyTorch layout) -> NHWC once at the boundary; train & test frames
        # are concatenated so the shared backbone runs in a single pass.
        train_flat = train_imgs.reshape(-1, *train_imgs.shape[-3:])
        test_flat = test_imgs.reshape(-1, *test_imgs.shape[-3:])
        all_imgs = jnp.transpose(jnp.concatenate([train_flat, test_flat], axis=0),
                                 (0, 2, 3, 1))
        all_feat = self.extract_backbone_features(all_imgs)

        n_tr = train_flat.shape[0]
        train_feat = {l: f[:n_tr] for l, f in all_feat.items()}
        test_feat = {l: f[n_tr:] for l, f in all_feat.items()}

        train_feat_clf = train_feat[self.classification_layer]
        test_feat_clf = test_feat[self.classification_layer]
        train_feat_clf = train_feat_clf.reshape(num_train_images, num_sequences,
                                                *train_feat_clf.shape[-3:])
        test_feat_clf = test_feat_clf.reshape(num_test_images, num_sequences,
                                              *test_feat_clf.shape[-3:])

        target_scores, clf_losses = self.classifier(
            train_feat_clf, test_feat_clf, train_bb, train_label, is_distractor,
            test_label=test_label, test_anno=test_anno)

        train_feat_iou = [train_feat[l].reshape(num_train_images, num_sequences,
                                                *train_feat[l].shape[-3:])
                          for l in self.bb_regressor_layer]
        test_feat_iou = [test_feat[l].reshape(num_test_images, num_sequences,
                                              *test_feat[l].shape[-3:])
                         for l in self.bb_regressor_layer]
        iou_pred = self.bb_regressor(train_feat_iou, test_feat_iou, train_bb, test_proposals)
        return target_scores, iou_pred, clf_losses

    __call__ = forward


# ----------------------------------------------------------------------------
# Demo
# ----------------------------------------------------------------------------
if __name__ == "__main__":
    key = jax.random.PRNGKey(0)
    k_fe, k_clf, k_bb, k_in = jax.random.split(key, 4)
    ki1, ki2, ki3, ki4, ki5 = jax.random.split(k_in, 5)

    # small shapes: 2 train frames, 2 test frames, 2 sequences, 3x32x32 images,
    # 8 box proposals per test frame; clf features come out 8x8 (layer3).
    num_train, num_test, num_seq = 2, 2, 2
    train_imgs = jax.random.normal(ki1, (num_train, num_seq, 3, 32, 32), jnp.float32)
    test_imgs = jax.random.normal(ki2, (num_test, num_seq, 3, 32, 32), jnp.float32)
    train_bb = jax.random.uniform(ki3, (num_train, num_seq, 4), jnp.float32) * 32.0
    test_proposals = jax.random.uniform(ki4, (num_test, num_seq, 8, 4), jnp.float32) * 32.0
    train_label = jax.nn.softmax(
        jax.random.normal(ki5, (num_train, num_seq, 8 * 8), jnp.float32), axis=-1
    ).reshape(num_train, num_seq, 8, 8)

    net = OptimTracker(
        feature_extractor=FeatureExtractor(k_fe),
        classifier=Classifier(k_clf),
        bb_regressor=BBRegressor(k_bb),
        classification_layer='layer3',
        bb_regressor_layer=['layer2', 'layer3'],
    )

    fwd = jax.jit(net.forward)
    target_scores, iou_pred, clf_losses = fwd(
        train_imgs, test_imgs, train_bb, test_proposals, train_label)

    jax.block_until_ready(target_scores)
    jax.block_until_ready(iou_pred)
    jax.block_until_ready(clf_losses[0])

    assert target_scores.shape == (num_test, num_seq, 8, 8)
    assert iou_pred.shape == (num_test, num_seq, 8)
    print("KERNEL_OK")
</pallas_src>

<mosaic_0001>
module attributes {stable_mosaic.version = 11 : i64} {
  func.func @_mm_bias_kernel(%arg0: i32, %arg1: memref<512x27xbf16, #tpu.memory_space<vmem>>, %arg2: memref<27x8xbf16, #tpu.memory_space<vmem>>, %arg3: memref<1x8xf32, #tpu.memory_space<vmem>>, %arg4: memref<512x8xf32, #tpu.memory_space<vmem>>) attributes {dimension_semantics = [#tpu.dimension_semantics<parallel>], iteration_bounds = array<i64: 4>, scalar_prefetch = 0 : i64, scratch_operands = 0 : i64, tpu.core_type = #tpu.core_type<tc>, window_params = [{transform_indices = @transform_0, window_bounds = array<i64: 512, 27>}, {pipeline_mode = #tpu.pipeline_mode<synchronous>, transform_indices = @transform_1, window_bounds = array<i64: 27, 8>}, {pipeline_mode = #tpu.pipeline_mode<synchronous>, transform_indices = @transform_2, window_bounds = array<i64: 1, 8>}, {transform_indices = @transform_3, window_bounds = array<i64: 512, 8>}]} {
    %c0 = arith.constant 0 : index
    %c0_0 = arith.constant 0 : index
    %0 = vector.load %arg1[%c0, %c0_0] : memref<512x27xbf16, #tpu.memory_space<vmem>>, vector<512x27xbf16>
    %c0_1 = arith.constant 0 : index
    %c0_2 = arith.constant 0 : index
    %1 = vector.load %arg2[%c0_1, %c0_2] : memref<27x8xbf16, #tpu.memory_space<vmem>>, vector<27x8xbf16>
    %cst = arith.constant dense<0.000000e+00> : vector<512x8xf32>
    %2 = tpu.matmul %0, %1, %cst {dimension_numbers = #tpu.dot_dimension_numbers<[1], [0], [0], [1], [0, 0, 1, 1], [], []>} : vector<512x27xbf16>, vector<27x8xbf16>, vector<512x8xf32> -> vector<512x8xf32>
    %c0_3 = arith.constant 0 : index
    %c0_4 = arith.constant 0 : index
    %3 = vector.load %arg3[%c0_3, %c0_4] : memref<1x8xf32, #tpu.memory_space<vmem>>, vector<1x8xf32>
    %4 = vector.broadcast %3 : vector<1x8xf32> to vector<512x8xf32>
    %5 = arith.addf %2, %4 : vector<512x8xf32>
    %cst_5 = arith.constant 0.000000e+00 : f32
    %6 = vector.broadcast %cst_5 : f32 to vector<512x8xf32>
    %7 = arith.maximumf %5, %6 : vector<512x8xf32>
    %c0_6 = arith.constant 0 : index
    %c0_7 = arith.constant 0 : index
    %8 = vector.load %arg4[%c0_6, %c0_7] : memref<512x8xf32, #tpu.memory_space<vmem>>, vector<512x8xf32>
    tpu.vector_store %arg4[%c0_6, %c0_7], %7 {strides = array<i32>} : memref<512x8xf32, #tpu.memory_space<vmem>>, vector<512x8xf32>,
    return
  }
  func.func @transform_0(%arg0: i32) -> (i32, i32) {
    %c0_i32 = arith.constant 0 : i32
    %c0_i32_0 = arith.constant 0 : i32
    return %arg0, %c0_i32 : i32, i32
  }
  func.func @transform_1(%arg0: i32) -> (i32, i32) {
    %c0_i32 = arith.constant 0 : i32
    %c0_i32_0 = arith.constant 0 : i32
    %c0_i32_1 = arith.constant 0 : i32
    return %c0_i32, %c0_i32_0 : i32, i32
  }
  func.func @transform_2(%arg0: i32) -> (i32, i32) {
    %c0_i32 = arith.constant 0 : i32
    %c0_i32_0 = arith.constant 0 : i32
    %c0_i32_1 = arith.constant 0 : i32
    return %c0_i32, %c0_i32_0 : i32, i32
  }
  func.func @transform_3(%arg0: i32) -> (i32, i32) {
    %c0_i32 = arith.constant 0 : i32
    %c0_i32_0 = arith.constant 0 : i32
    return %arg0, %c0_i32 : i32, i32
  }
}

module attributes {stable_mosaic.version = 11 : i64} {
  func.func @_mm_bias_kernel(%arg0: i32, %arg1: memref<512x72xbf16, #tpu.memory_space<vmem>>, %arg2: memref<72x16xbf16, #tpu.memory_space<vmem>>, %arg3: memref<1x16xf32, #tpu.memory_space<vmem>>, %arg4: memref<512x16xf32, #tpu.memory_space<vmem>>) attributes {dimension_semantics = [#tpu.dimension_semantics<parallel>], iteration_bounds = array<i64: 1>, scalar_prefetch = 0 : i64, scratch_operands = 0 : i64, tpu.core_type = #tpu.core_type<tc>, window_params = [{transform_indices = @transform_0, window_bounds = array<i64: 512, 72>}, {pipeline_mode = #tpu.pipeline_mode<synchronous>, transform_indices = @transform_1, window_bounds = array<i64: 72, 16>}, {pipeline_mode = #tpu.pipeline_mode<synchronous>, transform_indices = @transform_2, window_bounds = array<i64: 1, 16>}, {transform_indices = @transform_3, window_bounds = array<i64: 512, 16>}]} {
    %c0 = arith.constant 0 : index
    %c0_0 = arith.constant 0 : index
    %0 = vector.load %arg1[%c0, %c0_0] : memref<512x72xbf16, #tpu.memory_space<vmem>>, vector<512x72xbf16>
    %c0_1 = arith.constant 0 : index
    %c0_2 = arith.constant 0 : index
    %1 = vector.load %arg2[%c0_1, %c0_2] : memref<72x16xbf16, #tpu.memory_space<vmem>>, vector<72x16xbf16>
    %cst = arith.constant dense<0.000000e+00> : vector<512x16xf32>
    %2 = tpu.matmul %0, %1, %cst {dimension_numbers = #tpu.dot_dimension_numbers<[1], [0], [0], [1], [0, 0, 1, 1], [], []>} : vector<512x72xbf16>, vector<72x16xbf16>, vector<512x16xf32> -> vector<512x16xf32>
    %c0_3 = arith.constant 0 : index
    %c0_4 = arith.constant 0 : index
    %3 = vector.load %arg3[%c0_3, %c0_4] : memref<1x16xf32, #tpu.memory_space<vmem>>, vector<1x16xf32>
    %4 = vector.broadcast %3 : vector<1x16xf32> to vector<512x16xf32>
    %5 = arith.addf %2, %4 : vector<512x16xf32>
    %cst_5 = arith.constant 0.000000e+00 : f32
    %6 = vector.broadcast %cst_5 : f32 to vector<512x16xf32>
    %7 = arith.maximumf %5, %6 : vector<512x16xf32>
    %c0_6 = arith.constant 0 : index
    %c0_7 = arith.constant 0 : index
    %8 = vector.load %arg4[%c0_6, %c0_7] : memref<512x16xf32, #tpu.memory_space<vmem>>, vector<512x16xf32>
    tpu.vector_store %arg4[%c0_6, %c0_7], %7 {strides = array<i32>} : memref<512x16xf32, #tpu.memory_space<vmem>>, vector<512x16xf32>,
    return
  }
  func.func @transform_0(%arg0: i32) -> (i32, i32) {
    %c0_i32 = arith.constant 0 : i32
    %c0_i32_0 = arith.constant 0 : i32
    return %arg0, %c0_i32 : i32, i32
  }
  func.func @transform_1(%arg0: i32) -> (i32, i32) {
    %c0_i32 = arith.constant 0 : i32
    %c0_i32_0 = arith.constant 0 : i32
    %c0_i32_1 = arith.constant 0 : i32
    return %c0_i32, %c0_i32_0 : i32, i32
  }
  func.func @transform_2(%arg0: i32) -> (i32, i32) {
    %c0_i32 = arith.constant 0 : i32
    %c0_i32_0 = arith.constant 0 : i32
    %c0_i32_1 = arith.constant 0 : i32
    return %c0_i32, %c0_i32_0 : i32, i32
  }
  func.func @transform_3(%arg0: i32) -> (i32, i32) {
    %c0_i32 = arith.constant 0 : i32
    %c0_i32_0 = arith.constant 0 : i32
    return %arg0, %c0_i32 : i32, i32
  }
}

module attributes {stable_mosaic.version = 11 : i64} {
  func.func @_iou_head_kernel(%arg0: memref<4x24xf32, #tpu.memory_space<vmem>>, %arg1: memref<4x4xf32, #tpu.memory_space<vmem>>, %arg2: memref<4x24xf32, #tpu.memory_space<vmem>>, %arg3: memref<32x4xf32, #tpu.memory_space<vmem>>, %arg4: memref<4x24xf32, #tpu.memory_space<vmem>>, %arg5: memref<24x32xf32, #tpu.memory_space<vmem>>, %arg6: memref<4x32xf32, #tpu.memory_space<vmem>>, %arg7: memref<1x32xf32, #tpu.memory_space<vmem>>, %arg8: memref<1x32xf32, #tpu.memory_space<vmem>>, %arg9: memref<1x1xf32, #tpu.memory_space<vmem>>, %arg10: memref<4x8xf32, #tpu.memory_space<vmem>>) attributes {dimension_semantics = [], scalar_prefetch = 0 : i64, scratch_operands = 0 : i64, tpu.core_type = #tpu.core_type<tc>} {
    %c0 = arith.constant 0 : index
    %c0_0 = arith.constant 0 : index
    %0 = vector.load %arg1[%c0, %c0_0] : memref<4x4xf32, #tpu.memory_space<vmem>>, vector<4x4xf32>
    %c0_1 = arith.constant 0 : index
    %c0_2 = arith.constant 0 : index
    %1 = vector.load %arg4[%c0_1, %c0_2] : memref<4x24xf32, #tpu.memory_space<vmem>>, vector<4x24xf32>
    %cst = arith.constant dense<0.000000e+00> : vector<4x24xf32>
    %2 = tpu.matmul %0, %1, %cst {dimension_numbers = #tpu.dot_dimension_numbers<[1], [0], [0], [1], [0, 0, 1, 1], [], []>} : vector<4x4xf32>, vector<4x24xf32>, vector<4x24xf32> -> vector<4x24xf32>
    %c0_3 = arith.constant 0 : index
    %c0_4 = arith.constant 0 : index
    %3 = vector.load %arg0[%c0_3, %c0_4] : memref<4x24xf32, #tpu.memory_space<vmem>>, vector<4x24xf32>
    %4 = arith.addf %3, %2 : vector<4x24xf32>
    %c0_5 = arith.constant 0 : index
    %c0_6 = arith.constant 0 : index
    %5 = vector.load %arg2[%c0_5, %c0_6] : memref<4x24xf32, #tpu.memory_space<vmem>>, vector<4x24xf32>
    %6 = arith.mulf %5, %4 : vector<4x24xf32>
    %c0_7 = arith.constant 0 : index
    %c0_8 = arith.constant 0 : index
    %7 = vector.load %arg5[%c0_7, %c0_8] : memref<24x32xf32, #tpu.memory_space<vmem>>, vector<24x32xf32>
    %cst_9 = arith.constant dense<0.000000e+00> : vector<4x32xf32>
    %8 = tpu.matmul %6, %7, %cst_9 {dimension_numbers = #tpu.dot_dimension_numbers<[1], [0], [0], [1], [0, 0, 1, 1], [], []>} : vector<4x24xf32>, vector<24x32xf32>, vector<4x32xf32> -> vector<4x32xf32>
    %c0_10 = arith.constant 0 : index
    %c0_11 = arith.constant 0 : index
    %9 = vector.load %arg3[%c0_10, %c0_11] : memref<32x4xf32, #tpu.memory_space<vmem>>, vector<32x4xf32>
    %c0_12 = arith.constant 0 : index
    %c0_13 = arith.constant 0 : index
    %10 = vector.load %arg6[%c0_12, %c0_13] : memref<4x32xf32, #tpu.memory_space<vmem>>, vector<4x32xf32>
    %cst_14 = arith.constant dense<0.000000e+00> : vector<32x32xf32>
    %11 = tpu.matmul %9, %10, %cst_14 {dimension_numbers = #tpu.dot_dimension_numbers<[1], [0], [0], [1], [0, 0, 1, 1], [], []>} : vector<32x4xf32>, vector<4x32xf32>, vector<32x32xf32> -> vector<32x32xf32>
    %12 = vector.shape_cast %11 : vector<32x32xf32> to vector<4x8x32xf32>
    %13 = vector.shape_cast %8 : vector<4x32xf32> to vector<4x1x32xf32>
    %14 = vector.broadcast %13 : vector<4x1x32xf32> to vector<4x8x32xf32>
    %15 = arith.addf %12, %14 : vector<4x8x32xf32>
    %c0_15 = arith.constant 0 : index
    %c0_16 = arith.constant 0 : index
    %16 = vector.load %arg7[%c0_15, %c0_16] : memref<1x32xf32, #tpu.memory_space<vmem>>, vector<1x32xf32>
    %17 = vector.shape_cast %16 : vector<1x32xf32> to vector<1x1x32xf32>
    %18 = vector.broadcast %17 : vector<1x1x32xf32> to vector<4x8x32xf32>
    %19 = arith.addf %15, %18 : vector<4x8x32xf32>
    %cst_17 = arith.constant 0.000000e+00 : f32
    %20 = vector.broadcast %cst_17 : f32 to vector<4x8x32xf32>
    %21 = arith.maximumf %19, %20 : vector<4x8x32xf32>
    %c0_18 = arith.constant 0 : index
    %c0_19 = arith.constant 0 : index
    %22 = vector.load %arg8[%c0_18, %c0_19] : memref<1x32xf32, #tpu.memory_space<vmem>>, vector<1x32xf32>
    %23 = vector.shape_cast %22 : vector<1x32xf32> to vector<1x1x32xf32>
    %24 = vector.broadcast %23 : vector<1x1x32xf32> to vector<4x8x32xf32>
    %25 = arith.mulf %21, %24 : vector<4x8x32xf32>
    %cst_20 = arith.constant dense<0.000000e+00> : vector<4x8xf32>
    %26 = vector.multi_reduction <add>, %25, %cst_20 [2] : vector<4x8x32xf32> to vector<4x8xf32>
    %c0_21 = arith.constant 0 : index
    %c0_22 = arith.constant 0 : index
    %27 = vector.load %arg9[%c0_21, %c0_22] : memref<1x1xf32, #tpu.memory_space<vmem>>, vector<1x1xf32>
    %28 = vector.broadcast %27 : vector<1x1xf32> to vector<4x8xf32>
    %29 = arith.addf %26, %28 : vector<4x8xf32>
    %c0_23 = arith.constant 0 : index
    %c0_24 = arith.constant 0 : index
    %30 = vector.load %arg10[%c0_23, %c0_24] : memref<4x8xf32, #tpu.memory_space<vmem>>, vector<4x8xf32>
    tpu.vector_store %arg10[%c0_23, %c0_24], %29 {strides = array<i32>} : memref<4x8xf32, #tpu.memory_space<vmem>>, vector<4x8xf32>,
    return
  }
}

module attributes {stable_mosaic.version = 11 : i64} {
  func.func @_mm_bias_kernel(%arg0: i32, %arg1: memref<512x144xbf16, #tpu.memory_space<vmem>>, %arg2: memref<144x16xbf16, #tpu.memory_space<vmem>>, %arg3: memref<1x16xf32, #tpu.memory_space<vmem>>, %arg4: memref<512x16xf32, #tpu.memory_space<vmem>>) attributes {dimension_semantics = [#tpu.dimension_semantics<parallel>], iteration_bounds = array<i64: 1>, scalar_prefetch = 0 : i64, scratch_operands = 0 : i64, tpu.core_type = #tpu.core_type<tc>, window_params = [{transform_indices = @transform_0, window_bounds = array<i64: 512, 144>}, {pipeline_mode = #tpu.pipeline_mode<synchronous>, transform_indices = @transform_1, window_bounds = array<i64: 144, 16>}, {pipeline_mode = #tpu.pipeline_mode<synchronous>, transform_indices = @transform_2, window_bounds = array<i64: 1, 16>}, {transform_indices = @transform_3, window_bounds = array<i64: 512, 16>}]} {
    %c0 = arith.constant 0 : index
    %c0_0 = arith.constant 0 : index
    %0 = vector.load %arg1[%c0, %c0_0] : memref<512x144xbf16, #tpu.memory_space<vmem>>, vector<512x144xbf16>
    %c0_1 = arith.constant 0 : index
    %c0_2 = arith.constant 0 : index
    %1 = vector.load %arg2[%c0_1, %c0_2] : memref<144x16xbf16, #tpu.memory_space<vmem>>, vector<144x16xbf16>
    %cst = arith.constant dense<0.000000e+00> : vector<512x16xf32>
    %2 = tpu.matmul %0, %1, %cst {dimension_numbers = #tpu.dot_dimension_numbers<[1], [0], [0], [1], [0, 0, 1, 1], [], []>} : vector<512x144xbf16>, vector<144x16xbf16>, vector<512x16xf32> -> vector<512x16xf32>
    %c0_3 = arith.constant 0 : index
    %c0_4 = arith.constant 0 : index
    %3 = vector.load %arg3[%c0_3, %c0_4] : memref<1x16xf32, #tpu.memory_space<vmem>>, vector<1x16xf32>
    %4 = vector.broadcast %3 : vector<1x16xf32> to vector<512x16xf32>
    %5 = arith.addf %2, %4 : vector<512x16xf32>
    %cst_5 = arith.constant 0.000000e+00 : f32
    %6 = vector.broadcast %cst_5 : f32 to vector<512x16xf32>
    %7 = arith.maximumf %5, %6 : vector<512x16xf32>
    %c0_6 = arith.constant 0 : index
    %c0_7 = arith.constant 0 : index
    %8 = vector.load %arg4[%c0_6, %c0_7] : memref<512x16xf32, #tpu.memory_space<vmem>>, vector<512x16xf32>
    tpu.vector_store %arg4[%c0_6, %c0_7], %7 {strides = array<i32>} : memref<512x16xf32, #tpu.memory_space<vmem>>, vector<512x16xf32>,
    return
  }
  func.func @transform_0(%arg0: i32) -> (i32, i32) {
    %c0_i32 = arith.constant 0 : i32
    %c0_i32_0 = arith.constant 0 : i32
    return %arg0, %c0_i32 : i32, i32
  }
  func.func @transform_1(%arg0: i32) -> (i32, i32) {
    %c0_i32 = arith.constant 0 : i32
    %c0_i32_0 = arith.constant 0 : i32
    %c0_i32_1 = arith.constant 0 : i32
    return %c0_i32, %c0_i32_0 : i32, i32
  }
  func.func @transform_2(%arg0: i32) -> (i32, i32) {
    %c0_i32 = arith.constant 0 : i32
    %c0_i32_0 = arith.constant 0 : i32
    %c0_i32_1 = arith.constant 0 : i32
    return %c0_i32, %c0_i32_0 : i32, i32
  }
  func.func @transform_3(%arg0: i32) -> (i32, i32) {
    %c0_i32 = arith.constant 0 : i32
    %c0_i32_0 = arith.constant 0 : i32
    return %arg0, %c0_i32 : i32, i32
  }
}

module attributes {stable_mosaic.version = 11 : i64} {
  func.func @_clf_scores_kernel(%arg0: memref<2x256x16xbf16, #tpu.memory_space<vmem>>, %arg1: memref<2x1x128xf32, #tpu.memory_space<vmem>>, %arg2: memref<2x256xf32, #tpu.memory_space<vmem>>) attributes {dimension_semantics = [], scalar_prefetch = 0 : i64, scratch_operands = 0 : i64, tpu.core_type = #tpu.core_type<tc>} {
    %c0 = arith.constant 0 : index
    %c0_0 = arith.constant 0 : index
    %c0_1 = arith.constant 0 : index
    %0 = vector.load %arg0[%c0, %c0_0, %c0_1] : memref<2x256x16xbf16, #tpu.memory_space<vmem>>, vector<1x256x16xbf16>
    %1 = vector.shape_cast %0 : vector<1x256x16xbf16> to vector<256x16xbf16>
    %c0_2 = arith.constant 0 : index
    %c0_3 = arith.constant 0 : index
    %c0_4 = arith.constant 0 : index
    %2 = vector.load %arg1[%c0_2, %c0_3, %c0_4] : memref<2x1x128xf32, #tpu.memory_space<vmem>>, vector<1x1x128xf32>
    %3 = vector.shape_cast %2 : vector<1x1x128xf32> to vector<1x128xf32>
    %4 = vector.shape_cast %3 : vector<1x128xf32> to vector<1x1x128xf32>
    %cst = arith.constant dense<0.000000e+00> : vector<1xf32>
    %5 = vector.multi_reduction <add>, %4, %cst [1, 2] : vector<1x1x128xf32> to vector<1xf32>
    %6 = vector.shape_cast %5 : vector<1xf32> to vector<1x1x1xf32>
    %7 = vector.extract %6[0, 0, 0] : f32 from vector<1x1x1xf32>
    %cst_5 = arith.constant 9.99999997E-7 : f32
    %8 = arith.addf %7, %cst_5 : f32
    %9 = vector.extract_strided_slice %1 {offsets = [0, 0], sizes = [128, 16], strides = [1, 1]} : vector<256x16xbf16> to vector<128x16xbf16>
    %10 = arith.truncf %3 : vector<1x128xf32> to vector<1x128xbf16>
    %cst_6 = arith.constant dense<0.000000e+00> : vector<1x16xf32>
    %11 = tpu.matmul %10, %9, %cst_6 {dimension_numbers = #tpu.dot_dimension_numbers<[1], [0], [0], [1], [0, 0, 1, 1], [], []>} : vector<1x128xbf16>, vector<128x16xbf16>, vector<1x16xf32> -> vector<1x16xf32>
    %12 = vector.broadcast %8 : f32 to vector<1x16xf32>
    %13 = arith.divf %11, %12 : vector<1x16xf32>
    %14 = arith.truncf %13 : vector<1x16xf32> to vector<1x16xbf16>
    %15 = tpu.transpose %1, [1, 0] : vector<256x16xbf16> -> vector<16x256xbf16>
    %cst_7 = arith.constant dense<0.000000e+00> : vector<1x256xf32>
    %16 = tpu.matmul %14, %15, %cst_7 {dimension_numbers = #tpu.dot_dimension_numbers<[1], [0], [0], [1], [0, 0, 1, 1], [], []>} : vector<1x16xbf16>, vector<16x256xbf16>, vector<1x256xf32> -> vector<1x256xf32>
    %c1 = arith.constant 1 : index
    %c0_8 = arith.constant 0 : index
    %c0_9 = arith.constant 0 : index
    %17 = vector.load %arg0[%c1, %c0_8, %c0_9] : memref<2x256x16xbf16, #tpu.memory_space<vmem>>, vector<1x256x16xbf16>
    %18 = vector.shape_cast %17 : vector<1x256x16xbf16> to vector<256x16xbf16>
    %c1_10 = arith.constant 1 : index
    %c0_11 = arith.constant 0 : index
    %c0_12 = arith.constant 0 : index
    %19 = vector.load %arg1[%c1_10, %c0_11, %c0_12] : memref<2x1x128xf32, #tpu.memory_space<vmem>>, vector<1x1x128xf32>
    %20 = vector.shape_cast %19 : vector<1x1x128xf32> to vector<1x128xf32>
    %21 = vector.shape_cast %20 : vector<1x128xf32> to vector<1x1x128xf32>
    %cst_13 = arith.constant dense<0.000000e+00> : vector<1xf32>
    %22 = vector.multi_reduction <add>, %21, %cst_13 [1, 2] : vector<1x1x128xf32> to vector<1xf32>
    %23 = vector.shape_cast %22 : vector<1xf32> to vector<1x1x1xf32>
    %24 = vector.extract %23[0, 0, 0] : f32 from vector<1x1x1xf32>
    %cst_14 = arith.constant 9.99999997E-7 : f32
    %25 = arith.addf %24, %cst_14 : f32
    %26 = vector.extract_strided_slice %18 {offsets = [0, 0], sizes = [128, 16], strides = [1, 1]} : vector<256x16xbf16> to vector<128x16xbf16>
    %27 = arith.truncf %20 : vector<1x128xf32> to vector<1x128xbf16>
    %cst_15 = arith.constant dense<0.000000e+00> : vector<1x16xf32>
    %28 = tpu.matmul %27, %26, %cst_15 {dimension_numbers = #tpu.dot_dimension_numbers<[1], [0], [0], [1], [0, 0, 1, 1], [], []>} : vector<1x128xbf16>, vector<128x16xbf16>, vector<1x16xf32> -> vector<1x16xf32>
    %29 = vector.broadcast %25 : f32 to vector<1x16xf32>
    %30 = arith.divf %28, %29 : vector<1x16xf32>
    %31 = arith.truncf %30 : vector<1x16xf32> to vector<1x16xbf16>
    %32 = tpu.transpose %18, [1, 0] : vector<256x16xbf16> -> vector<16x256xbf16>
    %cst_16 = arith.constant dense<0.000000e+00> : vector<1x256xf32>
    %33 = tpu.matmul %31, %32, %cst_16 {dimension_numbers = #tpu.dot_dimension_numbers<[1], [0], [0], [1], [0, 0, 1, 1], [], []>} : vector<1x16xbf16>, vector<16x256xbf16>, vector<1x256xf32> -> vector<1x256xf32>
    %34 = tpu.concatenate %16, %33 in 0 : vector<1x256xf32>, vector<1x256xf32> -> vector<2x256xf32>
    %c0_17 = arith.constant 0 : index
    %c0_18 = arith.constant 0 : index
    %35 = vector.load %arg2[%c0_17, %c0_18] : memref<2x256xf32, #tpu.memory_space<vmem>>, vector<2x256xf32>
    tpu.vector_store %arg2[%c0_17, %c0_18], %34 {strides = array<i32>} : memref<2x256xf32, #tpu.memory_space<vmem>>, vector<2x256xf32>,
    return
  }
}

</mosaic_0001>

<llo_original>
// kernel: forward.5
$region0: #{forward.5}
  #allocation0 [shape = 'u32[]', space=smem, size = 0x4, offset = 0x4, fixed_abs, tag = 'smem constant byte address 0x4 - core index']
  #allocation1 [shape = 'u32[144,128]{1,0:T(1,128)}', space=vmem, size = 0x12000, scoped, tag = 'internal scratch']
  %s0 = inlined_call_operand.vmem [shape: bf16[2048,27], index: 0, kind: input, shape index: {}]
  %s1 = inlined_call_operand.vmem [shape: bf16[27,8], index: 1, kind: input, shape index: {}]
  %s2 = inlined_call_operand.vmem [shape: f32[1,8], index: 2, kind: input, shape index: {}]
  %s3 = inlined_call_operand.vmem [shape: f32[2048,8], index: 3, kind: output, shape index: {}]
  %s4 = sld [smem:[#allocation0]]
  $region45: #{forward.5} parent=0
    _
  %s6 = ssub.s32 1, %s4
  %s7 = scalar_select 0, %s6, %s4
  loop: start=0, step=1, limit=6
  $region2: #{forward.5} parent=0 // loop_pre_header
    _
  $region3: #{forward.5} parent=0 // loop_header
    %s9 = sphi 0, %s13
    %p10 = scmp.ge.s32.totalorder %s9, 6
    %s19 = sphi 0, %s21
    %s22 = sphi 0, %s19
    %s23 = sphi 0, %s22
    %s39 = sphi 0, %s23
    %s43 = sphi 0, %s43
    %s45 = sphi 0, %s43
    %s46 = sphi 0, %s45
    %s60 = sphi 0, %s46
    %s64 = sphi 0, %s64
    %s66 = sphi 0, %s64
    %s67 = sphi 0, %s66
    %s81 = sphi 0, %s67
    %s87 = sphi 0, %s89
    %s90 = sphi 0, %s87
    %s91 = sphi 0, %s90
    %s107 = sphi 0, %s91
  $region4: #{forward.5} parent=0 // loop_header_branch
    %12 = sbr.rel (%p10) target = $region8
  $region5: #{forward.5} parent=0 // loop_body
    %s14 = ssub.s32 %s9, 1
    %s15 = ssub.s32 %s9, 2
    %s16 = sadd.s32 %s9, 1
    %s17 = ssub.s32 %s9, %s16
    %p18 = scmp.eq.s32.totalorder %s17, 0
    %s20 = sadd.s32 %s19, 1
    %s21 = scalar_select %p18, %s19, %s20
    %p24 = pneg %p18
    %p25 = scmp.eq.s32.totalorder %s9, 3
    %p26 = por %p24, %p25
    %p27 = scmp.ne.s32.totalorder %s19, %s22
    %p28 = scmp.eq.s32.totalorder %s9, 0
    %p29 = por %p27, %p28
    %p30 = scmp.ne.s32.totalorder %s19, %s22
    %p31 = scmp.eq.s32.totalorder %s14, 3
    %p32 = por %p30, %p31
    %p33 = scmp.ne.s32.totalorder %s22, %s23
    %p34 = scmp.eq.s32.totalorder %s14, 0
    %p35 = por %p33, %p34
    %p36 = scmp.ne.s32.totalorder %s22, %s23
    %p37 = scmp.eq.s32.totalorder %s15, 3
    %p38 = por %p36, %p37
    %p40 = scmp.ne.s32.totalorder %s23, %s39
    %p41 = scmp.eq.s32.totalorder %s15, 0
    %p42 = por %p40, %p41
    %s44 = sadd.s32 %s43, 1
    %p47 = scmp.eq.s32.totalorder %s9, 3
    %p48 = scmp.ne.s32.totalorder %s43, %s45
    %p49 = scmp.eq.s32.totalorder %s9, 0
    %p50 = por %p48, %p49
    %p51 = scmp.ne.s32.totalorder %s43, %s45
    %p52 = scmp.eq.s32.totalorder %s14, 3
    %p53 = por %p51, %p52
    %p54 = scmp.ne.s32.totalorder %s45, %s46
    %p55 = scmp.eq.s32.totalorder %s14, 0
    %p56 = por %p54, %p55
    %p57 = scmp.ne.s32.totalorder %s45, %s46
    %p58 = scmp.eq.s32.totalorder %s15, 3
    %p59 = por %p57, %p58
    %p61 = scmp.ne.s32.totalorder %s46, %s60
    %p62 = scmp.eq.s32.totalorder %s15, 0
    %p63 = por %p61, %p62
    %s65 = sadd.s32 %s64, 1
    %p68 = scmp.eq.s32.totalorder %s9, 3
    %p69 = scmp.ne.s32.totalorder %s64, %s66
    %p70 = scmp.eq.s32.totalorder %s9, 0
    %p71 = por %p69, %p70
    %p72 = scmp.ne.s32.totalorder %s64, %s66
    %p73 = scmp.eq.s32.totalorder %s14, 3
    %p74 = por %p72, %p73
    %p75 = scmp.ne.s32.totalorder %s66, %s67
    %p76 = scmp.eq.s32.totalorder %s14, 0
    %p77 = por %p75, %p76
    %p78 = scmp.ne.s32.totalorder %s66, %s67
    %p79 = scmp.eq.s32.totalorder %s15, 3
    %p80 = por %p78, %p79
    %p82 = scmp.ne.s32.totalorder %s67, %s81
    %p83 = scmp.eq.s32.totalorder %s15, 0
    %p84 = por %p82, %p83
    %s85 = ssub.s32 %s9, %s16
    %p86 = scmp.eq.s32.totalorder %s85, 0
    %s88 = sadd.s32 %s87, 1
    %s89 = scalar_select %p86, %s87, %s88
    %p92 = pneg %p86
    %p93 = scmp.eq.s32.totalorder %s9, 3
    %p94 = por %p92, %p93
    %p95 = scmp.ne.s32.totalorder %s87, %s90
    %p96 = scmp.eq.s32.totalorder %s9, 0
    %p97 = por %p95, %p96
    %p98 = scmp.ne.s32.totalorder %s87, %s90
    %p99 = scmp.eq.s32.totalorder %s14, 3
    %p100 = por %p98, %p99
    %p101 = scmp.ne.s32.totalorder %s90, %s91
    %p102 = scmp.eq.s32.totalorder %s14, 0
    %p103 = por %p101, %p102
    %p104 = scmp.ne.s32.totalorder %s90, %s91
    %p105 = scmp.eq.s32.totalorder %s15, 3
    %p106 = por %p104, %p105
    %p108 = scmp.ne.s32.totalorder %s91, %s107
    %p109 = scmp.eq.s32.totalorder %s15, 0
    %p110 = por %p108, %p109
    %p111 = scmp.le.s32.totalorder 1, %s9
    %p112 = scmp.lt.s32.totalorder %s9, 5
    %p113 = pnand %p111, %p112
    %p114 = pneg %p113
    // Predicated region
    $region9: #{forward.5} parent=5 // pred_check
      _
    $region10: #{forward.5} parent=5 // pred_check_branch
      %116 = sbr.rel (%p113) target = $region12
    $region11: #{forward.5} parent=5 // pred_region
      %s117 = ssub.s32 %s9, 1
      // Predicated region
      $region13: #{forward.5} parent=11 // pred_check
        %p118 = pneg %p56
      $region14: #{forward.5} parent=11 // pred_check_branch
        %120 = sbr.rel (%p118) target = $region16
      $region15: #{forward.5} parent=11 // pred_region
        _
      $region16: #{forward.5} parent=11 // pred_fallthru
        _
      // Predicated region
      $region17: #{forward.5} parent=11 // pred_check
        %p121 = pneg %p77
      $region18: #{forward.5} parent=11 // pred_check_branch
        %123 = sbr.rel (%p121) target = $region20
      $region19: #{forward.5} parent=11 // pred_region
        _
      $region20: #{forward.5} parent=11 // pred_fallthru
        _
    $region12: #{forward.5} parent=5 // pred_fallthru
      _
    %p124 = scmp.lt.s32.totalorder %s9, 4
    // Predicated region
    $region21: #{forward.5} parent=5 // pred_check
      %p125 = pneg %p124
    $region22: #{forward.5} parent=5 // pred_check_branch
      %127 = sbr.rel (%p125) target = $region24
    $region23: #{forward.5} parent=5 // pred_region
      // Predicated region
      $region25: #{forward.5} parent=23 // pred_check
        %p128 = pneg %p29
      $region26: #{forward.5} parent=23 // pred_check_branch
        %130 = sbr.rel (%p128) target = $region28
      $region27: #{forward.5} parent=23 // pred_region
        %s131 = smul.u32 64, %s9
        %p132 = scmp.lt.s32.totalorder %s131, 255
        %s133 = scalar_select %p132, %s131, 255
        %s134 = smul.addr %s133, 4
        %s135 = scalar_lea.vmem %s0, %s134
        %s136 = smul.u32 64, %s9
      $region28: #{forward.5} parent=23 // pred_fallthru
        _
    $region24: #{forward.5} parent=5 // pred_fallthru
      _
    %p137 = scmp.le.s32.totalorder 1, %s9
    %p138 = scmp.lt.s32.totalorder %s9, 5
    %p139 = pnand %p137, %p138
    %p140 = pneg %p139
    // Predicated region
    $region29: #{forward.5} parent=5 // pred_check
      _
    $region30: #{forward.5} parent=5 // pred_check_branch
      %142 = sbr.rel (%p139) target = $region32
    $region31: #{forward.5} parent=5 // pred_region
      %s143 = ssub.s32 %s9, 1
      %s144 = smul.u32 64, %s14
      %p145 = scmp.lt.s32.totalorder %s144, 255
      %s146 = scalar_select %p145, %s144, 255
      %s147 = smul.addr %s146, 4
      %s148 = scalar_lea.vmem %s0, %s147
      %p149 = pneg %p35
      %p150 = pneg %p32
      %p151 = pneg %p56
      %p152 = pneg %p53
      %p153 = pneg %p77
      %p154 = pneg %p74
      %p155 = pneg %p103
      %p156 = pneg %p100
      %s157 = smul.u32 64, %s14
      %p158 = scmp.lt.s32.totalorder %s157, 255
      %s159 = scalar_select %p158, %s157, 255
      %s160 = smul.addr %s159, 8
      %s161 = scalar_lea.vmem %s3, %s160
      %s162 = smul.u32 64, %s14
      %p163 = scmp.lt.s32.totalorder %s162, 255
      %s164 = scalar_select %p163, %s162, 255
      %s165 = smul.addr %s164, 4
      %s166 = scalar_lea.vmem %s0, %s165
      %s167 = smul.u32 64, %s14
      %s168 = smul.u32 64, %s14
      %p169 = scmp.lt.s32.totalorder %s168, 255
      %s170 = scalar_select %p169, %s168, 255
      %s171 = smul.addr %s170, 8
      %s172 = scalar_lea.vmem %s3, %s171
      %s173 = smul.u32 64, %s14
      %v175 = vld [vmem:[%s166] sm:$0xf]
      %v176 = vld [vmem:[%s166 + $0x4] sm:$0xf]
      %v177 = vld [vmem:[%s166 + $0x8] sm:$0xf]
      %v178 = vld [vmem:[%s166 + $0xc] sm:$0xf]
      %v179 = vld [vmem:[%s166 + $0x10] sm:$0xf]
      %v180 = vld [vmem:[%s166 + $0x14] sm:$0xf]
      %v181 = vld [vmem:[%s166 + $0x18] sm:$0xf]
      %v182 = vld [vmem:[%s166 + $0x1c] sm:$0xf]
      %v183 = vld [vmem:[%s166 + $0x20] sm:$0xf]
      %v184 = vld [vmem:[%s166 + $0x24] sm:$0xf]
      %v185 = vld [vmem:[%s166 + $0x28] sm:$0xf]
      %v186 = vld [vmem:[%s166 + $0x2c] sm:$0xf]
      %v187 = vld [vmem:[%s166 + $0x30] sm:$0xf]
      %v188 = vld [vmem:[%s166 + $0x34] sm:$0xf]
      %v189 = vld [vmem:[%s166 + $0x38] sm:$0xf]
      %v190 = vld [vmem:[%s166 + $0x3c] sm:$0xf]
      %v191 = vld [vmem:[%s166 + $0x40] sm:$0xf]
      %v192 = vld [vmem:[%s166 + $0x44] sm:$0xf]
      %v193 = vld [vmem:[%s166 + $0x48] sm:$0xf]
      %v194 = vld [vmem:[%s166 + $0x4c] sm:$0xf]
      %v195 = vld [vmem:[%s166 + $0x50] sm:$0xf]
      %v196 = vld [vmem:[%s166 + $0x54] sm:$0xf]
      %v197 = vld [vmem:[%s166 + $0x58] sm:$0xf]
      %v198 = vld [vmem:[%s166 + $0x5c] sm:$0xf]
      %v199 = vld [vmem:[%s166 + $0x60] sm:$0xf]
      %v200 = vld [vmem:[%s166 + $0x64] sm:$0xf]
      %v201 = vld [vmem:[%s166 + $0x68] sm:$0xf]
      %v202 = vld [vmem:[%s166 + $0x6c] sm:$0xf]
      %v203 = vld [vmem:[%s166 + $0x70] sm:$0xf]
      %v204 = vld [vmem:[%s166 + $0x74] sm:$0xf]
      %v205 = vld [vmem:[%s166 + $0x78] sm:$0xf]
      %v206 = vld [vmem:[%s166 + $0x7c] sm:$0xf]
      %v207 = vld [vmem:[%s166 + $0x80] sm:$0xf]
      %v208 = vld [vmem:[%s166 + $0x84] sm:$0xf]
      %v209 = vld [vmem:[%s166 + $0x88] sm:$0xf]
      %v210 = vld [vmem:[%s166 + $0x8c] sm:$0xf]
      %v211 = vld [vmem:[%s166 + $0x90] sm:$0xf]
      %v212 = vld [vmem:[%s166 + $0x94] sm:$0xf]
      %v213 = vld [vmem:[%s166 + $0x98] sm:$0xf]
      %v214 = vld [vmem:[%s166 + $0x9c] sm:$0xf]
      %v215 = vld [vmem:[%s166 + $0xa0] sm:$0xf]
      %v216 = vld [vmem:[%s166 + $0xa4] sm:$0xf]
      %v217 = vld [vmem:[%s166 + $0xa8] sm:$0xf]
      %v218 = vld [vmem:[%s166 + $0xac] sm:$0xf]
      %v219 = vld [vmem:[%s166 + $0xb0] sm:$0xf]
      %v220 = vld [vmem:[%s166 + $0xb4] sm:$0xf]
      %v221 = vld [vmem:[%s166 + $0xb8] sm:$0xf]
      %v222 = vld [vmem:[%s166 + $0xbc] sm:$0xf]
      %v223 = vld [vmem:[%s166 + $0xc0] sm:$0xf]
      %v224 = vld [vmem:[%s166 + $0xc4] sm:$0xf]
      %v225 = vld [vmem:[%s166 + $0xc8] sm:$0xf]
      %v226 = vld [vmem:[%s166 + $0xcc] sm:$0xf]
      %v227 = vld [vmem:[%s166 + $0xd0] sm:$0xf]
      %v228 = vld [vmem:[%s166 + $0xd4] sm:$0xf]
      %v229 = vld [vmem:[%s166 + $0xd8] sm:$0xf]
      %v230 = vld [vmem:[%s166 + $0xdc] sm:$0xf]
      %v231 = vld [vmem:[%s166 + $0xe0] sm:$0xf]
      %v232 = vld [vmem:[%s166 + $0xe4] sm:$0xf]
      %v233 = vld [vmem:[%s166 + $0xe8] sm:$0xf]
      %v234 = vld [vmem:[%s166 + $0xec] sm:$0xf]
      %v235 = vld [vmem:[%s166 + $0xf0] sm:$0xf]
      %v236 = vld [vmem:[%s166 + $0xf4] sm:$0xf]
      %v237 = vld [vmem:[%s166 + $0xf8] sm:$0xf]
      %v238 = vld [vmem:[%s166 + $0xfc] sm:$0xf]
      %v239 = vld [vmem:[%s1] sm:$0xf]
      %v240 = vld [vmem:[%s1 + $0x4] sm:$0xf]
      %v241 = vld [vmem:[%s1 + $0x8] sm:$0xf]
      %v242 = vld [vmem:[%s1 + $0xc] sm:$0x3]
      %v243 = vld [vmem:[%s2] sm:$0x1]
      %v245 = vlaneseq
      %v246 = vshrl.u32 %v245, 7
      %v247 = vsub.s32 0, %v246
      %v248 = vrot.slane %v243, %v247
      %v314 = vunpack.c.l.b16 %v175
      %v315 = vunpack.c.l.b16 %v176
      %v316 = vunpack.c.l.b16 %v177
      %v317 = vunpack.c.l.b16 %v178
      %v318 = vunpack.c.l.b16 %v179
      %v319 = vunpack.c.l.b16 %v180
      %v320 = vunpack.c.l.b16 %v181
      %v321 = vunpack.c.l.b16 %v182
      %v322 = vunpack.c.l.b16 %v183
      %v323 = vunpack.c.l.b16 %v184
      %v324 = vunpack.c.l.b16 %v185
      %v325 = vunpack.c.l.b16 %v186
      %v326 = vunpack.c.l.b16 %v187
      %v327 = vunpack.c.l.b16 %v188
      %v328 = vunpack.c.l.b16 %v189
      %v329 = vunpack.c.l.b16 %v190
      %v330 = vunpack.c.l.b16 %v191
      %v331 = vunpack.c.l.b16 %v192
      %v332 = vunpack.c.l.b16 %v193
      %v333 = vunpack.c.l.b16 %v194
      %v334 = vunpack.c.l.b16 %v195
      %v335 = vunpack.c.l.b16 %v196
      %v336 = vunpack.c.l.b16 %v197
      %v337 = vunpack.c.l.b16 %v198
      %v338 = vunpack.c.l.b16 %v199
      %v339 = vunpack.c.l.b16 %v200
      %v340 = vunpack.c.l.b16 %v201
      %v341 = vunpack.c.l.b16 %v202
      %v342 = vunpack.c.l.b16 %v203
      %v343 = vunpack.c.l.b16 %v204
      %v344 = vunpack.c.l.b16 %v205
      %v345 = vunpack.c.l.b16 %v206
      %v346 = vunpack.c.l.b16 %v207
      %v347 = vunpack.c.l.b16 %v208
      %v348 = vunpack.c.l.b16 %v209
      %v349 = vunpack.c.l.b16 %v210
      %v350 = vunpack.c.l.b16 %v211
      %v351 = vunpack.c.l.b16 %v212
      %v352 = vunpack.c.l.b16 %v213
      %v353 = vunpack.c.l.b16 %v214
      %v354 = vunpack.c.l.b16 %v215
      %v355 = vunpack.c.l.b16 %v216
      %v356 = vunpack.c.l.b16 %v217
      %v357 = vunpack.c.l.b16 %v218
      %v358 = vunpack.c.l.b16 %v219
      %v359 = vunpack.c.l.b16 %v220
      %v360 = vunpack.c.l.b16 %v221
      %v361 = vunpack.c.l.b16 %v222
      %v362 = vunpack.c.l.b16 %v223
      %v363 = vunpack.c.l.b16 %v224
      %v364 = vunpack.c.l.b16 %v225
      %v365 = vunpack.c.l.b16 %v226
      %v366 = vunpack.c.l.b16 %v227
      %v367 = vunpack.c.l.b16 %v228
      %v368 = vunpack.c.l.b16 %v229
      %v369 = vunpack.c.l.b16 %v230
      %v370 = vunpack.c.l.b16 %v231
      %v371 = vunpack.c.l.b16 %v232
      %v372 = vunpack.c.l.b16 %v233
      %v373 = vunpack.c.l.b16 %v234
      %v374 = vunpack.c.l.b16 %v235
      %v375 = vunpack.c.l.b16 %v236
      %v376 = vunpack.c.l.b16 %v237
      %v377 = vunpack.c.l.b16 %v238
      %v378 = vpack.c.b16 %v315, %v314
      %v379 = vpack.c.b16 %v317, %v316
      %v380 = vpack.c.b16 %v319, %v318
      %v381 = vpack.c.b16 %v321, %v320
      %v382 = vpack.c.b16 %v323, %v322
      %v383 = vpack.c.b16 %v325, %v324
      %v384 = vpack.c.b16 %v327, %v326
      %v385 = vpack.c.b16 %v329, %v328
      %v386 = vpack.c.b16 %v331, %v330
      %v387 = vpack.c.b16 %v333, %v332
      %v388 = vpack.c.b16 %v335, %v334
      %v389 = vpack.c.b16 %v337, %v336
      %v390 = vpack.c.b16 %v339, %v338
      %v391 = vpack.c.b16 %v341, %v340
      %v392 = vpack.c.b16 %v343, %v342
      %v393 = vpack.c.b16 %v345, %v344
      %v394 = vpack.c.b16 %v347, %v346
      %v395 = vpack.c.b16 %v349, %v348
      %v396 = vpack.c.b16 %v351, %v350
      %v397 = vpack.c.b16 %v353, %v352
      %v398 = vpack.c.b16 %v355, %v354
      %v399 = vpack.c.b16 %v357, %v356
      %v400 = vpack.c.b16 %v359, %v358
      %v401 = vpack.c.b16 %v361, %v360
      %v402 = vpack.c.b16 %v363, %v362
      %v403 = vpack.c.b16 %v365, %v364
      %v404 = vpack.c.b16 %v367, %v366
      %v405 = vpack.c.b16 %v369, %v368
      %v406 = vpack.c.b16 %v371, %v370
      %v407 = vpack.c.b16 %v373, %v372
      %v408 = vpack.c.b16 %v375, %v374
      %v409 = vpack.c.b16 %v377, %v376
      %v414 = vunpack.c.l.b16 %v239
      %v415 = vunpack.c.l.b16 %v240
      %v416 = vunpack.c.l.b16 %v241
      %v417 = vunpack.c.l.b16 %v242
      %v418 = vpack.c.b16 %v415, %v414
      %v419 = vpack.c.b16 %v417, %v416
      %vm421 = vcmask 220160
      %v423 = vsel %vm421, %v378, 0
      %v426 = vsel %vm421, %v379, 0
      %v429 = vsel %vm421, %v380, 0
      %v432 = vsel %vm421, %v381, 0
      %v435 = vsel %vm421, %v382, 0
      %v438 = vsel %vm421, %v383, 0
      %v441 = vsel %vm421, %v384, 0
      %v444 = vsel %vm421, %v385, 0
      %v447 = vsel %vm421, %v386, 0
      %v450 = vsel %vm421, %v387, 0
      %v453 = vsel %vm421, %v388, 0
      %v456 = vsel %vm421, %v389, 0
      %v459 = vsel %vm421, %v390, 0
      %v462 = vsel %vm421, %v391, 0
      %v465 = vsel %vm421, %v392, 0
      %v468 = vsel %vm421, %v393, 0
      %v471 = vsel %vm421, %v394, 0
      %v474 = vsel %vm421, %v395, 0
      %v477 = vsel %vm421, %v396, 0
      %v480 = vsel %vm421, %v397, 0
      %v483 = vsel %vm421, %v398, 0
      %v486 = vsel %vm421, %v399, 0
      %v489 = vsel %vm421, %v400, 0
      %v492 = vsel %vm421, %v401, 0
      %v495 = vsel %vm421, %v402, 0
      %v498 = vsel %vm421, %v403, 0
      %v501 = vsel %vm421, %v404, 0
      %v504 = vsel %vm421, %v405, 0
      %v507 = vsel %vm421, %v406, 0
      %v510 = vsel %vm421, %v407, 0
      %v513 = vsel %vm421, %v408, 0
      %v516 = vsel %vm421, %v409, 0
      %vm518 = vcmask 1044480
      %vm519 = vcmask 1045504
      %v520 = vsel %vm518, 4294967295, 65535
      %v521 = vsel %vm519, %v520, 0
      %v523 = vand.u32 %v419, %v521
      %525 = vmatprep.subr.bf16.mxu0 0
      %526 = vmatpush1.bf16.msra.mxu0 %v418
      %527 = vmatprep.subr.bf16.mxu0 0
      %528 = vmatpush1.bf16.msra.mxu0 %v523
      %529 = vmatprep.subr.bf16.mxu0 0
      %530 = vmatpush1.bf16.msra.mxu0 0
      %531 = vmatprep.subr.bf16.mxu0 0
      %532 = vmatpush1.bf16.msra.mxu0 0
      %533 = vmatprep.subr.bf16.mxu0 0
      %534 = vmatpush1.bf16.msra.mxu0 0
      %535 = vmatprep.subr.bf16.mxu0 0
      %536 = vmatpush1.bf16.msra.mxu0 0
      %537 = vmatprep.subr.bf16.mxu0 0
      %538 = vmatpush1.bf16.msra.mxu0 0
      %539 = vmatprep.subr.bf16.mxu0 0
      %540 = vmatpush1.bf16.msra.mxu0 0
      %541 = vmatprep.subr.bf16.mxu0 0
      %542 = vmatpush1.bf16.msra.mxu0 0
      %543 = vmatprep.subr.bf16.mxu0 0
      %544 = vmatpush1.bf16.msra.mxu0 0
      %545 = vmatprep.subr.bf16.mxu0 0
      %546 = vmatpush1.bf16.msra.mxu0 0
      %547 = vmatprep.subr.bf16.mxu0 0
      %548 = vmatpush1.bf16.msra.mxu0 0
      %549 = vmatprep.subr.bf16.mxu0 0
      %550 = vmatpush1.bf16.msra.mxu0 0
      %551 = vmatprep.subr.bf16.mxu0 0
      %552 = vmatpush1.bf16.msra.mxu0 0
      %553 = vmatprep.subr.bf16.mxu0 0
      %554 = vmatpush1.bf16.msra.mxu0 0
      %555 = vmatprep.subr.bf16.mxu0 0
      %556 = vmatpush1.bf16.msra.mxu0 0
      %557 = vmatprep.mubr.bf16.mxu0 0
      %558 = vmatmul.mubr.bf16.gmra.mrb[0].mxu0 %v423
      %v559 = vpop.f32.mrb[0].mxu0
      %v560 = vadd.f32 %v248, %v559
      %v561 = vpop.f32.mrb[0].mxu0
      %v562 = vpop.f32.mrb[0].mxu0
      %v563 = vadd.f32 %v248, %v562
      %v564 = vpop.f32.mrb[0].mxu0
      %565 = vmatprep.mubr.bf16.mxu0 0
      %566 = vmatmul.mubr.bf16.gmra.mrb[0].mxu0 %v426
      %v567 = vpop.f32.mrb[0].mxu0
      %v568 = vadd.f32 %v248, %v567
      %v569 = vpop.f32.mrb[0].mxu0
      %v570 = vpop.f32.mrb[0].mxu0
      %v571 = vadd.f32 %v248, %v570
      %v572 = vpop.f32.mrb[0].mxu0
      %573 = vmatprep.mubr.bf16.mxu0 0
      %574 = vmatmul.mubr.bf16.gmra.mrb[0].mxu0 %v429
      %v575 = vpop.f32.mrb[0].mxu0
      %v576 = vadd.f32 %v248, %v575
      %v577 = vpop.f32.mrb[0].mxu0
      %v578 = vpop.f32.mrb[0].mxu0
      %v579 = vadd.f32 %v248, %v578
      %v580 = vpop.f32.mrb[0].mxu0
      %581 = vmatprep.mubr.bf16.mxu0 0
      %582 = vmatmul.mubr.bf16.gmra.mrb[0].mxu0 %v432
      %v583 = vpop.f32.mrb[0].mxu0
      %v584 = vadd.f32 %v248, %v583
      %v585 = vpop.f32.mrb[0].mxu0
      %v586 = vpop.f32.mrb[0].mxu0
      %v587 = vadd.f32 %v248, %v586
      %v588 = vpop.f32.mrb[0].mxu0
      %589 = vmatprep.mubr.bf16.mxu0 0
      %590 = vmatmul.mubr.bf16.gmra.mrb[0].mxu0 %v435
      %v591 = vpop.f32.mrb[0].mxu0
      %v592 = vadd.f32 %v248, %v591
      %v593 = vpop.f32.mrb[0].mxu0
      %v594 = vpop.f32.mrb[0].mxu0
      %v595 = vadd.f32 %v248, %v594
      %v596 = vpop.f32.mrb[0].mxu0
      %597 = vmatprep.mubr.bf16.mxu0 0
      %598 = vmatmul.mubr.bf16.gmra.mrb[0].mxu0 %v438
      %v599 = vpop.f32.mrb[0].mxu0
      %v600 = vadd.f32 %v248, %v599
      %v601 = vpop.f32.mrb[0].mxu0
      %v602 = vpop.f32.mrb[0].mxu0
      %v603 = vadd.f32 %v248, %v602
      %v604 = vpop.f32.mrb[0].mxu0
      %605 = vmatprep.mubr.bf16.mxu0 0
      %606 = vmatmul.mubr.bf16.gmra.mrb[0].mxu0 %v441
      %v607 = vpop.f32.mrb[0].mxu0
      %v608 = vadd.f32 %v248, %v607
      %v609 = vpop.f32.mrb[0].mxu0
      %v610 = vpop.f32.mrb[0].mxu0
      %v611 = vadd.f32 %v248, %v610
      %v612 = vpop.f32.mrb[0].mxu0
      %613 = vmatprep.mubr.bf16.mxu0 0
      %614 = vmatmul.mubr.bf16.gmra.mrb[0].mxu0 %v444
      %v615 = vpop.f32.mrb[0].mxu0
      %v616 = vadd.f32 %v248, %v615
      %v617 = vpop.f32.mrb[0].mxu0
      %v618 = vpop.f32.mrb[0].mxu0
      %v619 = vadd.f32 %v248, %v618
      %v620 = vpop.f32.mrb[0].mxu0
      %621 = vmatprep.mubr.bf16.mxu0 0
      %622 = vmatmul.mubr.bf16.gmra.mrb[0].mxu0 %v447
      %v623 = vpop.f32.mrb[0].mxu0
      %v624 = vadd.f32 %v248, %v623
      %v625 = vpop.f32.mrb[0].mxu0
      %v626 = vpop.f32.mrb[0].mxu0
      %v627 = vadd.f32 %v248, %v626
      %v628 = vpop.f32.mrb[0].mxu0
      %629 = vmatprep.mubr.bf16.mxu0 0
      %630 = vmatmul.mubr.bf16.gmra.mrb[0].mxu0 %v450
      %v631 = vpop.f32.mrb[0].mxu0
      %v632 = vadd.f32 %v248, %v631
      %v633 = vpop.f32.mrb[0].mxu0
      %v634 = vpop.f32.mrb[0].mxu0
      %v635 = vadd.f32 %v248, %v634
      %v636 = vpop.f32.mrb[0].mxu0
      %637 = vmatprep.mubr.bf16.mxu0 0
      %638 = vmatmul.mubr.bf16.gmra.mrb[0].mxu0 %v453
      %v639 = vpop.f32.mrb[0].mxu0
      %v640 = vadd.f32 %v248, %v639
      %v641 = vpop.f32.mrb[0].mxu0
      %v642 = vpop.f32.mrb[0].mxu0
      %v643 = vadd.f32 %v248, %v642
      %v644 = vpop.f32.mrb[0].mxu0
      %645 = vmatprep.mubr.bf16.mxu0 0
      %646 = vmatmul.mubr.bf16.gmra.mrb[0].mxu0 %v456
      %v647 = vpop.f32.mrb[0].mxu0
      %v648 = vadd.f32 %v248, %v647
      %v649 = vpop.f32.mrb[0].mxu0
      %v650 = vpop.f32.mrb[0].mxu0
      %v651 = vadd.f32 %v248, %v650
      %v652 = vpop.f32.mrb[0].mxu0
      %653 = vmatprep.mubr.bf16.mxu0 0
      %654 = vmatmul.mubr.bf16.gmra.mrb[0].mxu0 %v459
      %v655 = vpop.f32.mrb[0].mxu0
      %v656 = vadd.f32 %v248, %v655
      %v657 = vpop.f32.mrb[0].mxu0
      %v658 = vpop.f32.mrb[0].mxu0
      %v659 = vadd.f32 %v248, %v658
      %v660 = vpop.f32.mrb[0].mxu0
      %661 = vmatprep.mubr.bf16.mxu0 0
      %662 = vmatmul.mubr.bf16.gmra.mrb[0].mxu0 %v462
      %v663 = vpop.f32.mrb[0].mxu0
      %v664 = vadd.f32 %v248, %v663
      %v665 = vpop.f32.mrb[0].mxu0
      %v666 = vpop.f32.mrb[0].mxu0
      %v667 = vadd.f32 %v248, %v666
      %v668 = vpop.f32.mrb[0].mxu0
      %669 = vmatprep.mubr.bf16.mxu0 0
      %670 = vmatmul.mubr.bf16.gmra.mrb[0].mxu0 %v465
      %v671 = vpop.f32.mrb[0].mxu0
      %v672 = vadd.f32 %v248, %v671
      %v673 = vpop.f32.mrb[0].mxu0
      %v674 = vpop.f32.mrb[0].mxu0
      %v675 = vadd.f32 %v248, %v674
      %v676 = vpop.f32.mrb[0].mxu0
      %677 = vmatprep.mubr.bf16.mxu0 0
      %678 = vmatmul.mubr.bf16.gmra.mrb[0].mxu0 %v468
      %v679 = vpop.f32.mrb[0].mxu0
      %v680 = vadd.f32 %v248, %v679
      %v681 = vpop.f32.mrb[0].mxu0
      %v682 = vpop.f32.mrb[0].mxu0
      %v683 = vadd.f32 %v248, %v682
      %v684 = vpop.f32.mrb[0].mxu0
      %685 = vmatprep.mubr.bf16.mxu0 0
      %686 = vmatmul.mubr.bf16.gmra.mrb[0].mxu0 %v471
      %v687 = vpop.f32.mrb[0].mxu0
      %v688 = vadd.f32 %v248, %v687
      %v689 = vpop.f32.mrb[0].mxu0
      %v690 = vpop.f32.mrb[0].mxu0
      %v691 = vadd.f32 %v248, %v690
      %v692 = vpop.f32.mrb[0].mxu0
      %693 = vmatprep.mubr.bf16.mxu0 0
      %694 = vmatmul.mubr.bf16.gmra.mrb[0].mxu0 %v474
      %v695 = vpop.f32.mrb[0].mxu0
      %v696 = vadd.f32 %v248, %v695
      %v697 = vpop.f32.mrb[0].mxu0
      %v698 = vpop.f32.mrb[0].mxu0
      %v699 = vadd.f32 %v248, %v698
      %v700 = vpop.f32.mrb[0].mxu0
      %701 = vmatprep.mubr.bf16.mxu0 0
      %702 = vmatmul.mubr.bf16.gmra.mrb[0].mxu0 %v477
      %v703 = vpop.f32.mrb[0].mxu0
      %v704 = vadd.f32 %v248, %v703
      %v705 = vpop.f32.mrb[0].mxu0
      %v706 = vpop.f32.mrb[0].mxu0
      %v707 = vadd.f32 %v248, %v706
      %v708 = vpop.f32.mrb[0].mxu0
      %709 = vmatprep.mubr.bf16.mxu0 0
      %710 = vmatmul.mubr.bf16.gmra.mrb[0].mxu0 %v480
      %v711 = vpop.f32.mrb[0].mxu0
      %v712 = vadd.f32 %v248, %v711
      %v713 = vpop.f32.mrb[0].mxu0
      %v714 = vpop.f32.mrb[0].mxu0
      %v715 = vadd.f32 %v248, %v714
      %v716 = vpop.f32.mrb[0].mxu0
      %717 = vmatprep.mubr.bf16.mxu0 0
      %718 = vmatmul.mubr.bf16.gmra.mrb[0].mxu0 %v483
      %v719 = vpop.f32.mrb[0].mxu0
      %v720 = vadd.f32 %v248, %v719
      %v721 = vpop.f32.mrb[0].mxu0
      %v722 = vpop.f32.mrb[0].mxu0
      %v723 = vadd.f32 %v248, %v722
      %v724 = vpop.f32.mrb[0].mxu0
      %725 = vmatprep.mubr.bf16.mxu0 0
      %726 = vmatmul.mubr.bf16.gmra.mrb[0].mxu0 %v486
      %v727 = vpop.f32.mrb[0].mxu0
      %v728 = vadd.f32 %v248, %v727
      %v729 = vpop.f32.mrb[0].mxu0
      %v730 = vpop.f32.mrb[0].mxu0
      %v731 = vadd.f32 %v248, %v730
      %v732 = vpop.f32.mrb[0].mxu0
      %733 = vmatprep.mubr.bf16.mxu0 0
      %734 = vmatmul.mubr.bf16.gmra.mrb[0].mxu0 %v489
      %v735 = vpop.f32.mrb[0].mxu0
      %v736 = vadd.f32 %v248, %v735
      %v737 = vpop.f32.mrb[0].mxu0
      %v738 = vpop.f32.mrb[0].mxu0
      %v739 = vadd.f32 %v248, %v738
      %v740 = vpop.f32.mrb[0].mxu0
      %741 = vmatprep.mubr.bf16.mxu0 0
      %742 = vmatmul.mubr.bf16.gmra.mrb[0].mxu0 %v492
      %v743 = vpop.f32.mrb[0].mxu0
      %v744 = vadd.f32 %v248, %v743
      %v745 = vpop.f32.mrb[0].mxu0
      %v746 = vpop.f32.mrb[0].mxu0
      %v747 = vadd.f32 %v248, %v746
      %v748 = vpop.f32.mrb[0].mxu0
      %749 = vmatprep.mubr.bf16.mxu0 0
      %750 = vmatmul.mubr.bf16.gmra.mrb[0].mxu0 %v495
      %v751 = vpop.f32.mrb[0].mxu0
      %v752 = vadd.f32 %v248, %v751
      %v753 = vpop.f32.mrb[0].mxu0
      %v754 = vpop.f32.mrb[0].mxu0
      %v755 = vadd.f32 %v248, %v754
      %v756 = vpop.f32.mrb[0].mxu0
      %757 = vmatprep.mubr.bf16.mxu0 0
      %758 = vmatmul.mubr.bf16.gmra.mrb[0].mxu0 %v498
      %v759 = vpop.f32.mrb[0].mxu0
      %v760 = vadd.f32 %v248, %v759
      %v761 = vpop.f32.mrb[0].mxu0
      %v762 = vpop.f32.mrb[0].mxu0
      %v763 = vadd.f32 %v248, %v762
      %v764 = vpop.f32.mrb[0].mxu0
      %765 = vmatprep.mubr.bf16.mxu0 0
      %766 = vmatmul.mubr.bf16.gmra.mrb[0].mxu0 %v501
      %v767 = vpop.f32.mrb[0].mxu0
      %v768 = vadd.f32 %v248, %v767
      %v769 = vpop.f32.mrb[0].mxu0
      %v770 = vpop.f32.mrb[0].mxu0
      %v771 = vadd.f32 %v248, %v770
      %v772 = vpop.f32.mrb[0].mxu0
      %773 = vmatprep.mubr.bf16.mxu0 0
      %774 = vmatmul.mubr.bf16.gmra.mrb[0].mxu0 %v504
      %v775 = vpop.f32.mrb[0].mxu0
      %v776 = vadd.f32 %v248, %v775
      %v777 = vpop.f32.mrb[0].mxu0
      %v778 = vpop.f32.mrb[0].mxu0
      %v779 = vadd.f32 %v248, %v778
      %v780 = vpop.f32.mrb[0].mxu0
      %781 = vmatprep.mubr.bf16.mxu0 0
      %782 = vmatmul.mubr.bf16.gmra.mrb[0].mxu0 %v507
      %v783 = vpop.f32.mrb[0].mxu0
      %v784 = vadd.f32 %v248, %v783
      %v785 = vpop.f32.mrb[0].mxu0
      %v786 = vpop.f32.mrb[0].mxu0
      %v787 = vadd.f32 %v248, %v786
      %v788 = vpop.f32.mrb[0].mxu0
      %789 = vmatprep.mubr.bf16.mxu0 0
      %790 = vmatmul.mubr.bf16.gmra.mrb[0].mxu0 %v510
      %v791 = vpop.f32.mrb[0].mxu0
      %v792 = vadd.f32 %v248, %v791
      %v793 = vpop.f32.mrb[0].mxu0
      %v794 = vpop.f32.mrb[0].mxu0
      %v795 = vadd.f32 %v248, %v794
      %v796 = vpop.f32.mrb[0].mxu0
      %797 = vmatprep.mubr.bf16.mxu0 0
      %798 = vmatmul.mubr.bf16.gmra.mrb[0].mxu0 %v513
      %v799 = vpop.f32.mrb[0].mxu0
      %v800 = vadd.f32 %v248, %v799
      %v801 = vpop.f32.mrb[0].mxu0
      %v802 = vpop.f32.mrb[0].mxu0
      %v803 = vadd.f32 %v248, %v802
      %v804 = vpop.f32.mrb[0].mxu0
      %805 = vmatprep.mubr.bf16.mxu0 0
      %806 = vmatmul.mubr.bf16.gmra.mrb[0].mxu0 %v516
      %v807 = vpop.f32.mrb[0].mxu0
      %v808 = vadd.f32 %v248, %v807
      %v809 = vpop.f32.mrb[0].mxu0
      %v810 = vpop.f32.mrb[0].mxu0
      %v811 = vadd.f32 %v248, %v810
      %v812 = vpop.f32.mrb[0].mxu0
      %813 = vdwg.mxu0
      %v814 = vmax.f32 %v560, 0.0
      %v815 = vmax.f32 %v563, 0.0
      %v816 = vmax.f32 %v568, 0.0
      %v817 = vmax.f32 %v571, 0.0
      %v818 = vmax.f32 %v576, 0.0
      %v819 = vmax.f32 %v579, 0.0
      %v820 = vmax.f32 %v584, 0.0
      %v821 = vmax.f32 %v587, 0.0
      %v822 = vmax.f32 %v592, 0.0
      %v823 = vmax.f32 %v595, 0.0
      %v824 = vmax.f32 %v600, 0.0
      %v825 = vmax.f32 %v603, 0.0
      %v826 = vmax.f32 %v608, 0.0
      %v827 = vmax.f32 %v611, 0.0
      %v828 = vmax.f32 %v616, 0.0
      %v829 = vmax.f32 %v619, 0.0
      %v830 = vmax.f32 %v624, 0.0
      %v831 = vmax.f32 %v627, 0.0
      %v832 = vmax.f32 %v632, 0.0
      %v833 = vmax.f32 %v635, 0.0
      %v834 = vmax.f32 %v640, 0.0
      %v835 = vmax.f32 %v643, 0.0
      %v836 = vmax.f32 %v648, 0.0
      %v837 = vmax.f32 %v651, 0.0
      %v838 = vmax.f32 %v656, 0.0
      %v839 = vmax.f32 %v659, 0.0
      %v840 = vmax.f32 %v664, 0.0
      %v841 = vmax.f32 %v667, 0.0
      %v842 = vmax.f32 %v672, 0.0
      %v843 = vmax.f32 %v675, 0.0
      %v844 = vmax.f32 %v680, 0.0
      %v845 = vmax.f32 %v683, 0.0
      %v846 = vmax.f32 %v688, 0.0
      %v847 = vmax.f32 %v691, 0.0
      %v848 = vmax.f32 %v696, 0.0
      %v849 = vmax.f32 %v699, 0.0
      %v850 = vmax.f32 %v704, 0.0
      %v851 = vmax.f32 %v707, 0.0
      %v852 = vmax.f32 %v712, 0.0
      %v853 = vmax.f32 %v715, 0.0
      %v854 = vmax.f32 %v720, 0.0
      %v855 = vmax.f32 %v723, 0.0
      %v856 = vmax.f32 %v728, 0.0
      %v857 = vmax.f32 %v731, 0.0
      %v858 = vmax.f32 %v736, 0.0
      %v859 = vmax.f32 %v739, 0.0
      %v860 = vmax.f32 %v744, 0.0
      %v861 = vmax.f32 %v747, 0.0
      %v862 = vmax.f32 %v752, 0.0
      %v863 = vmax.f32 %v755, 0.0
      %v864 = vmax.f32 %v760, 0.0
      %v865 = vmax.f32 %v763, 0.0
      %v866 = vmax.f32 %v768, 0.0
      %v867 = vmax.f32 %v771, 0.0
      %v868 = vmax.f32 %v776, 0.0
      %v869 = vmax.f32 %v779, 0.0
      %v870 = vmax.f32 %v784, 0.0
      %v871 = vmax.f32 %v787, 0.0
      %v872 = vmax.f32 %v792, 0.0
      %v873 = vmax.f32 %v795, 0.0
      %v874 = vmax.f32 %v800, 0.0
      %v875 = vmax.f32 %v803, 0.0
      %v876 = vmax.f32 %v808, 0.0
      %v877 = vmax.f32 %v811, 0.0
      %vm878 = vcmask 64512
      %879 = vst.msk [vmem:[%s172] sm:$0xff] %vm878, %v814
      %880 = vst.msk [vmem:[%s172 + $0x8] sm:$0xff] %vm878, %v815
      %881 = vst.msk [vmem:[%s172 + $0x10] sm:$0xff] %vm878, %v816
      %882 = vst.msk [vmem:[%s172 + $0x18] sm:$0xff] %vm878, %v817
      %883 = vst.msk [vmem:[%s172 + $0x20] sm:$0xff] %vm878, %v818
      %884 = vst.msk [vmem:[%s172 + $0x28] sm:$0xff] %vm878, %v819
      %885 = vst.msk [vmem:[%s172 + $0x30] sm:$0xff] %vm878, %v820
      %886 = vst.msk [vmem:[%s172 + $0x38] sm:$0xff] %vm878, %v821
      %887 = vst.msk [vmem:[%s172 + $0x40] sm:$0xff] %vm878, %v822
      %888 = vst.msk [vmem:[%s172 + $0x48] sm:$0xff] %vm878, %v823
      %889 = vst.msk [vmem:[%s172 + $0x50] sm:$0xff] %vm878, %v824
      %890 = vst.msk [vmem:[%s172 + $0x58] sm:$0xff] %vm878, %v825
      %891 = vst.msk [vmem:[%s172 + $0x60] sm:$0xff] %vm878, %v826
      %892 = vst.msk [vmem:[%s172 + $0x68] sm:$0xff] %vm878, %v827
      %893 = vst.msk [vmem:[%s172 + $0x70] sm:$0xff] %vm878, %v828
      %894 = vst.msk [vmem:[%s172 + $0x78] sm:$0xff] %vm878, %v829
      %895 = vst.msk [vmem:[%s172 + $0x80] sm:$0xff] %vm878, %v830
      %896 = vst.msk [vmem:[%s172 + $0x88] sm:$0xff] %vm878, %v831
      %897 = vst.msk [vmem:[%s172 + $0x90] sm:$0xff] %vm878, %v832
      %898 = vst.msk [vmem:[%s172 + $0x98] sm:$0xff] %vm878, %v833
      %899 = vst.msk [vmem:[%s172 + $0xa0] sm:$0xff] %vm878, %v834
      %900 = vst.msk [vmem:[%s172 + $0xa8] sm:$0xff] %vm878, %v835
      %901 = vst.msk [vmem:[%s172 + $0xb0] sm:$0xff] %vm878, %v836
      %902 = vst.msk [vmem:[%s172 + $0xb8] sm:$0xff] %vm878, %v837
      %903 = vst.msk [vmem:[%s172 + $0xc0] sm:$0xff] %vm878, %v838
      %904 = vst.msk [vmem:[%s172 + $0xc8] sm:$0xff] %vm878, %v839
      %905 = vst.msk [vmem:[%s172 + $0xd0] sm:$0xff] %vm878, %v840
      %906 = vst.msk [vmem:[%s172 + $0xd8] sm:$0xff] %vm878, %v841
      %907 = vst.msk [vmem:[%s172 + $0xe0] sm:$0xff] %vm878, %v842
      %908 = vst.msk [vmem:[%s172 + $0xe8] sm:$0xff] %vm878, %v843
      %909 = vst.msk [vmem:[%s172 + $0xf0] sm:$0xff] %vm878, %v844
      %910 = vst.msk [vmem:[%s172 + $0xf8] sm:$0xff] %vm878, %v845
      %911 = vst.msk [vmem:[%s172 + $0x100] sm:$0xff] %vm878, %v846
      %912 = vst.msk [vmem:[%s172 + $0x108] sm:$0xff] %vm878, %v847
      %913 = vst.msk [vmem:[%s172 + $0x110] sm:$0xff] %vm878, %v848
      %914 = vst.msk [vmem:[%s172 + $0x118] sm:$0xff] %vm878, %v849
      %915 = vst.msk [vmem:[%s172 + $0x120] sm:$0xff] %vm878, %v850
      %916 = vst.msk [vmem:[%s172 + $0x128] sm:$0xff] %vm878, %v851
      %917 = vst.msk [vmem:[%s172 + $0x130] sm:$0xff] %vm878, %v852
      %918 = vst.msk [vmem:[%s172 + $0x138] sm:$0xff] %vm878, %v853
      %919 = vst.msk [vmem:[%s172 + $0x140] sm:$0xff] %vm878, %v854
      %920 = vst.msk [vmem:[%s172 + $0x148] sm:$0xff] %vm878, %v855
      %921 = vst.msk [vmem:[%s172 + $0x150] sm:$0xff] %vm878, %v856
      %922 = vst.msk [vmem:[%s172 + $0x158] sm:$0xff] %vm878, %v857
      %923 = vst.msk [vmem:[%s172 + $0x160] sm:$0xff] %vm878, %v858
      %924 = vst.msk [vmem:[%s172 + $0x168] sm:$0xff] %vm878, %v859
      %925 = vst.msk [vmem:[%s172 + $0x170] sm:$0xff] %vm878, %v860
      %926 = vst.msk [vmem:[%s172 + $0x178] sm:$0xff] %vm878, %v861
      %927 = vst.msk [vmem:[%s172 + $0x180] sm:$0xff] %vm878, %v862
      %928 = vst.msk [vmem:[%s172 + $0x188] sm:$0xff] %vm878, %v863
      %929 = vst.msk [vmem:[%s172 + $0x190] sm:$0xff] %vm878, %v864
      %930 = vst.msk [vmem:[%s172 + $0x198] sm:$0xff] %vm878, %v865
      %931 = vst.msk [vmem:[%s172 + $0x1a0] sm:$0xff] %vm878, %v866
      %932 = vst.msk [vmem:[%s172 + $0x1a8] sm:$0xff] %vm878, %v867
      %933 = vst.msk [vmem:[%s172 + $0x1b0] sm:$0xff] %vm878, %v868
      %934 = vst.msk [vmem:[%s172 + $0x1b8] sm:$0xff] %vm878, %v869
      %935 = vst.msk [vmem:[%s172 + $0x1c0] sm:$0xff] %vm878, %v870
      %936 = vst.msk [vmem:[%s172 + $0x1c8] sm:$0xff] %vm878, %v871
      %937 = vst.msk [vmem:[%s172 + $0x1d0] sm:$0xff] %vm878, %v872
      %938 = vst.msk [vmem:[%s172 + $0x1d8] sm:$0xff] %vm878, %v873
      %939 = vst.msk [vmem:[%s172 + $0x1e0] sm:$0xff] %vm878, %v874
      %940 = vst.msk [vmem:[%s172 + $0x1e8] sm:$0xff] %vm878, %v875
      %941 = vst.msk [vmem:[%s172 + $0x1f0] sm:$0xff] %vm878, %v876
      %942 = vst.msk [vmem:[%s172 + $0x1f8] sm:$0xff] %vm878, %v877
      %s943 = smul.u32 64, %s14
      %p944 = scmp.lt.s32.totalorder %s943, 255
      %s945 = scalar_select %p944, %s943, 255
      %s946 = smul.addr %s945, 8
      %s947 = scalar_lea.vmem %s3, %s946
      // Predicated region
      $region33: #{forward.5} parent=31 // pred_check
        %p948 = pneg %p100
      $region34: #{forward.5} parent=31 // pred_check_branch
        %950 = sbr.rel (%p948) target = $region36
      $region35: #{forward.5} parent=31 // pred_region
        %s951 = smul.u32 64, %s14
      $region36: #{forward.5} parent=31 // pred_fallthru
        _
    $region32: #{forward.5} parent=5 // pred_fallthru
      _
    %p952 = scmp.le.s32.totalorder 2, %s9
    // Predicated region
    $region37: #{forward.5} parent=5 // pred_check
      %p953 = pneg %p952
    $region38: #{forward.5} parent=5 // pred_check_branch
      %955 = sbr.rel (%p953) target = $region40
    $region39: #{forward.5} parent=5 // pred_region
      %s956 = ssub.s32 %s9, 2
      // Predicated region
      $region41: #{forward.5} parent=39 // pred_check
        %p957 = pneg %p106
      $region42: #{forward.5} parent=39 // pred_check_branch
        %959 = sbr.rel (%p957) target = $region44
      $region43: #{forward.5} parent=39 // pred_region
        %s960 = smul.u32 64, %s15
        %p961 = scmp.lt.s32.totalorder %s960, 255
        %s962 = scalar_select %p961, %s960, 255
        %s963 = smul.addr %s962, 8
        %s964 = scalar_lea.vmem %s3, %s963
      $region44: #{forward.5} parent=39 // pred_fallthru
        _
    $region40: #{forward.5} parent=5 // pred_fallthru
      _
  $region6: #{forward.5} parent=0 // loop_footer
    %s13 = sadd.s32 1, %s9
  $region7: #{forward.5} parent=0 // loop_footer_branch
    %8 = sbr.rel target = $region3
  $region8: #{forward.5} parent=0 // loop_exit
    _

// kernel: forward.6
$region0: #{forward.6}
  #allocation0 [shape = 'u32[]', space=smem, size = 0x4, offset = 0x4, fixed_abs, tag = 'smem constant byte address 0x4 - core index']
  #allocation1 [shape = 'u32[144,128]{1,0:T(1,128)}', space=vmem, size = 0x12000, scoped, tag = 'internal scratch']
  %s0 = inlined_call_operand.vmem [shape: bf16[512,72], index: 0, kind: input, shape index: {}]
  %s1 = inlined_call_operand.vmem [shape: bf16[72,16], index: 1, kind: input, shape index: {}]
  %s2 = inlined_call_operand.vmem [shape: f32[1,16], index: 2, kind: input, shape index: {}]
  %s3 = inlined_call_operand.vmem [shape: f32[512,16], index: 3, kind: output, shape index: {}]
  %s4 = sld [smem:[#allocation0]]
  $region22: #{forward.6} parent=0
    _
  %s6 = ssub.s32 1, %s4
  %s7 = scalar_select 0, %s6, %s4
  // Predicated region
  $region2: #{forward.6} parent=0 // pred_check
    _
  $region3: #{forward.6} parent=0 // pred_check_branch
    %9 = sbr.rel (0) target = $region5
  $region4: #{forward.6} parent=0 // pred_region
    _
  $region5: #{forward.6} parent=0 // pred_fallthru
    _
  // Predicated region
  $region6: #{forward.6} parent=0 // pred_check
    _
  $region7: #{forward.6} parent=0 // pred_check_branch
    %11 = sbr.rel (0) target = $region9
  $region8: #{forward.6} parent=0 // pred_region
    _
  $region9: #{forward.6} parent=0 // pred_fallthru
    _
  // Predicated region
  $region10: #{forward.6} parent=0 // pred_check
    _
  $region11: #{forward.6} parent=0 // pred_check_branch
    %13 = sbr.rel (0) target = $region13
  $region12: #{forward.6} parent=0 // pred_region
    _
  $region13: #{forward.6} parent=0 // pred_fallthru
    _
  %v15 = vld [vmem:[%s0] sm:$0xf]
  %v16 = vld [vmem:[%s0 + $0x4] sm:$0xf]
  %v17 = vld [vmem:[%s0 + $0x8] sm:$0xf]
  %v18 = vld [vmem:[%s0 + $0xc] sm:$0xf]
  %v19 = vld [vmem:[%s0 + $0x10] sm:$0xf]
  %v20 = vld [vmem:[%s0 + $0x14] sm:$0xf]
  %v21 = vld [vmem:[%s0 + $0x18] sm:$0xf]
  %v22 = vld [vmem:[%s0 + $0x1c] sm:$0xf]
  %v23 = vld [vmem:[%s0 + $0x20] sm:$0xf]
  %v24 = vld [vmem:[%s0 + $0x24] sm:$0xf]
  %v25 = vld [vmem:[%s0 + $0x28] sm:$0xf]
  %v26 = vld [vmem:[%s0 + $0x2c] sm:$0xf]
  %v27 = vld [vmem:[%s0 + $0x30] sm:$0xf]
  %v28 = vld [vmem:[%s0 + $0x34] sm:$0xf]
  %v29 = vld [vmem:[%s0 + $0x38] sm:$0xf]
  %v30 = vld [vmem:[%s0 + $0x3c] sm:$0xf]
  %v31 = vld [vmem:[%s0 + $0x40] sm:$0xf]
  %v32 = vld [vmem:[%s0 + $0x44] sm:$0xf]
  %v33 = vld [vmem:[%s0 + $0x48] sm:$0xf]
  %v34 = vld [vmem:[%s0 + $0x4c] sm:$0xf]
  %v35 = vld [vmem:[%s0 + $0x50] sm:$0xf]
  %v36 = vld [vmem:[%s0 + $0x54] sm:$0xf]
  %v37 = vld [vmem:[%s0 + $0x58] sm:$0xf]
  %v38 = vld [vmem:[%s0 + $0x5c] sm:$0xf]
  %v39 = vld [vmem:[%s0 + $0x60] sm:$0xf]
  %v40 = vld [vmem:[%s0 + $0x64] sm:$0xf]
  %v41 = vld [vmem:[%s0 + $0x68] sm:$0xf]
  %v42 = vld [vmem:[%s0 + $0x6c] sm:$0xf]
  %v43 = vld [vmem:[%s0 + $0x70] sm:$0xf]
  %v44 = vld [vmem:[%s0 + $0x74] sm:$0xf]
  %v45 = vld [vmem:[%s0 + $0x78] sm:$0xf]
  %v46 = vld [vmem:[%s0 + $0x7c] sm:$0xf]
  %v47 = vld [vmem:[%s0 + $0x80] sm:$0xf]
  %v48 = vld [vmem:[%s0 + $0x84] sm:$0xf]
  %v49 = vld [vmem:[%s0 + $0x88] sm:$0xf]
  %v50 = vld [vmem:[%s0 + $0x8c] sm:$0xf]
  %v51 = vld [vmem:[%s0 + $0x90] sm:$0xf]
  %v52 = vld [vmem:[%s0 + $0x94] sm:$0xf]
  %v53 = vld [vmem:[%s0 + $0x98] sm:$0xf]
  %v54 = vld [vmem:[%s0 + $0x9c] sm:$0xf]
  %v55 = vld [vmem:[%s0 + $0xa0] sm:$0xf]
  %v56 = vld [vmem:[%s0 + $0xa4] sm:$0xf]
  %v57 = vld [vmem:[%s0 + $0xa8] sm:$0xf]
  %v58 = vld [vmem:[%s0 + $0xac] sm:$0xf]
  %v59 = vld [vmem:[%s0 + $0xb0] sm:$0xf]
  %v60 = vld [vmem:[%s0 + $0xb4] sm:$0xf]
  %v61 = vld [vmem:[%s0 + $0xb8] sm:$0xf]
  %v62 = vld [vmem:[%s0 + $0xbc] sm:$0xf]
  %v63 = vld [vmem:[%s0 + $0xc0] sm:$0xf]
  %v64 = vld [vmem:[%s0 + $0xc4] sm:$0xf]
  %v65 = vld [vmem:[%s0 + $0xc8] sm:$0xf]
  %v66 = vld [vmem:[%s0 + $0xcc] sm:$0xf]
  %v67 = vld [vmem:[%s0 + $0xd0] sm:$0xf]
  %v68 = vld [vmem:[%s0 + $0xd4] sm:$0xf]
  %v69 = vld [vmem:[%s0 + $0xd8] sm:$0xf]
  %v70 = vld [vmem:[%s0 + $0xdc] sm:$0xf]
  %v71 = vld [vmem:[%s0 + $0xe0] sm:$0xf]
  %v72 = vld [vmem:[%s0 + $0xe4] sm:$0xf]
  %v73 = vld [vmem:[%s0 + $0xe8] sm:$0xf]
  %v74 = vld [vmem:[%s0 + $0xec] sm:$0xf]
  %v75 = vld [vmem:[%s0 + $0xf0] sm:$0xf]
  %v76 = vld [vmem:[%s0 + $0xf4] sm:$0xf]
  %v77 = vld [vmem:[%s0 + $0xf8] sm:$0xf]
  %v78 = vld [vmem:[%s0 + $0xfc] sm:$0xf]
  %v79 = vld [vmem:[%s1] sm:$0xf]
  %v80 = vld [vmem:[%s1 + $0x4] sm:$0xf]
  %v81 = vld [vmem:[%s1 + $0x8] sm:$0xf]
  %v82 = vld [vmem:[%s1 + $0xc] sm:$0xf]
  %v83 = vld [vmem:[%s1 + $0x10] sm:$0xf]
  %v84 = vld [vmem:[%s1 + $0x14] sm:$0xf]
  %v85 = vld [vmem:[%s1 + $0x18] sm:$0xf]
  %v86 = vld [vmem:[%s1 + $0x1c] sm:$0xf]
  %v87 = vld [vmem:[%s1 + $0x20] sm:$0xf]
  %v88 = vld [vmem:[%s2] sm:$0x1]
  %v90 = vlaneseq
  %v91 = vshrl.u32 %v90, 7
  %v92 = vsub.s32 0, %v91
  %v93 = vrot.slane %v88, %v92
  %v159 = vunpack.c.l.b16 %v15
  %v160 = vunpack.c.l.b16 %v16
  %v161 = vunpack.c.l.b16 %v17
  %v162 = vunpack.c.l.b16 %v18
  %v163 = vunpack.c.l.b16 %v19
  %v164 = vunpack.c.l.b16 %v20
  %v165 = vunpack.c.l.b16 %v21
  %v166 = vunpack.c.l.b16 %v22
  %v167 = vunpack.c.l.b16 %v23
  %v168 = vunpack.c.l.b16 %v24
  %v169 = vunpack.c.l.b16 %v25
  %v170 = vunpack.c.l.b16 %v26
  %v171 = vunpack.c.l.b16 %v27
  %v172 = vunpack.c.l.b16 %v28
  %v173 = vunpack.c.l.b16 %v29
  %v174 = vunpack.c.l.b16 %v30
  %v175 = vunpack.c.l.b16 %v31
  %v176 = vunpack.c.l.b16 %v32
  %v177 = vunpack.c.l.b16 %v33
  %v178 = vunpack.c.l.b16 %v34
  %v179 = vunpack.c.l.b16 %v35
  %v180 = vunpack.c.l.b16 %v36
  %v181 = vunpack.c.l.b16 %v37
  %v182 = vunpack.c.l.b16 %v38
  %v183 = vunpack.c.l.b16 %v39
  %v184 = vunpack.c.l.b16 %v40
  %v185 = vunpack.c.l.b16 %v41
  %v186 = vunpack.c.l.b16 %v42
  %v187 = vunpack.c.l.b16 %v43
  %v188 = vunpack.c.l.b16 %v44
  %v189 = vunpack.c.l.b16 %v45
  %v190 = vunpack.c.l.b16 %v46
  %v191 = vunpack.c.l.b16 %v47
  %v192 = vunpack.c.l.b16 %v48
  %v193 = vunpack.c.l.b16 %v49
  %v194 = vunpack.c.l.b16 %v50
  %v195 = vunpack.c.l.b16 %v51
  %v196 = vunpack.c.l.b16 %v52
  %v197 = vunpack.c.l.b16 %v53
  %v198 = vunpack.c.l.b16 %v54
  %v199 = vunpack.c.l.b16 %v55
  %v200 = vunpack.c.l.b16 %v56
  %v201 = vunpack.c.l.b16 %v57
  %v202 = vunpack.c.l.b16 %v58
  %v203 = vunpack.c.l.b16 %v59
  %v204 = vunpack.c.l.b16 %v60
  %v205 = vunpack.c.l.b16 %v61
  %v206 = vunpack.c.l.b16 %v62
  %v207 = vunpack.c.l.b16 %v63
  %v208 = vunpack.c.l.b16 %v64
  %v209 = vunpack.c.l.b16 %v65
  %v210 = vunpack.c.l.b16 %v66
  %v211 = vunpack.c.l.b16 %v67
  %v212 = vunpack.c.l.b16 %v68
  %v213 = vunpack.c.l.b16 %v69
  %v214 = vunpack.c.l.b16 %v70
  %v215 = vunpack.c.l.b16 %v71
  %v216 = vunpack.c.l.b16 %v72
  %v217 = vunpack.c.l.b16 %v73
  %v218 = vunpack.c.l.b16 %v74
  %v219 = vunpack.c.l.b16 %v75
  %v220 = vunpack.c.l.b16 %v76
  %v221 = vunpack.c.l.b16 %v77
  %v222 = vunpack.c.l.b16 %v78
  %v223 = vpack.c.b16 %v160, %v159
  %v224 = vpack.c.b16 %v162, %v161
  %v225 = vpack.c.b16 %v164, %v163
  %v226 = vpack.c.b16 %v166, %v165
  %v227 = vpack.c.b16 %v168, %v167
  %v228 = vpack.c.b16 %v170, %v169
  %v229 = vpack.c.b16 %v172, %v171
  %v230 = vpack.c.b16 %v174, %v173
  %v231 = vpack.c.b16 %v176, %v175
  %v232 = vpack.c.b16 %v178, %v177
  %v233 = vpack.c.b16 %v180, %v179
  %v234 = vpack.c.b16 %v182, %v181
  %v235 = vpack.c.b16 %v184, %v183
  %v236 = vpack.c.b16 %v186, %v185
  %v237 = vpack.c.b16 %v188, %v187
  %v238 = vpack.c.b16 %v190, %v189
  %v239 = vpack.c.b16 %v192, %v191
  %v240 = vpack.c.b16 %v194, %v193
  %v241 = vpack.c.b16 %v196, %v195
  %v242 = vpack.c.b16 %v198, %v197
  %v243 = vpack.c.b16 %v200, %v199
  %v244 = vpack.c.b16 %v202, %v201
  %v245 = vpack.c.b16 %v204, %v203
  %v246 = vpack.c.b16 %v206, %v205
  %v247 = vpack.c.b16 %v208, %v207
  %v248 = vpack.c.b16 %v210, %v209
  %v249 = vpack.c.b16 %v212, %v211
  %v250 = vpack.c.b16 %v214, %v213
  %v251 = vpack.c.b16 %v216, %v215
  %v252 = vpack.c.b16 %v218, %v217
  %v253 = vpack.c.b16 %v220, %v219
  %v254 = vpack.c.b16 %v222, %v221
  %v264 = vunpack.c.l.b16 %v79
  %v265 = vunpack.c.l.b16 %v80
  %v266 = vunpack.c.l.b16 %v81
  %v267 = vunpack.c.l.b16 %v82
  %v268 = vunpack.c.l.b16 %v83
  %v269 = vunpack.c.l.b16 %v84
  %v270 = vunpack.c.l.b16 %v85
  %v271 = vunpack.c.l.b16 %v86
  %v272 = vunpack.c.l.b16 %v87
  %v273 = vpack.c.b16 %v265, %v264
  %v274 = vpack.c.b16 %v267, %v266
  %v275 = vpack.c.b16 %v269, %v268
  %v276 = vpack.c.b16 %v271, %v270
  %v277 = vpack.c.b16 %v272, %v272
  %vm282 = vcmask 588800
  %v284 = vsel %vm282, %v223, 0
  %v287 = vsel %vm282, %v224, 0
  %v290 = vsel %vm282, %v225, 0
  %v293 = vsel %vm282, %v226, 0
  %v296 = vsel %vm282, %v227, 0
  %v299 = vsel %vm282, %v228, 0
  %v302 = vsel %vm282, %v229, 0
  %v305 = vsel %vm282, %v230, 0
  %v308 = vsel %vm282, %v231, 0
  %v311 = vsel %vm282, %v232, 0
  %v314 = vsel %vm282, %v233, 0
  %v317 = vsel %vm282, %v234, 0
  %v320 = vsel %vm282, %v235, 0
  %v323 = vsel %vm282, %v236, 0
  %v326 = vsel %vm282, %v237, 0
  %v329 = vsel %vm282, %v238, 0
  %v332 = vsel %vm282, %v239, 0
  %v335 = vsel %vm282, %v240, 0
  %v338 = vsel %vm282, %v241, 0
  %v341 = vsel %vm282, %v242, 0
  %v344 = vsel %vm282, %v243, 0
  %v347 = vsel %vm282, %v244, 0
  %v350 = vsel %vm282, %v245, 0
  %v353 = vsel %vm282, %v246, 0
  %v356 = vsel %vm282, %v247, 0
  %v359 = vsel %vm282, %v248, 0
  %v362 = vsel %vm282, %v249, 0
  %v365 = vsel %vm282, %v250, 0
  %v368 = vsel %vm282, %v251, 0
  %v371 = vsel %vm282, %v252, 0
  %v374 = vsel %vm282, %v253, 0
  %v377 = vsel %vm282, %v254, 0
  %vm379 = vcmask 1043456
  %v381 = vsel %vm379, %v277, 0
  %383 = vmatprep.subr.bf16.mxu0 0
  %384 = vmatpush1.bf16.msra.mxu0 %v273
  %385 = vmatprep.subr.bf16.mxu0 0
  %386 = vmatpush1.bf16.msra.mxu0 %v274
  %387 = vmatprep.subr.bf16.mxu0 0
  %388 = vmatpush1.bf16.msra.mxu0 %v275
  %389 = vmatprep.subr.bf16.mxu0 0
  %390 = vmatpush1.bf16.msra.mxu0 %v276
  %391 = vmatprep.subr.bf16.mxu0 0
  %392 = vmatpush1.bf16.msra.mxu0 %v381
  %393 = vmatprep.subr.bf16.mxu0 0
  %394 = vmatpush1.bf16.msra.mxu0 0
  %395 = vmatprep.subr.bf16.mxu0 0
  %396 = vmatpush1.bf16.msra.mxu0 0
  %397 = vmatprep.subr.bf16.mxu0 0
  %398 = vmatpush1.bf16.msra.mxu0 0
  %399 = vmatprep.subr.bf16.mxu0 0
  %400 = vmatpush1.bf16.msra.mxu0 0
  %401 = vmatprep.subr.bf16.mxu0 0
  %402 = vmatpush1.bf16.msra.mxu0 0
  %403 = vmatprep.subr.bf16.mxu0 0
  %404 = vmatpush1.bf16.msra.mxu0 0
  %405 = vmatprep.subr.bf16.mxu0 0
  %406 = vmatpush1.bf16.msra.mxu0 0
  %407 = vmatprep.subr.bf16.mxu0 0
  %408 = vmatpush1.bf16.msra.mxu0 0
  %409 = vmatprep.subr.bf16.mxu0 0
  %410 = vmatpush1.bf16.msra.mxu0 0
  %411 = vmatprep.subr.bf16.mxu0 0
  %412 = vmatpush1.bf16.msra.mxu0 0
  %413 = vmatprep.subr.bf16.mxu0 0
  %414 = vmatpush1.bf16.msra.mxu0 0
  %415 = vmatprep.mubr.bf16.mxu0 0
  %416 = vmatmul.mubr.bf16.gmra.mrb[0].mxu0 %v284
  %v417 = vpop.f32.mrb[0].mxu0
  %v418 = vadd.f32 %v93, %v417
  %v419 = vpop.f32.mrb[0].mxu0
  %v420 = vpop.f32.mrb[0].mxu0
  %v421 = vadd.f32 %v93, %v420
  %v422 = vpop.f32.mrb[0].mxu0
  %423 = vmatprep.mubr.bf16.mxu0 0
  %424 = vmatmul.mubr.bf16.gmra.mrb[0].mxu0 %v287
  %v425 = vpop.f32.mrb[0].mxu0
  %v426 = vadd.f32 %v93, %v425
  %v427 = vpop.f32.mrb[0].mxu0
  %v428 = vpop.f32.mrb[0].mxu0
  %v429 = vadd.f32 %v93, %v428
  %v430 = vpop.f32.mrb[0].mxu0
  %431 = vmatprep.mubr.bf16.mxu0 0
  %432 = vmatmul.mubr.bf16.gmra.mrb[0].mxu0 %v290
  %v433 = vpop.f32.mrb[0].mxu0
  %v434 = vadd.f32 %v93, %v433
  %v435 = vpop.f32.mrb[0].mxu0
  %v436 = vpop.f32.mrb[0].mxu0
  %v437 = vadd.f32 %v93, %v436
  %v438 = vpop.f32.mrb[0].mxu0
  %439 = vmatprep.mubr.bf16.mxu0 0
  %440 = vmatmul.mubr.bf16.gmra.mrb[0].mxu0 %v293
  %v441 = vpop.f32.mrb[0].mxu0
  %v442 = vadd.f32 %v93, %v441
  %v443 = vpop.f32.mrb[0].mxu0
  %v444 = vpop.f32.mrb[0].mxu0
  %v445 = vadd.f32 %v93, %v444
  %v446 = vpop.f32.mrb[0].mxu0
  %447 = vmatprep.mubr.bf16.mxu0 0
  %448 = vmatmul.mubr.bf16.gmra.mrb[0].mxu0 %v296
  %v449 = vpop.f32.mrb[0].mxu0
  %v450 = vadd.f32 %v93, %v449
  %v451 = vpop.f32.mrb[0].mxu0
  %v452 = vpop.f32.mrb[0].mxu0
  %v453 = vadd.f32 %v93, %v452
  %v454 = vpop.f32.mrb[0].mxu0
  %455 = vmatprep.mubr.bf16.mxu0 0
  %456 = vmatmul.mubr.bf16.gmra.mrb[0].mxu0 %v299
  %v457 = vpop.f32.mrb[0].mxu0
  %v458 = vadd.f32 %v93, %v457
  %v459 = vpop.f32.mrb[0].mxu0
  %v460 = vpop.f32.mrb[0].mxu0
  %v461 = vadd.f32 %v93, %v460
  %v462 = vpop.f32.mrb[0].mxu0
  %463 = vmatprep.mubr.bf16.mxu0 0
  %464 = vmatmul.mubr.bf16.gmra.mrb[0].mxu0 %v302
  %v465 = vpop.f32.mrb[0].mxu0
  %v466 = vadd.f32 %v93, %v465
  %v467 = vpop.f32.mrb[0].mxu0
  %v468 = vpop.f32.mrb[0].mxu0
  %v469 = vadd.f32 %v93, %v468
  %v470 = vpop.f32.mrb[0].mxu0
  %471 = vmatprep.mubr.bf16.mxu0 0
  %472 = vmatmul.mubr.bf16.gmra.mrb[0].mxu0 %v305
  %v473 = vpop.f32.mrb[0].mxu0
  %v474 = vadd.f32 %v93, %v473
  %v475 = vpop.f32.mrb[0].mxu0
  %v476 = vpop.f32.mrb[0].mxu0
  %v477 = vadd.f32 %v93, %v476
  %v478 = vpop.f32.mrb[0].mxu0
  %479 = vmatprep.mubr.bf16.mxu0 0
  %480 = vmatmul.mubr.bf16.gmra.mrb[0].mxu0 %v308
  %v481 = vpop.f32.mrb[0].mxu0
  %v482 = vadd.f32 %v93, %v481
  %v483 = vpop.f32.mrb[0].mxu0
  %v484 = vpop.f32.mrb[0].mxu0
  %v485 = vadd.f32 %v93, %v484
  %v486 = vpop.f32.mrb[0].mxu0
  %487 = vmatprep.mubr.bf16.mxu0 0
  %488 = vmatmul.mubr.bf16.gmra.mrb[0].mxu0 %v311
  %v489 = vpop.f32.mrb[0].mxu0
  %v490 = vadd.f32 %v93, %v489
  %v491 = vpop.f32.mrb[0].mxu0
  %v492 = vpop.f32.mrb[0].mxu0
  %v493 = vadd.f32 %v93, %v492
  %v494 = vpop.f32.mrb[0].mxu0
  %495 = vmatprep.mubr.bf16.mxu0 0
  %496 = vmatmul.mubr.bf16.gmra.mrb[0].mxu0 %v314
  %v497 = vpop.f32.mrb[0].mxu0
  %v498 = vadd.f32 %v93, %v497
  %v499 = vpop.f32.mrb[0].mxu0
  %v500 = vpop.f32.mrb[0].mxu0
  %v501 = vadd.f32 %v93, %v500
  %v502 = vpop.f32.mrb[0].mxu0
  %503 = vmatprep.mubr.bf16.mxu0 0
  %504 = vmatmul.mubr.bf16.gmra.mrb[0].mxu0 %v317
  %v505 = vpop.f32.mrb[0].mxu0
  %v506 = vadd.f32 %v93, %v505
  %v507 = vpop.f32.mrb[0].mxu0
  %v508 = vpop.f32.mrb[0].mxu0
  %v509 = vadd.f32 %v93, %v508
  %v510 = vpop.f32.mrb[0].mxu0
  %511 = vmatprep.mubr.bf16.mxu0 0
  %512 = vmatmul.mubr.bf16.gmra.mrb[0].mxu0 %v320
  %v513 = vpop.f32.mrb[0].mxu0
  %v514 = vadd.f32 %v93, %v513
  %v515 = vpop.f32.mrb[0].mxu0
  %v516 = vpop.f32.mrb[0].mxu0
  %v517 = vadd.f32 %v93, %v516
  %v518 = vpop.f32.mrb[0].mxu0
  %519 = vmatprep.mubr.bf16.mxu0 0
  %520 = vmatmul.mubr.bf16.gmra.mrb[0].mxu0 %v323
  %v521 = vpop.f32.mrb[0].mxu0
  %v522 = vadd.f32 %v93, %v521
  %v523 = vpop.f32.mrb[0].mxu0
  %v524 = vpop.f32.mrb[0].mxu0
  %v525 = vadd.f32 %v93, %v524
  %v526 = vpop.f32.mrb[0].mxu0
  %527 = vmatprep.mubr.bf16.mxu0 0
  %528 = vmatmul.mubr.bf16.gmra.mrb[0].mxu0 %v326
  %v529 = vpop.f32.mrb[0].mxu0
  %v530 = vadd.f32 %v93, %v529
  %v531 = vpop.f32.mrb[0].mxu0
  %v532 = vpop.f32.mrb[0].mxu0
  %v533 = vadd.f32 %v93, %v532
  %v534 = vpop.f32.mrb[0].mxu0
  %535 = vmatprep.mubr.bf16.mxu0 0
  %536 = vmatmul.mubr.bf16.gmra.mrb[0].mxu0 %v329
  %v537 = vpop.f32.mrb[0].mxu0
  %v538 = vadd.f32 %v93, %v537
  %v539 = vpop.f32.mrb[0].mxu0
  %v540 = vpop.f32.mrb[0].mxu0
  %v541 = vadd.f32 %v93, %v540
  %v542 = vpop.f32.mrb[0].mxu0
  %543 = vmatprep.mubr.bf16.mxu0 0
  %544 = vmatmul.mubr.bf16.gmra.mrb[0].mxu0 %v332
  %v545 = vpop.f32.mrb[0].mxu0
  %v546 = vadd.f32 %v93, %v545
  %v547 = vpop.f32.mrb[0].mxu0
  %v548 = vpop.f32.mrb[0].mxu0
  %v549 = vadd.f32 %v93, %v548
  %v550 = vpop.f32.mrb[0].mxu0
  %551 = vmatprep.mubr.bf16.mxu0 0
  %552 = vmatmul.mubr.bf16.gmra.mrb[0].mxu0 %v335
  %v553 = vpop.f32.mrb[0].mxu0
  %v554 = vadd.f32 %v93, %v553
  %v555 = vpop.f32.mrb[0].mxu0
  %v556 = vpop.f32.mrb[0].mxu0
  %v557 = vadd.f32 %v93, %v556
  %v558 = vpop.f32.mrb[0].mxu0
  %559 = vmatprep.mubr.bf16.mxu0 0
  %560 = vmatmul.mubr.bf16.gmra.mrb[0].mxu0 %v338
  %v561 = vpop.f32.mrb[0].mxu0
  %v562 = vadd.f32 %v93, %v561
  %v563 = vpop.f32.mrb[0].mxu0
  %v564 = vpop.f32.mrb[0].mxu0
  %v565 = vadd.f32 %v93, %v564
  %v566 = vpop.f32.mrb[0].mxu0
  %567 = vmatprep.mubr.bf16.mxu0 0
  %568 = vmatmul.mubr.bf16.gmra.mrb[0].mxu0 %v341
  %v569 = vpop.f32.mrb[0].mxu0
  %v570 = vadd.f32 %v93, %v569
  %v571 = vpop.f32.mrb[0].mxu0
  %v572 = vpop.f32.mrb[0].mxu0
  %v573 = vadd.f32 %v93, %v572
  %v574 = vpop.f32.mrb[0].mxu0
  %575 = vmatprep.mubr.bf16.mxu0 0
  %576 = vmatmul.mubr.bf16.gmra.mrb[0].mxu0 %v344
  %v577 = vpop.f32.mrb[0].mxu0
  %v578 = vadd.f32 %v93, %v577
  %v579 = vpop.f32.mrb[0].mxu0
  %v580 = vpop.f32.mrb[0].mxu0
  %v581 = vadd.f32 %v93, %v580
  %v582 = vpop.f32.mrb[0].mxu0
  %583 = vmatprep.mubr.bf16.mxu0 0
  %584 = vmatmul.mubr.bf16.gmra.mrb[0].mxu0 %v347
  %v585 = vpop.f32.mrb[0].mxu0
  %v586 = vadd.f32 %v93, %v585
  %v587 = vpop.f32.mrb[0].mxu0
  %v588 = vpop.f32.mrb[0].mxu0
  %v589 = vadd.f32 %v93, %v588
  %v590 = vpop.f32.mrb[0].mxu0
  %591 = vmatprep.mubr.bf16.mxu0 0
  %592 = vmatmul.mubr.bf16.gmra.mrb[0].mxu0 %v350
  %v593 = vpop.f32.mrb[0].mxu0
  %v594 = vadd.f32 %v93, %v593
  %v595 = vpop.f32.mrb[0].mxu0
  %v596 = vpop.f32.mrb[0].mxu0
  %v597 = vadd.f32 %v93, %v596
  %v598 = vpop.f32.mrb[0].mxu0
  %599 = vmatprep.mubr.bf16.mxu0 0
  %600 = vmatmul.mubr.bf16.gmra.mrb[0].mxu0 %v353
  %v601 = vpop.f32.mrb[0].mxu0
  %v602 = vadd.f32 %v93, %v601
  %v603 = vpop.f32.mrb[0].mxu0
  %v604 = vpop.f32.mrb[0].mxu0
  %v605 = vadd.f32 %v93, %v604
  %v606 = vpop.f32.mrb[0].mxu0
  %607 = vmatprep.mubr.bf16.mxu0 0
  %608 = vmatmul.mubr.bf16.gmra.mrb[0].mxu0 %v356
  %v609 = vpop.f32.mrb[0].mxu0
  %v610 = vadd.f32 %v93, %v609
  %v611 = vpop.f32.mrb[0].mxu0
  %v612 = vpop.f32.mrb[0].mxu0
  %v613 = vadd.f32 %v93, %v612
  %v614 = vpop.f32.mrb[0].mxu0
  %615 = vmatprep.mubr.bf16.mxu0 0
  %616 = vmatmul.mubr.bf16.gmra.mrb[0].mxu0 %v359
  %v617 = vpop.f32.mrb[0].mxu0
  %v618 = vadd.f32 %v93, %v617
  %v619 = vpop.f32.mrb[0].mxu0
  %v620 = vpop.f32.mrb[0].mxu0
  %v621 = vadd.f32 %v93, %v620
  %v622 = vpop.f32.mrb[0].mxu0
  %623 = vmatprep.mubr.bf16.mxu0 0
  %624 = vmatmul.mubr.bf16.gmra.mrb[0].mxu0 %v362
  %v625 = vpop.f32.mrb[0].mxu0
  %v626 = vadd.f32 %v93, %v625
  %v627 = vpop.f32.mrb[0].mxu0
  %v628 = vpop.f32.mrb[0].mxu0
  %v629 = vadd.f32 %v93, %v628
  %v630 = vpop.f32.mrb[0].mxu0
  %631 = vmatprep.mubr.bf16.mxu0 0
  %632 = vmatmul.mubr.bf16.gmra.mrb[0].mxu0 %v365
  %v633 = vpop.f32.mrb[0].mxu0
  %v634 = vadd.f32 %v93, %v633
  %v635 = vpop.f32.mrb[0].mxu0
  %v636 = vpop.f32.mrb[0].mxu0
  %v637 = vadd.f32 %v93, %v636
  %v638 = vpop.f32.mrb[0].mxu0
  %639 = vmatprep.mubr.bf16.mxu0 0
  %640 = vmatmul.mubr.bf16.gmra.mrb[0].mxu0 %v368
  %v641 = vpop.f32.mrb[0].mxu0
  %v642 = vadd.f32 %v93, %v641
  %v643 = vpop.f32.mrb[0].mxu0
  %v644 = vpop.f32.mrb[0].mxu0
  %v645 = vadd.f32 %v93, %v644
  %v646 = vpop.f32.mrb[0].mxu0
  %647 = vmatprep.mubr.bf16.mxu0 0
  %648 = vmatmul.mubr.bf16.gmra.mrb[0].mxu0 %v371
  %v649 = vpop.f32.mrb[0].mxu0
  %v650 = vadd.f32 %v93, %v649
  %v651 = vpop.f32.mrb[0].mxu0
  %v652 = vpop.f32.mrb[0].mxu0
  %v653 = vadd.f32 %v93, %v652
  %v654 = vpop.f32.mrb[0].mxu0
  %655 = vmatprep.mubr.bf16.mxu0 0
  %656 = vmatmul.mubr.bf16.gmra.mrb[0].mxu0 %v374
  %v657 = vpop.f32.mrb[0].mxu0
  %v658 = vadd.f32 %v93, %v657
  %v659 = vpop.f32.mrb[0].mxu0
  %v660 = vpop.f32.mrb[0].mxu0
  %v661 = vadd.f32 %v93, %v660
  %v662 = vpop.f32.mrb[0].mxu0
  %663 = vmatprep.mubr.bf16.mxu0 0
  %664 = vmatmul.mubr.bf16.gmra.mrb[0].mxu0 %v377
  %v665 = vpop.f32.mrb[0].mxu0
  %v666 = vadd.f32 %v93, %v665
  %v667 = vpop.f32.mrb[0].mxu0
  %v668 = vpop.f32.mrb[0].mxu0
  %v669 = vadd.f32 %v93, %v668
  %v670 = vpop.f32.mrb[0].mxu0
  %671 = vdwg.mxu0
  %v672 = vmax.f32 %v418, 0.0
  %v673 = vmax.f32 %v421, 0.0
  %v674 = vmax.f32 %v426, 0.0
  %v675 = vmax.f32 %v429, 0.0
  %v676 = vmax.f32 %v434, 0.0
  %v677 = vmax.f32 %v437, 0.0
  %v678 = vmax.f32 %v442, 0.0
  %v679 = vmax.f32 %v445, 0.0
  %v680 = vmax.f32 %v450, 0.0
  %v681 = vmax.f32 %v453, 0.0
  %v682 = vmax.f32 %v458, 0.0
  %v683 = vmax.f32 %v461, 0.0
  %v684 = vmax.f32 %v466, 0.0
  %v685 = vmax.f32 %v469, 0.0
  %v686 = vmax.f32 %v474, 0.0
  %v687 = vmax.f32 %v477, 0.0
  %v688 = vmax.f32 %v482, 0.0
  %v689 = vmax.f32 %v485, 0.0
  %v690 = vmax.f32 %v490, 0.0
  %v691 = vmax.f32 %v493, 0.0
  %v692 = vmax.f32 %v498, 0.0
  %v693 = vmax.f32 %v501, 0.0
  %v694 = vmax.f32 %v506, 0.0
  %v695 = vmax.f32 %v509, 0.0
  %v696 = vmax.f32 %v514, 0.0
  %v697 = vmax.f32 %v517, 0.0
  %v698 = vmax.f32 %v522, 0.0
  %v699 = vmax.f32 %v525, 0.0
  %v700 = vmax.f32 %v530, 0.0
  %v701 = vmax.f32 %v533, 0.0
  %v702 = vmax.f32 %v538, 0.0
  %v703 = vmax.f32 %v541, 0.0
  %v704 = vmax.f32 %v546, 0.0
  %v705 = vmax.f32 %v549, 0.0
  %v706 = vmax.f32 %v554, 0.0
  %v707 = vmax.f32 %v557, 0.0
  %v708 = vmax.f32 %v562, 0.0
  %v709 = vmax.f32 %v565, 0.0
  %v710 = vmax.f32 %v570, 0.0
  %v711 = vmax.f32 %v573, 0.0
  %v712 = vmax.f32 %v578, 0.0
  %v713 = vmax.f32 %v581, 0.0
  %v714 = vmax.f32 %v586, 0.0
  %v715 = vmax.f32 %v589, 0.0
  %v716 = vmax.f32 %v594, 0.0
  %v717 = vmax.f32 %v597, 0.0
  %v718 = vmax.f32 %v602, 0.0
  %v719 = vmax.f32 %v605, 0.0
  %v720 = vmax.f32 %v610, 0.0
  %v721 = vmax.f32 %v613, 0.0
  %v722 = vmax.f32 %v618, 0.0
  %v723 = vmax.f32 %v621, 0.0
  %v724 = vmax.f32 %v626, 0.0
  %v725 = vmax.f32 %v629, 0.0
  %v726 = vmax.f32 %v634, 0.0
  %v727 = vmax.f32 %v637, 0.0
  %v728 = vmax.f32 %v642, 0.0
  %v729 = vmax.f32 %v645, 0.0
  %v730 = vmax.f32 %v650, 0.0
  %v731 = vmax.f32 %v653, 0.0
  %v732 = vmax.f32 %v658, 0.0
  %v733 = vmax.f32 %v661, 0.0
  %v734 = vmax.f32 %v666, 0.0
  %v735 = vmax.f32 %v669, 0.0
  %vm736 = vcmask 130048
  %737 = vst.msk [vmem:[%s3] sm:$0xff] %vm736, %v672
  %738 = vst.msk [vmem:[%s3 + $0x8] sm:$0xff] %vm736, %v673
  %739 = vst.msk [vmem:[%s3 + $0x10] sm:$0xff] %vm736, %v674
  %740 = vst.msk [vmem:[%s3 + $0x18] sm:$0xff] %vm736, %v675
  %741 = vst.msk [vmem:[%s3 + $0x20] sm:$0xff] %vm736, %v676
  %742 = vst.msk [vmem:[%s3 + $0x28] sm:$0xff] %vm736, %v677
  %743 = vst.msk [vmem:[%s3 + $0x30] sm:$0xff] %vm736, %v678
  %744 = vst.msk [vmem:[%s3 + $0x38] sm:$0xff] %vm736, %v679
  %745 = vst.msk [vmem:[%s3 + $0x40] sm:$0xff] %vm736, %v680
  %746 = vst.msk [vmem:[%s3 + $0x48] sm:$0xff] %vm736, %v681
  %747 = vst.msk [vmem:[%s3 + $0x50] sm:$0xff] %vm736, %v682
  %748 = vst.msk [vmem:[%s3 + $0x58] sm:$0xff] %vm736, %v683
  %749 = vst.msk [vmem:[%s3 + $0x60] sm:$0xff] %vm736, %v684
  %750 = vst.msk [vmem:[%s3 + $0x68] sm:$0xff] %vm736, %v685
  %751 = vst.msk [vmem:[%s3 + $0x70] sm:$0xff] %vm736, %v686
  %752 = vst.msk [vmem:[%s3 + $0x78] sm:$0xff] %vm736, %v687
  %753 = vst.msk [vmem:[%s3 + $0x80] sm:$0xff] %vm736, %v688
  %754 = vst.msk [vmem:[%s3 + $0x88] sm:$0xff] %vm736, %v689
  %755 = vst.msk [vmem:[%s3 + $0x90] sm:$0xff] %vm736, %v690
  %756 = vst.msk [vmem:[%s3 + $0x98] sm:$0xff] %vm736, %v691
  %757 = vst.msk [vmem:[%s3 + $0xa0] sm:$0xff] %vm736, %v692
  %758 = vst.msk [vmem:[%s3 + $0xa8] sm:$0xff] %vm736, %v693
  %759 = vst.msk [vmem:[%s3 + $0xb0] sm:$0xff] %vm736, %v694
  %760 = vst.msk [vmem:[%s3 + $0xb8] sm:$0xff] %vm736, %v695
  %761 = vst.msk [vmem:[%s3 + $0xc0] sm:$0xff] %vm736, %v696
  %762 = vst.msk [vmem:[%s3 + $0xc8] sm:$0xff] %vm736, %v697
  %763 = vst.msk [vmem:[%s3 + $0xd0] sm:$0xff] %vm736, %v698
  %764 = vst.msk [vmem:[%s3 + $0xd8] sm:$0xff] %vm736, %v699
  %765 = vst.msk [vmem:[%s3 + $0xe0] sm:$0xff] %vm736, %v700
  %766 = vst.msk [vmem:[%s3 + $0xe8] sm:$0xff] %vm736, %v701
  %767 = vst.msk [vmem:[%s3 + $0xf0] sm:$0xff] %vm736, %v702
  %768 = vst.msk [vmem:[%s3 + $0xf8] sm:$0xff] %vm736, %v703
  %769 = vst.msk [vmem:[%s3 + $0x100] sm:$0xff] %vm736, %v704
  %770 = vst.msk [vmem:[%s3 + $0x108] sm:$0xff] %vm736, %v705
  %771 = vst.msk [vmem:[%s3 + $0x110] sm:$0xff] %vm736, %v706
  %772 = vst.msk [vmem:[%s3 + $0x118] sm:$0xff] %vm736, %v707
  %773 = vst.msk [vmem:[%s3 + $0x120] sm:$0xff] %vm736, %v708
  %774 = vst.msk [vmem:[%s3 + $0x128] sm:$0xff] %vm736, %v709
  %775 = vst.msk [vmem:[%s3 + $0x130] sm:$0xff] %vm736, %v710
  %776 = vst.msk [vmem:[%s3 + $0x138] sm:$0xff] %vm736, %v711
  %777 = vst.msk [vmem:[%s3 + $0x140] sm:$0xff] %vm736, %v712
  %778 = vst.msk [vmem:[%s3 + $0x148] sm:$0xff] %vm736, %v713
  %779 = vst.msk [vmem:[%s3 + $0x150] sm:$0xff] %vm736, %v714
  %780 = vst.msk [vmem:[%s3 + $0x158] sm:$0xff] %vm736, %v715
  %781 = vst.msk [vmem:[%s3 + $0x160] sm:$0xff] %vm736, %v716
  %782 = vst.msk [vmem:[%s3 + $0x168] sm:$0xff] %vm736, %v717
  %783 = vst.msk [vmem:[%s3 + $0x170] sm:$0xff] %vm736, %v718
  %784 = vst.msk [vmem:[%s3 + $0x178] sm:$0xff] %vm736, %v719
  %785 = vst.msk [vmem:[%s3 + $0x180] sm:$0xff] %vm736, %v720
  %786 = vst.msk [vmem:[%s3 + $0x188] sm:$0xff] %vm736, %v721
  %787 = vst.msk [vmem:[%s3 + $0x190] sm:$0xff] %vm736, %v722
  %788 = vst.msk [vmem:[%s3 + $0x198] sm:$0xff] %vm736, %v723
  %789 = vst.msk [vmem:[%s3 + $0x1a0] sm:$0xff] %vm736, %v724
  %790 = vst.msk [vmem:[%s3 + $0x1a8] sm:$0xff] %vm736, %v725
  %791 = vst.msk [vmem:[%s3 + $0x1b0] sm:$0xff] %vm736, %v726
  %792 = vst.msk [vmem:[%s3 + $0x1b8] sm:$0xff] %vm736, %v727
  %793 = vst.msk [vmem:[%s3 + $0x1c0] sm:$0xff] %vm736, %v728
  %794 = vst.msk [vmem:[%s3 + $0x1c8] sm:$0xff] %vm736, %v729
  %795 = vst.msk [vmem:[%s3 + $0x1d0] sm:$0xff] %vm736, %v730
  %796 = vst.msk [vmem:[%s3 + $0x1d8] sm:$0xff] %vm736, %v731
  %797 = vst.msk [vmem:[%s3 + $0x1e0] sm:$0xff] %vm736, %v732
  %798 = vst.msk [vmem:[%s3 + $0x1e8] sm:$0xff] %vm736, %v733
  %799 = vst.msk [vmem:[%s3 + $0x1f0] sm:$0xff] %vm736, %v734
  %800 = vst.msk [vmem:[%s3 + $0x1f8] sm:$0xff] %vm736, %v735
  // Predicated region
  $region14: #{forward.6} parent=0 // pred_check
    _
  $region15: #{forward.6} parent=0 // pred_check_branch
    %802 = sbr.rel (0) target = $region17
  $region16: #{forward.6} parent=0 // pred_region
    _
  $region17: #{forward.6} parent=0 // pred_fallthru
    _
  // Predicated region
  $region18: #{forward.6} parent=0 // pred_check
    _
  $region19: #{forward.6} parent=0 // pred_check_branch
    %804 = sbr.rel (0) target = $region21
  $region20: #{forward.6} parent=0 // pred_region
    _
  $region21: #{forward.6} parent=0 // pred_fallthru
    _

// kernel: forward.9
$region0: #{forward.9}
  #allocation0 [shape = 'u32[]', space=smem, size = 0x4, offset = 0x4, fixed_abs, tag = 'smem constant byte address 0x4 - core index']
  #allocation1 [shape = 'u32[144,128]{1,0:T(1,128)}', space=vmem, size = 0x12000, scoped, tag = 'internal scratch']
  #allocation2 [shape = 'f32[1,1]{1,0:T(1,128)S(1)}', space=vmem, size = 0x200, scoped, tag = 'scoped memory for forward.9']
  %s0 = inlined_call_operand.vmem [shape: f32[4,24], index: 0, kind: input, shape index: {}]
  %s1 = inlined_call_operand.vmem [shape: f32[4,4], index: 1, kind: input, shape index: {}]
  %s2 = inlined_call_operand.vmem [shape: f32[4,24], index: 2, kind: input, shape index: {}]
  %s3 = inlined_call_operand.vmem [shape: f32[32,4], index: 3, kind: input, shape index: {}]
  %s4 = inlined_call_operand.vmem [shape: f32[4,24], index: 4, kind: input, shape index: {}]
  %s5 = inlined_call_operand.vmem [shape: f32[24,32], index: 5, kind: input, shape index: {}]
  %s6 = inlined_call_operand.vmem [shape: f32[4,32], index: 6, kind: input, shape index: {}]
  %s7 = inlined_call_operand.vmem [shape: f32[1,32], index: 7, kind: input, shape index: {}]
  %s8 = inlined_call_operand.vmem [shape: f32[1,32], index: 8, kind: input, shape index: {}]
  %s9 = inlined_call_operand.<no memory space> [shape: f32[1,1], index: 9, kind: input, shape index: {}]
  %s10 = inlined_call_operand.hbm [shape: f32[4,8], index: 10, kind: output, shape index: {}]
  %s11 = sld [smem:[#allocation0]]
  $region50: #{forward.9} parent=0
    _
  %s13 = ssub.s32 1, %s11
  %s14 = scalar_select 0, %s13, %s11
  %v15 = vstv %s9
  %16 = vst [vmem:[#allocation2] sm:$0x1] %v15
  $region1: #{forward.9} parent=0
    #allocation3 [shape = 'u8[2048]{0}', space=vmem, size = 0x800, scoped, tag = 'output window, operand 0, single buffered']
    #allocation4 [shape = 's32[1]{0}', space=sflag, size = 0x4, scoped, tag = 'scoped memory for forward.9']
    %17 = vsyncpa [#allocation4], 0
    // Predicated region
    $region2: #{forward.9} parent=1 // pred_check
      _
    $region3: #{forward.9} parent=1 // pred_check_branch
      %19 = sbr.rel (0) target = $region5
    $region4: #{forward.9} parent=1 // pred_region
      _
    $region5: #{forward.9} parent=1 // pred_fallthru
      _
    // Predicated region
    $region6: #{forward.9} parent=1 // pred_check
      _
    $region7: #{forward.9} parent=1 // pred_check_branch
      %21 = sbr.rel (0) target = $region9
    $region8: #{forward.9} parent=1 // pred_region
      _
    $region9: #{forward.9} parent=1 // pred_fallthru
      _
    // Predicated region
    $region10: #{forward.9} parent=1 // pred_check
      _
    $region11: #{forward.9} parent=1 // pred_check_branch
      %23 = sbr.rel (0) target = $region13
    $region12: #{forward.9} parent=1 // pred_region
      _
    $region13: #{forward.9} parent=1 // pred_fallthru
      _
    // Predicated region
    $region14: #{forward.9} parent=1 // pred_check
      _
    $region15: #{forward.9} parent=1 // pred_check_branch
      %25 = sbr.rel (0) target = $region17
    $region16: #{forward.9} parent=1 // pred_region
      _
    $region17: #{forward.9} parent=1 // pred_fallthru
      _
    // Predicated region
    $region18: #{forward.9} parent=1 // pred_check
      _
    $region19: #{forward.9} parent=1 // pred_check_branch
      %27 = sbr.rel (0) target = $region21
    $region20: #{forward.9} parent=1 // pred_region
      _
    $region21: #{forward.9} parent=1 // pred_fallthru
      _
    // Predicated region
    $region22: #{forward.9} parent=1 // pred_check
      _
    $region23: #{forward.9} parent=1 // pred_check_branch
      %29 = sbr.rel (0) target = $region25
    $region24: #{forward.9} parent=1 // pred_region
      _
    $region25: #{forward.9} parent=1 // pred_fallthru
      _
    // Predicated region
    $region26: #{forward.9} parent=1 // pred_check
      _
    $region27: #{forward.9} parent=1 // pred_check_branch
      %31 = sbr.rel (0) target = $region29
    $region28: #{forward.9} parent=1 // pred_region
      _
    $region29: #{forward.9} parent=1 // pred_fallthru
      _
    // Predicated region
    $region30: #{forward.9} parent=1 // pred_check
      _
    $region31: #{forward.9} parent=1 // pred_check_branch
      %33 = sbr.rel (0) target = $region33
    $region32: #{forward.9} parent=1 // pred_region
      _
    $region33: #{forward.9} parent=1 // pred_fallthru
      _
    // Predicated region
    $region34: #{forward.9} parent=1 // pred_check
      _
    $region35: #{forward.9} parent=1 // pred_check_branch
      %35 = sbr.rel (0) target = $region37
    $region36: #{forward.9} parent=1 // pred_region
      _
    $region37: #{forward.9} parent=1 // pred_fallthru
      _
    // Predicated region
    $region38: #{forward.9} parent=1 // pred_check
      _
    $region39: #{forward.9} parent=1 // pred_check_branch
      %37 = sbr.rel (0) target = $region41
    $region40: #{forward.9} parent=1 // pred_region
      _
    $region41: #{forward.9} parent=1 // pred_fallthru
      _
    %v38 = vld [vmem:[%s1] sm:$0xf]
    %v39 = vld [vmem:[%s4] sm:$0xf]
    %vm40 = vcmask 31744
    %v42 = vsel %vm40, %v38, 0
    %vm44 = vcmask 1043456
    %v46 = vsel %vm44, %v39, 0
    %48 = vmatprep.subr.mxu0 0.0
    %49 = vmatpush1.msra.mxu0 %v46
    %50 = vmatprep.subr.mxu0 0.0
    %51 = vmatpush1.msra.mxu0 0.0
    %52 = vmatprep.subr.mxu0 0.0
    %53 = vmatpush1.msra.mxu0 0.0
    %54 = vmatprep.subr.mxu0 0.0
    %55 = vmatpush1.msra.mxu0 0.0
    %56 = vmatprep.subr.mxu0 0.0
    %57 = vmatpush1.msra.mxu0 0.0
    %58 = vmatprep.subr.mxu0 0.0
    %59 = vmatpush1.msra.mxu0 0.0
    %60 = vmatprep.subr.mxu0 0.0
    %61 = vmatpush1.msra.mxu0 0.0
    %62 = vmatprep.subr.mxu0 0.0
    %63 = vmatpush1.msra.mxu0 0.0
    %64 = vmatprep.subr.mxu0 0.0
    %65 = vmatpush1.msra.mxu0 0.0
    %66 = vmatprep.subr.mxu0 0.0
    %67 = vmatpush1.msra.mxu0 0.0
    %68 = vmatprep.subr.mxu0 0.0
    %69 = vmatpush1.msra.mxu0 0.0
    %70 = vmatprep.subr.mxu0 0.0
    %71 = vmatpush1.msra.mxu0 0.0
    %72 = vmatprep.subr.mxu0 0.0
    %73 = vmatpush1.msra.mxu0 0.0
    %74 = vmatprep.subr.mxu0 0.0
    %75 = vmatpush1.msra.mxu0 0.0
    %76 = vmatprep.subr.mxu0 0.0
    %77 = vmatpush1.msra.mxu0 0.0
    %78 = vmatprep.subr.mxu0 0.0
    %79 = vmatpush1.msra.mxu0 0.0
    %80 = vmatprep.subr.mxu0 0.0
    %81 = vmatpush1.msra.mxu0 0.0
    %82 = vmatprep.subr.mxu0 0.0
    %83 = vmatpush1.msra.mxu0 0.0
    %84 = vmatprep.subr.mxu0 0.0
    %85 = vmatpush1.msra.mxu0 0.0
    %86 = vmatprep.subr.mxu0 0.0
    %87 = vmatpush1.msra.mxu0 0.0
    %88 = vmatprep.subr.mxu0 0.0
    %89 = vmatpush1.msra.mxu0 0.0
    %90 = vmatprep.subr.mxu0 0.0
    %91 = vmatpush1.msra.mxu0 0.0
    %92 = vmatprep.subr.mxu0 0.0
    %93 = vmatpush1.msra.mxu0 0.0
    %94 = vmatprep.subr.mxu0 0.0
    %95 = vmatpush1.msra.mxu0 0.0
    %96 = vmatprep.subr.mxu0 0.0
    %97 = vmatpush1.msra.mxu0 0.0
    %98 = vmatprep.subr.mxu0 0.0
    %99 = vmatpush1.msra.mxu0 0.0
    %100 = vmatprep.subr.mxu0 0.0
    %101 = vmatpush1.msra.mxu0 0.0
    %102 = vmatprep.subr.mxu0 0.0
    %103 = vmatpush1.msra.mxu0 0.0
    %104 = vmatprep.subr.mxu0 0.0
    %105 = vmatpush1.msra.mxu0 0.0
    %106 = vmatprep.subr.mxu0 0.0
    %107 = vmatpush1.msra.mxu0 0.0
    %108 = vmatprep.subr.mxu0 0.0
    %109 = vmatpush1.msra.mxu0 0.0
    %110 = vmatprep.subr.mxu0 0.0
    %111 = vmatpush1.msra.mxu0 0.0
    %112 = vmatprep.mubr.f32.mxu0 0.0
    %113 = vmatmul.mubr.f32.gmra.mrb[0].mxu0 %v42
    %v114 = vpop.f32.mrb[0].mxu0
    %v115 = vadd.f32 0.0, %v114
    %v116 = vpop.f32.mrb[0].mxu0
    %117 = vdwg.mxu0
    %v118 = vld [vmem:[%s0] sm:$0xf]
    %v119 = vadd.f32 %v118, %v115
    %v120 = vld [vmem:[%s2] sm:$0xf]
    %v121 = vmul.f32 %v120, %v119
    %v122 = vld [vmem:[%s5] sm:$0xff]
    %v123 = vld [vmem:[%s5 + $0x8] sm:$0xff]
    %v124 = vld [vmem:[%s5 + $0x10] sm:$0xff]
    %vm125 = vcmask 195584
    %v127 = vsel %vm125, %v121, 0
    %129 = vmatprep.subr.mxu0 0.0
    %130 = vmatpush1.msra.mxu0 %v122
    %131 = vmatprep.subr.mxu0 0.0
    %132 = vmatpush1.msra.mxu0 %v123
    %133 = vmatprep.subr.mxu0 0.0
    %134 = vmatpush1.msra.mxu0 %v124
    %135 = vmatprep.subr.mxu0 0.0
    %136 = vmatpush1.msra.mxu0 0.0
    %137 = vmatprep.subr.mxu0 0.0
    %138 = vmatpush1.msra.mxu0 0.0
    %139 = vmatprep.subr.mxu0 0.0
    %140 = vmatpush1.msra.mxu0 0.0
    %141 = vmatprep.subr.mxu0 0.0
    %142 = vmatpush1.msra.mxu0 0.0
    %143 = vmatprep.subr.mxu0 0.0
    %144 = vmatpush1.msra.mxu0 0.0
    %145 = vmatprep.subr.mxu0 0.0
    %146 = vmatpush1.msra.mxu0 0.0
    %147 = vmatprep.subr.mxu0 0.0
    %148 = vmatpush1.msra.mxu0 0.0
    %149 = vmatprep.subr.mxu0 0.0
    %150 = vmatpush1.msra.mxu0 0.0
    %151 = vmatprep.subr.mxu0 0.0
    %152 = vmatpush1.msra.mxu0 0.0
    %153 = vmatprep.subr.mxu0 0.0
    %154 = vmatpush1.msra.mxu0 0.0
    %155 = vmatprep.subr.mxu0 0.0
    %156 = vmatpush1.msra.mxu0 0.0
    %157 = vmatprep.subr.mxu0 0.0
    %158 = vmatpush1.msra.mxu0 0.0
    %159 = vmatprep.subr.mxu0 0.0
    %160 = vmatpush1.msra.mxu0 0.0
    %161 = vmatprep.subr.mxu0 0.0
    %162 = vmatpush1.msra.mxu0 0.0
    %163 = vmatprep.subr.mxu0 0.0
    %164 = vmatpush1.msra.mxu0 0.0
    %165 = vmatprep.subr.mxu0 0.0
    %166 = vmatpush1.msra.mxu0 0.0
    %167 = vmatprep.subr.mxu0 0.0
    %168 = vmatpush1.msra.mxu0 0.0
    %169 = vmatprep.subr.mxu0 0.0
    %170 = vmatpush1.msra.mxu0 0.0
    %171 = vmatprep.subr.mxu0 0.0
    %172 = vmatpush1.msra.mxu0 0.0
    %173 = vmatprep.subr.mxu0 0.0
    %174 = vmatpush1.msra.mxu0 0.0
    %175 = vmatprep.subr.mxu0 0.0
    %176 = vmatpush1.msra.mxu0 0.0
    %177 = vmatprep.subr.mxu0 0.0
    %178 = vmatpush1.msra.mxu0 0.0
    %179 = vmatprep.subr.mxu0 0.0
    %180 = vmatpush1.msra.mxu0 0.0
    %181 = vmatprep.subr.mxu0 0.0
    %182 = vmatpush1.msra.mxu0 0.0
    %183 = vmatprep.subr.mxu0 0.0
    %184 = vmatpush1.msra.mxu0 0.0
    %185 = vmatprep.subr.mxu0 0.0
    %186 = vmatpush1.msra.mxu0 0.0
    %187 = vmatprep.subr.mxu0 0.0
    %188 = vmatpush1.msra.mxu0 0.0
    %189 = vmatprep.subr.mxu0 0.0
    %190 = vmatpush1.msra.mxu0 0.0
    %191 = vmatprep.subr.mxu0 0.0
    %192 = vmatpush1.msra.mxu0 0.0
    %193 = vmatprep.mubr.f32.mxu0 0.0
    %194 = vmatmul.mubr.f32.gmra.mrb[0].mxu0 %v127
    %v195 = vpop.f32.mrb[0].mxu0
    %v196 = vadd.f32 0.0, %v195
    %v197 = vpop.f32.mrb[0].mxu0
    %198 = vdwg.mxu0
    %v199 = vld [vmem:[%s3] sm:$0xff]
    %v200 = vld [vmem:[%s3 + $0x8] sm:$0xff]
    %v201 = vld [vmem:[%s3 + $0x10] sm:$0xff]
    %v202 = vld [vmem:[%s3 + $0x18] sm:$0xff]
    %v203 = vld [vmem:[%s6] sm:$0xf]
    %v205 = vsel %vm40, %v199, 0
    %v208 = vsel %vm40, %v200, 0
    %v211 = vsel %vm40, %v201, 0
    %v214 = vsel %vm40, %v202, 0
    %v217 = vsel %vm44, %v203, 0
    %219 = vmatprep.subr.mxu0 0.0
    %220 = vmatpush1.msra.mxu0 %v217
    %221 = vmatprep.subr.mxu0 0.0
    %222 = vmatpush1.msra.mxu0 0.0
    %223 = vmatprep.subr.mxu0 0.0
    %224 = vmatpush1.msra.mxu0 0.0
    %225 = vmatprep.subr.mxu0 0.0
    %226 = vmatpush1.msra.mxu0 0.0
    %227 = vmatprep.subr.mxu0 0.0
    %228 = vmatpush1.msra.mxu0 0.0
    %229 = vmatprep.subr.mxu0 0.0
    %230 = vmatpush1.msra.mxu0 0.0
    %231 = vmatprep.subr.mxu0 0.0
    %232 = vmatpush1.msra.mxu0 0.0
    %233 = vmatprep.subr.mxu0 0.0
    %234 = vmatpush1.msra.mxu0 0.0
    %235 = vmatprep.subr.mxu0 0.0
    %236 = vmatpush1.msra.mxu0 0.0
    %237 = vmatprep.subr.mxu0 0.0
    %238 = vmatpush1.msra.mxu0 0.0
    %239 = vmatprep.subr.mxu0 0.0
    %240 = vmatpush1.msra.mxu0 0.0
    %241 = vmatprep.subr.mxu0 0.0
    %242 = vmatpush1.msra.mxu0 0.0
    %243 = vmatprep.subr.mxu0 0.0
    %244 = vmatpush1.msra.mxu0 0.0
    %245 = vmatprep.subr.mxu0 0.0
    %246 = vmatpush1.msra.mxu0 0.0
    %247 = vmatprep.subr.mxu0 0.0
    %248 = vmatpush1.msra.mxu0 0.0
    %249 = vmatprep.subr.mxu0 0.0
    %250 = vmatpush1.msra.mxu0 0.0
    %251 = vmatprep.subr.mxu0 0.0
    %252 = vmatpush1.msra.mxu0 0.0
    %253 = vmatprep.subr.mxu0 0.0
    %254 = vmatpush1.msra.mxu0 0.0
    %255 = vmatprep.subr.mxu0 0.0
    %256 = vmatpush1.msra.mxu0 0.0
    %257 = vmatprep.subr.mxu0 0.0
    %258 = vmatpush1.msra.mxu0 0.0
    %259 = vmatprep.subr.mxu0 0.0
    %260 = vmatpush1.msra.mxu0 0.0
    %261 = vmatprep.subr.mxu0 0.0
    %262 = vmatpush1.msra.mxu0 0.0
    %263 = vmatprep.subr.mxu0 0.0
    %264 = vmatpush1.msra.mxu0 0.0
    %265 = vmatprep.subr.mxu0 0.0
    %266 = vmatpush1.msra.mxu0 0.0
    %267 = vmatprep.subr.mxu0 0.0
    %268 = vmatpush1.msra.mxu0 0.0
    %269 = vmatprep.subr.mxu0 0.0
    %270 = vmatpush1.msra.mxu0 0.0
    %271 = vmatprep.subr.mxu0 0.0
    %272 = vmatpush1.msra.mxu0 0.0
    %273 = vmatprep.subr.mxu0 0.0
    %274 = vmatpush1.msra.mxu0 0.0
    %275 = vmatprep.subr.mxu0 0.0
    %276 = vmatpush1.msra.mxu0 0.0
    %277 = vmatprep.subr.mxu0 0.0
    %278 = vmatpush1.msra.mxu0 0.0
    %279 = vmatprep.subr.mxu0 0.0
    %280 = vmatpush1.msra.mxu0 0.0
    %281 = vmatprep.subr.mxu0 0.0
    %282 = vmatpush1.msra.mxu0 0.0
    %283 = vmatprep.mubr.f32.mxu0 0.0
    %284 = vmatmul.mubr.f32.gmra.mrb[0].mxu0 %v205
    %v285 = vpop.f32.mrb[0].mxu0
    %v286 = vadd.f32 0.0, %v285
    %v287 = vpop.f32.mrb[0].mxu0
    %288 = vmatprep.mubr.f32.mxu0 0.0
    %289 = vmatmul.mubr.f32.gmra.mrb[0].mxu0 %v208
    %v290 = vpop.f32.mrb[0].mxu0
    %v291 = vadd.f32 0.0, %v290
    %v292 = vpop.f32.mrb[0].mxu0
    %293 = vmatprep.mubr.f32.mxu0 0.0
    %294 = vmatmul.mubr.f32.gmra.mrb[0].mxu0 %v211
    %v295 = vpop.f32.mrb[0].mxu0
    %v296 = vadd.f32 0.0, %v295
    %v297 = vpop.f32.mrb[0].mxu0
    %298 = vmatprep.mubr.f32.mxu0 0.0
    %299 = vmatmul.mubr.f32.gmra.mrb[0].mxu0 %v214
    %v300 = vpop.f32.mrb[0].mxu0
    %v301 = vadd.f32 0.0, %v300
    %v302 = vpop.f32.mrb[0].mxu0
    %303 = vdwg.mxu0
    %v306 = vunpack.c.l.s4 1966171168
    %v307 = vunpack.c.0.s8 %v306
    %v308 = vlaneseq
    %v309 = vshrl.u32 %v308, 7
    %v310 = vsub.s32 %v307, %v309
    %v311 = vrot.slane %v196, %v310
    %v312 = vcombine.high %v311, %v311
    %v314 = vunpack.c.l.s4 1966171168
    %v315 = vunpack.c.0.s8 %v314
    %v316 = vlaneseq
    %v317 = vshrl.u32 %v316, 7
    %v318 = vsub.s32 %v315, %v317
    %v319 = vrot.slane %v311, %v318
    %v321 = vunpack.c.l.s4 1966171168
    %v322 = vunpack.c.0.s8 %v321
    %v323 = vlaneseq
    %v324 = vshrl.u32 %v323, 7
    %v325 = vsub.s32 %v322, %v324
    %v326 = vrot.slane %v312, %v325
    %v327 = vcombine.high %v319, %v319
    %v328 = vcombine.high %v326, %v326
    %v329 = vlaneseq
    %v330 = vshrl.u32 %v329, 7
    %v331 = vsub.s32 0, %v330
    %v332 = vrot.slane %v319, %v331
    %v333 = vlaneseq
    %v334 = vshrl.u32 %v333, 7
    %v335 = vsub.s32 0, %v334
    %v336 = vrot.slane %v326, %v335
    %v337 = vlaneseq
    %v338 = vshrl.u32 %v337, 7
    %v339 = vsub.s32 0, %v338
    %v340 = vrot.slane %v327, %v339
    %v341 = vlaneseq
    %v342 = vshrl.u32 %v341, 7
    %v343 = vsub.s32 0, %v342
    %v344 = vrot.slane %v328, %v343
    %v349 = vadd.f32 %v286, %v332
    %v350 = vadd.f32 %v291, %v336
    %v351 = vadd.f32 %v296, %v340
    %v352 = vadd.f32 %v301, %v344
    %v353 = vld [vmem:[%s7] sm:$0x1]
    %v355 = vlaneseq
    %v356 = vshrl.u32 %v355, 7
    %v357 = vsub.s32 0, %v356
    %v358 = vrot.slane %v353, %v357
    %v360 = vadd.f32 %v349, %v358
    %v361 = vadd.f32 %v350, %v358
    %v362 = vadd.f32 %v351, %v358
    %v363 = vadd.f32 %v352, %v358
    %v364 = vmax.f32 %v360, 0.0
    %v365 = vmax.f32 %v361, 0.0
    %v366 = vmax.f32 %v362, 0.0
    %v367 = vmax.f32 %v363, 0.0
    %v368 = vld [vmem:[%s8] sm:$0x1]
    %v370 = vlaneseq
    %v371 = vshrl.u32 %v370, 7
    %v372 = vsub.s32 0, %v371
    %v373 = vrot.slane %v368, %v372
    %v375 = vmul.f32 %v364, %v373
    %v376 = vmul.f32 %v365, %v373
    %v377 = vmul.f32 %v366, %v373
    %v378 = vmul.f32 %v367, %v373
    %vm379 = vcmask 261120
    %v380 = vsel %vm379, %v375, 0.0
    %381 = vadd.xlane.f32.xlu0 %v380
    %v382 = vpop.xlane.xlu0 %381
    %v383 = vsel %vm379, %v376, 0.0
    %384 = vadd.xlane.f32.xlu0 %v383
    %v385 = vpop.xlane.xlu0 %384
    %v386 = vsel %vm379, %v377, 0.0
    %387 = vadd.xlane.f32.xlu0 %v386
    %v388 = vpop.xlane.xlu0 %387
    %v389 = vsel %vm379, %v378, 0.0
    %390 = vadd.xlane.f32.xlu0 %v389
    %v391 = vpop.xlane.xlu0 %390
    %v392 = vld [vmem:[#allocation2] sm:$0x1]
    %v394 = vlaneseq
    %v395 = vshrl.u32 %v394, 7
    %v396 = vsub.s32 0, %v395
    %v397 = vrot.slane %v392, %v396
    %398 = vset.pattern.permute.xlu0 0
    %399 = vperm.xlu0 %398, %v397
    %v400 = vpop.permute.xlu0 %399
    %v402 = vadd.f32 %v382, %v400
    %v403 = vadd.f32 %v385, %v400
    %v404 = vadd.f32 %v388, %v400
    %v405 = vadd.f32 %v391, %v400
    %v410 = vlaneseq
    %v411 = vand.u32 %v410, 127
    %v412 = vlaneseq
    %v413 = vshrl.u32 %v412, 7
    %v414 = vsub.s32 %v411, %v413
    %v415 = vrot.slane %v402, %v414
    %v416 = vlaneseq
    %v417 = vshrl.u32 %v416, 7
    %v418 = vsub.s32 %v411, %v417
    %v419 = vrot.slane %v403, %v418
    %v420 = vlaneseq
    %v421 = vshrl.u32 %v420, 7
    %v422 = vsub.s32 %v411, %v421
    %v423 = vrot.slane %v404, %v422
    %v424 = vlaneseq
    %v425 = vshrl.u32 %v424, 7
    %v426 = vsub.s32 %v411, %v425
    %v427 = vrot.slane %v405, %v426
    %vm428 = vcmask 1041409
    %v429 = vsel %vm428, %v419, %v415
    %vm430 = vcmask 1042434
    %v431 = vsel %vm430, %v423, %v429
    %vm432 = vcmask 1043459
    %v433 = vsel %vm432, %v427, %v431
    %vm435 = vcmask 60416
    %436 = vst.msk [vmem:[#allocation3] sm:$0xf] %vm435, %v433
    // Predicated region
    $region42: #{forward.9} parent=1 // pred_check
      _
    $region43: #{forward.9} parent=1 // pred_check_branch
      %438 = sbr.rel (0) target = $region45
    $region44: #{forward.9} parent=1 // pred_region
      %s440 = ssub.s32 64, 64
      %441 = vsyncadd [#allocation4], %s440
      %s443 = sshll.u32 [#allocation3], 4
      %s444 = int_to_ptr.vmem [resolvable:$true] %s443
      %446 = dma.vmem_to_hbm [thread:$0]  %s444, 64, %s10, [#allocation4]
    $region45: #{forward.9} parent=1 // pred_fallthru
      _
    // Predicated region
    $region46: #{forward.9} parent=1 // pred_check
      _
    $region47: #{forward.9} parent=1 // pred_check_branch
      %448 = sbr.rel (0) target = $region49
    $region48: #{forward.9} parent=1 // pred_region
      %449 = dma.done [#allocation4], 64
    $region49: #{forward.9} parent=1 // pred_fallthru
      _
    %450 = vsyncpa [#allocation4], 1

// kernel: forward.7
$region0: #{forward.7}
  #allocation0 [shape = 'u32[]', space=smem, size = 0x4, offset = 0x4, fixed_abs, tag = 'smem constant byte address 0x4 - core index']
  #allocation1 [shape = 'u32[144,128]{1,0:T(1,128)}', space=vmem, size = 0x12000, scoped, tag = 'internal scratch']
  %s0 = inlined_call_operand.vmem [shape: bf16[512,144], index: 0, kind: input, shape index: {}]
  %s1 = inlined_call_operand.vmem [shape: bf16[144,16], index: 1, kind: input, shape index: {}]
  %s2 = inlined_call_operand.vmem [shape: f32[1,16], index: 2, kind: input, shape index: {}]
  %s3 = inlined_call_operand.vmem [shape: f32[512,16], index: 3, kind: output, shape index: {}]
  %s4 = sld [smem:[#allocation0]]
  $region22: #{forward.7} parent=0
    _
  %s6 = ssub.s32 1, %s4
  %s7 = scalar_select 0, %s6, %s4
  // Predicated region
  $region2: #{forward.7} parent=0 // pred_check
    _
  $region3: #{forward.7} parent=0 // pred_check_branch
    %9 = sbr.rel (0) target = $region5
  $region4: #{forward.7} parent=0 // pred_region
    _
  $region5: #{forward.7} parent=0 // pred_fallthru
    _
  // Predicated region
  $region6: #{forward.7} parent=0 // pred_check
    _
  $region7: #{forward.7} parent=0 // pred_check_branch
    %11 = sbr.rel (0) target = $region9
  $region8: #{forward.7} parent=0 // pred_region
    _
  $region9: #{forward.7} parent=0 // pred_fallthru
    _
  // Predicated region
  $region10: #{forward.7} parent=0 // pred_check
    _
  $region11: #{forward.7} parent=0 // pred_check_branch
    %13 = sbr.rel (0) target = $region13
  $region12: #{forward.7} parent=0 // pred_region
    _
  $region13: #{forward.7} parent=0 // pred_fallthru
    _
  %v15 = vld [vmem:[%s0] sm:$0xff]
  %v16 = vld [vmem:[%s0 + $0x8] sm:$0xff]
  %v17 = vld [vmem:[%s0 + $0x10] sm:$0xff]
  %v18 = vld [vmem:[%s0 + $0x18] sm:$0xff]
  %v19 = vld [vmem:[%s0 + $0x20] sm:$0xff]
  %v20 = vld [vmem:[%s0 + $0x28] sm:$0xff]
  %v21 = vld [vmem:[%s0 + $0x30] sm:$0xff]
  %v22 = vld [vmem:[%s0 + $0x38] sm:$0xff]
  %v23 = vld [vmem:[%s0 + $0x40] sm:$0xff]
  %v24 = vld [vmem:[%s0 + $0x48] sm:$0xff]
  %v25 = vld [vmem:[%s0 + $0x50] sm:$0xff]
  %v26 = vld [vmem:[%s0 + $0x58] sm:$0xff]
  %v27 = vld [vmem:[%s0 + $0x60] sm:$0xff]
  %v28 = vld [vmem:[%s0 + $0x68] sm:$0xff]
  %v29 = vld [vmem:[%s0 + $0x70] sm:$0xff]
  %v30 = vld [vmem:[%s0 + $0x78] sm:$0xff]
  %v31 = vld [vmem:[%s0 + $0x80] sm:$0xff]
  %v32 = vld [vmem:[%s0 + $0x88] sm:$0xff]
  %v33 = vld [vmem:[%s0 + $0x90] sm:$0xff]
  %v34 = vld [vmem:[%s0 + $0x98] sm:$0xff]
  %v35 = vld [vmem:[%s0 + $0xa0] sm:$0xff]
  %v36 = vld [vmem:[%s0 + $0xa8] sm:$0xff]
  %v37 = vld [vmem:[%s0 + $0xb0] sm:$0xff]
  %v38 = vld [vmem:[%s0 + $0xb8] sm:$0xff]
  %v39 = vld [vmem:[%s0 + $0xc0] sm:$0xff]
  %v40 = vld [vmem:[%s0 + $0xc8] sm:$0xff]
  %v41 = vld [vmem:[%s0 + $0xd0] sm:$0xff]
  %v42 = vld [vmem:[%s0 + $0xd8] sm:$0xff]
  %v43 = vld [vmem:[%s0 + $0xe0] sm:$0xff]
  %v44 = vld [vmem:[%s0 + $0xe8] sm:$0xff]
  %v45 = vld [vmem:[%s0 + $0xf0] sm:$0xff]
  %v46 = vld [vmem:[%s0 + $0xf8] sm:$0xff]
  %v47 = vld [vmem:[%s0 + $0x100] sm:$0xff]
  %v48 = vld [vmem:[%s0 + $0x108] sm:$0xff]
  %v49 = vld [vmem:[%s0 + $0x110] sm:$0xff]
  %v50 = vld [vmem:[%s0 + $0x118] sm:$0xff]
  %v51 = vld [vmem:[%s0 + $0x120] sm:$0xff]
  %v52 = vld [vmem:[%s0 + $0x128] sm:$0xff]
  %v53 = vld [vmem:[%s0 + $0x130] sm:$0xff]
  %v54 = vld [vmem:[%s0 + $0x138] sm:$0xff]
  %v55 = vld [vmem:[%s0 + $0x140] sm:$0xff]
  %v56 = vld [vmem:[%s0 + $0x148] sm:$0xff]
  %v57 = vld [vmem:[%s0 + $0x150] sm:$0xff]
  %v58 = vld [vmem:[%s0 + $0x158] sm:$0xff]
  %v59 = vld [vmem:[%s0 + $0x160] sm:$0xff]
  %v60 = vld [vmem:[%s0 + $0x168] sm:$0xff]
  %v61 = vld [vmem:[%s0 + $0x170] sm:$0xff]
  %v62 = vld [vmem:[%s0 + $0x178] sm:$0xff]
  %v63 = vld [vmem:[%s0 + $0x180] sm:$0xff]
  %v64 = vld [vmem:[%s0 + $0x188] sm:$0xff]
  %v65 = vld [vmem:[%s0 + $0x190] sm:$0xff]
  %v66 = vld [vmem:[%s0 + $0x198] sm:$0xff]
  %v67 = vld [vmem:[%s0 + $0x1a0] sm:$0xff]
  %v68 = vld [vmem:[%s0 + $0x1a8] sm:$0xff]
  %v69 = vld [vmem:[%s0 + $0x1b0] sm:$0xff]
  %v70 = vld [vmem:[%s0 + $0x1b8] sm:$0xff]
  %v71 = vld [vmem:[%s0 + $0x1c0] sm:$0xff]
  %v72 = vld [vmem:[%s0 + $0x1c8] sm:$0xff]
  %v73 = vld [vmem:[%s0 + $0x1d0] sm:$0xff]
  %v74 = vld [vmem:[%s0 + $0x1d8] sm:$0xff]
  %v75 = vld [vmem:[%s0 + $0x1e0] sm:$0xff]
  %v76 = vld [vmem:[%s0 + $0x1e8] sm:$0xff]
  %v77 = vld [vmem:[%s0 + $0x1f0] sm:$0xff]
  %v78 = vld [vmem:[%s0 + $0x1f8] sm:$0xff]
  %v79 = vld [vmem:[%s1] sm:$0xf]
  %v80 = vld [vmem:[%s1 + $0x4] sm:$0xf]
  %v81 = vld [vmem:[%s1 + $0x8] sm:$0xf]
  %v82 = vld [vmem:[%s1 + $0xc] sm:$0xf]
  %v83 = vld [vmem:[%s1 + $0x10] sm:$0xf]
  %v84 = vld [vmem:[%s1 + $0x14] sm:$0xf]
  %v85 = vld [vmem:[%s1 + $0x18] sm:$0xf]
  %v86 = vld [vmem:[%s1 + $0x1c] sm:$0xf]
  %v87 = vld [vmem:[%s1 + $0x20] sm:$0xf]
  %v88 = vld [vmem:[%s1 + $0x24] sm:$0xf]
  %v89 = vld [vmem:[%s1 + $0x28] sm:$0xf]
  %v90 = vld [vmem:[%s1 + $0x2c] sm:$0xf]
  %v91 = vld [vmem:[%s1 + $0x30] sm:$0xf]
  %v92 = vld [vmem:[%s1 + $0x34] sm:$0xf]
  %v93 = vld [vmem:[%s1 + $0x38] sm:$0xf]
  %v94 = vld [vmem:[%s1 + $0x3c] sm:$0xf]
  %v95 = vld [vmem:[%s1 + $0x40] sm:$0xf]
  %v96 = vld [vmem:[%s1 + $0x44] sm:$0xf]
  %v97 = vld [vmem:[%s2] sm:$0x1]
  %v99 = vlaneseq
  %v100 = vshrl.u32 %v99, 7
  %v101 = vsub.s32 0, %v100
  %v102 = vrot.slane %v97, %v101
  %v168 = vunpack.c.l.b16 %v15
  %v169 = vunpack.c.h.b16 %v15
  %v170 = vunpack.c.l.b16 %v16
  %v171 = vunpack.c.h.b16 %v16
  %v172 = vunpack.c.l.b16 %v17
  %v173 = vunpack.c.h.b16 %v17
  %v174 = vunpack.c.l.b16 %v18
  %v175 = vunpack.c.h.b16 %v18
  %v176 = vunpack.c.l.b16 %v19
  %v177 = vunpack.c.h.b16 %v19
  %v178 = vunpack.c.l.b16 %v20
  %v179 = vunpack.c.h.b16 %v20
  %v180 = vunpack.c.l.b16 %v21
  %v181 = vunpack.c.h.b16 %v21
  %v182 = vunpack.c.l.b16 %v22
  %v183 = vunpack.c.h.b16 %v22
  %v184 = vunpack.c.l.b16 %v23
  %v185 = vunpack.c.h.b16 %v23
  %v186 = vunpack.c.l.b16 %v24
  %v187 = vunpack.c.h.b16 %v24
  %v188 = vunpack.c.l.b16 %v25
  %v189 = vunpack.c.h.b16 %v25
  %v190 = vunpack.c.l.b16 %v26
  %v191 = vunpack.c.h.b16 %v26
  %v192 = vunpack.c.l.b16 %v27
  %v193 = vunpack.c.h.b16 %v27
  %v194 = vunpack.c.l.b16 %v28
  %v195 = vunpack.c.h.b16 %v28
  %v196 = vunpack.c.l.b16 %v29
  %v197 = vunpack.c.h.b16 %v29
  %v198 = vunpack.c.l.b16 %v30
  %v199 = vunpack.c.h.b16 %v30
  %v200 = vunpack.c.l.b16 %v31
  %v201 = vunpack.c.h.b16 %v31
  %v202 = vunpack.c.l.b16 %v32
  %v203 = vunpack.c.h.b16 %v32
  %v204 = vunpack.c.l.b16 %v33
  %v205 = vunpack.c.h.b16 %v33
  %v206 = vunpack.c.l.b16 %v34
  %v207 = vunpack.c.h.b16 %v34
  %v208 = vunpack.c.l.b16 %v35
  %v209 = vunpack.c.h.b16 %v35
  %v210 = vunpack.c.l.b16 %v36
  %v211 = vunpack.c.h.b16 %v36
  %v212 = vunpack.c.l.b16 %v37
  %v213 = vunpack.c.h.b16 %v37
  %v214 = vunpack.c.l.b16 %v38
  %v215 = vunpack.c.h.b16 %v38
  %v216 = vunpack.c.l.b16 %v39
  %v217 = vunpack.c.h.b16 %v39
  %v218 = vunpack.c.l.b16 %v40
  %v219 = vunpack.c.h.b16 %v40
  %v220 = vunpack.c.l.b16 %v41
  %v221 = vunpack.c.h.b16 %v41
  %v222 = vunpack.c.l.b16 %v42
  %v223 = vunpack.c.h.b16 %v42
  %v224 = vunpack.c.l.b16 %v43
  %v225 = vunpack.c.h.b16 %v43
  %v226 = vunpack.c.l.b16 %v44
  %v227 = vunpack.c.h.b16 %v44
  %v228 = vunpack.c.l.b16 %v45
  %v229 = vunpack.c.h.b16 %v45
  %v230 = vunpack.c.l.b16 %v46
  %v231 = vunpack.c.h.b16 %v46
  %v232 = vunpack.c.l.b16 %v47
  %v233 = vunpack.c.h.b16 %v47
  %v234 = vunpack.c.l.b16 %v48
  %v235 = vunpack.c.h.b16 %v48
  %v236 = vunpack.c.l.b16 %v49
  %v237 = vunpack.c.h.b16 %v49
  %v238 = vunpack.c.l.b16 %v50
  %v239 = vunpack.c.h.b16 %v50
  %v240 = vunpack.c.l.b16 %v51
  %v241 = vunpack.c.h.b16 %v51
  %v242 = vunpack.c.l.b16 %v52
  %v243 = vunpack.c.h.b16 %v52
  %v244 = vunpack.c.l.b16 %v53
  %v245 = vunpack.c.h.b16 %v53
  %v246 = vunpack.c.l.b16 %v54
  %v247 = vunpack.c.h.b16 %v54
  %v248 = vunpack.c.l.b16 %v55
  %v249 = vunpack.c.h.b16 %v55
  %v250 = vunpack.c.l.b16 %v56
  %v251 = vunpack.c.h.b16 %v56
  %v252 = vunpack.c.l.b16 %v57
  %v253 = vunpack.c.h.b16 %v57
  %v254 = vunpack.c.l.b16 %v58
  %v255 = vunpack.c.h.b16 %v58
  %v256 = vunpack.c.l.b16 %v59
  %v257 = vunpack.c.h.b16 %v59
  %v258 = vunpack.c.l.b16 %v60
  %v259 = vunpack.c.h.b16 %v60
  %v260 = vunpack.c.l.b16 %v61
  %v261 = vunpack.c.h.b16 %v61
  %v262 = vunpack.c.l.b16 %v62
  %v263 = vunpack.c.h.b16 %v62
  %v264 = vunpack.c.l.b16 %v63
  %v265 = vunpack.c.h.b16 %v63
  %v266 = vunpack.c.l.b16 %v64
  %v267 = vunpack.c.h.b16 %v64
  %v268 = vunpack.c.l.b16 %v65
  %v269 = vunpack.c.h.b16 %v65
  %v270 = vunpack.c.l.b16 %v66
  %v271 = vunpack.c.h.b16 %v66
  %v272 = vunpack.c.l.b16 %v67
  %v273 = vunpack.c.h.b16 %v67
  %v274 = vunpack.c.l.b16 %v68
  %v275 = vunpack.c.h.b16 %v68
  %v276 = vunpack.c.l.b16 %v69
  %v277 = vunpack.c.h.b16 %v69
  %v278 = vunpack.c.l.b16 %v70
  %v279 = vunpack.c.h.b16 %v70
  %v280 = vunpack.c.l.b16 %v71
  %v281 = vunpack.c.h.b16 %v71
  %v282 = vunpack.c.l.b16 %v72
  %v283 = vunpack.c.h.b16 %v72
  %v284 = vunpack.c.l.b16 %v73
  %v285 = vunpack.c.h.b16 %v73
  %v286 = vunpack.c.l.b16 %v74
  %v287 = vunpack.c.h.b16 %v74
  %v288 = vunpack.c.l.b16 %v75
  %v289 = vunpack.c.h.b16 %v75
  %v290 = vunpack.c.l.b16 %v76
  %v291 = vunpack.c.h.b16 %v76
  %v292 = vunpack.c.l.b16 %v77
  %v293 = vunpack.c.h.b16 %v77
  %v294 = vunpack.c.l.b16 %v78
  %v295 = vunpack.c.h.b16 %v78
  %v296 = vpack.c.b16 %v170, %v168
  %v297 = vpack.c.b16 %v171, %v169
  %v298 = vpack.c.b16 %v174, %v172
  %v299 = vpack.c.b16 %v175, %v173
  %v300 = vpack.c.b16 %v178, %v176
  %v301 = vpack.c.b16 %v179, %v177
  %v302 = vpack.c.b16 %v182, %v180
  %v303 = vpack.c.b16 %v183, %v181
  %v304 = vpack.c.b16 %v186, %v184
  %v305 = vpack.c.b16 %v187, %v185
  %v306 = vpack.c.b16 %v190, %v188
  %v307 = vpack.c.b16 %v191, %v189
  %v308 = vpack.c.b16 %v194, %v192
  %v309 = vpack.c.b16 %v195, %v193
  %v310 = vpack.c.b16 %v198, %v196
  %v311 = vpack.c.b16 %v199, %v197
  %v312 = vpack.c.b16 %v202, %v200
  %v313 = vpack.c.b16 %v203, %v201
  %v314 = vpack.c.b16 %v206, %v204
  %v315 = vpack.c.b16 %v207, %v205
  %v316 = vpack.c.b16 %v210, %v208
  %v317 = vpack.c.b16 %v211, %v209
  %v318 = vpack.c.b16 %v214, %v212
  %v319 = vpack.c.b16 %v215, %v213
  %v320 = vpack.c.b16 %v218, %v216
  %v321 = vpack.c.b16 %v219, %v217
  %v322 = vpack.c.b16 %v222, %v220
  %v323 = vpack.c.b16 %v223, %v221
  %v324 = vpack.c.b16 %v226, %v224
  %v325 = vpack.c.b16 %v227, %v225
  %v326 = vpack.c.b16 %v230, %v228
  %v327 = vpack.c.b16 %v231, %v229
  %v328 = vpack.c.b16 %v234, %v232
  %v329 = vpack.c.b16 %v235, %v233
  %v330 = vpack.c.b16 %v238, %v236
  %v331 = vpack.c.b16 %v239, %v237
  %v332 = vpack.c.b16 %v242, %v240
  %v333 = vpack.c.b16 %v243, %v241
  %v334 = vpack.c.b16 %v246, %v244
  %v335 = vpack.c.b16 %v247, %v245
  %v336 = vpack.c.b16 %v250, %v248
  %v337 = vpack.c.b16 %v251, %v249
  %v338 = vpack.c.b16 %v254, %v252
  %v339 = vpack.c.b16 %v255, %v253
  %v340 = vpack.c.b16 %v258, %v256
  %v341 = vpack.c.b16 %v259, %v257
  %v342 = vpack.c.b16 %v262, %v260
  %v343 = vpack.c.b16 %v263, %v261
  %v344 = vpack.c.b16 %v266, %v264
  %v345 = vpack.c.b16 %v267, %v265
  %v346 = vpack.c.b16 %v270, %v268
  %v347 = vpack.c.b16 %v271, %v269
  %v348 = vpack.c.b16 %v274, %v272
  %v349 = vpack.c.b16 %v275, %v273
  %v350 = vpack.c.b16 %v278, %v276
  %v351 = vpack.c.b16 %v279, %v277
  %v352 = vpack.c.b16 %v282, %v280
  %v353 = vpack.c.b16 %v283, %v281
  %v354 = vpack.c.b16 %v286, %v284
  %v355 = vpack.c.b16 %v287, %v285
  %v356 = vpack.c.b16 %v290, %v288
  %v357 = vpack.c.b16 %v291, %v289
  %v358 = vpack.c.b16 %v294, %v292
  %v359 = vpack.c.b16 %v295, %v293
  %v410 = vunpack.c.l.b16 %v79
  %v411 = vunpack.c.l.b16 %v80
  %v412 = vunpack.c.l.b16 %v81
  %v413 = vunpack.c.l.b16 %v82
  %v414 = vunpack.c.l.b16 %v83
  %v415 = vunpack.c.l.b16 %v84
  %v416 = vunpack.c.l.b16 %v85
  %v417 = vunpack.c.l.b16 %v86
  %v418 = vunpack.c.l.b16 %v87
  %v419 = vunpack.c.l.b16 %v88
  %v420 = vunpack.c.l.b16 %v89
  %v421 = vunpack.c.l.b16 %v90
  %v422 = vunpack.c.l.b16 %v91
  %v423 = vunpack.c.l.b16 %v92
  %v424 = vunpack.c.l.b16 %v93
  %v425 = vunpack.c.l.b16 %v94
  %v426 = vunpack.c.l.b16 %v95
  %v427 = vunpack.c.l.b16 %v96
  %v428 = vpack.c.b16 %v411, %v410
  %v429 = vpack.c.b16 %v413, %v412
  %v430 = vpack.c.b16 %v415, %v414
  %v431 = vpack.c.b16 %v417, %v416
  %v432 = vpack.c.b16 %v419, %v418
  %v433 = vpack.c.b16 %v421, %v420
  %v434 = vpack.c.b16 %v423, %v422
  %v435 = vpack.c.b16 %v425, %v424
  %v436 = vpack.c.b16 %v427, %v426
  %vm446 = vcmask 130048
  %v448 = vsel %vm446, %v297, 0
  %v451 = vsel %vm446, %v299, 0
  %v454 = vsel %vm446, %v301, 0
  %v457 = vsel %vm446, %v303, 0
  %v460 = vsel %vm446, %v305, 0
  %v463 = vsel %vm446, %v307, 0
  %v466 = vsel %vm446, %v309, 0
  %v469 = vsel %vm446, %v311, 0
  %v472 = vsel %vm446, %v313, 0
  %v475 = vsel %vm446, %v315, 0
  %v478 = vsel %vm446, %v317, 0
  %v481 = vsel %vm446, %v319, 0
  %v484 = vsel %vm446, %v321, 0
  %v487 = vsel %vm446, %v323, 0
  %v490 = vsel %vm446, %v325, 0
  %v493 = vsel %vm446, %v327, 0
  %v496 = vsel %vm446, %v329, 0
  %v499 = vsel %vm446, %v331, 0
  %v502 = vsel %vm446, %v333, 0
  %v505 = vsel %vm446, %v335, 0
  %v508 = vsel %vm446, %v337, 0
  %v511 = vsel %vm446, %v339, 0
  %v514 = vsel %vm446, %v341, 0
  %v517 = vsel %vm446, %v343, 0
  %v520 = vsel %vm446, %v345, 0
  %v523 = vsel %vm446, %v347, 0
  %v526 = vsel %vm446, %v349, 0
  %v529 = vsel %vm446, %v351, 0
  %v532 = vsel %vm446, %v353, 0
  %v535 = vsel %vm446, %v355, 0
  %v538 = vsel %vm446, %v357, 0
  %v541 = vsel %vm446, %v359, 0
  %543 = vmatprep.subr.bf16.mxu0 0
  %544 = vmatpush1.bf16.msra.mxu0 %v428
  %545 = vmatprep.subr.bf16.mxu0 0
  %546 = vmatpush1.bf16.msra.mxu0 %v429
  %547 = vmatprep.subr.bf16.mxu0 0
  %548 = vmatpush1.bf16.msra.mxu0 %v430
  %549 = vmatprep.subr.bf16.mxu0 0
  %550 = vmatpush1.bf16.msra.mxu0 %v431
  %551 = vmatprep.subr.bf16.mxu0 0
  %552 = vmatpush1.bf16.msra.mxu0 %v432
  %553 = vmatprep.subr.bf16.mxu0 0
  %554 = vmatpush1.bf16.msra.mxu0 %v433
  %555 = vmatprep.subr.bf16.mxu0 0
  %556 = vmatpush1.bf16.msra.mxu0 %v434
  %557 = vmatprep.subr.bf16.mxu0 0
  %558 = vmatpush1.bf16.msra.mxu0 %v435
  %559 = vmatprep.subr.bf16.mxu0 0
  %560 = vmatpush1.bf16.msra.mxu0 %v436
  %561 = vmatprep.subr.bf16.mxu0 0
  %562 = vmatpush1.bf16.msra.mxu0 0
  %563 = vmatprep.subr.bf16.mxu0 0
  %564 = vmatpush1.bf16.msra.mxu0 0
  %565 = vmatprep.subr.bf16.mxu0 0
  %566 = vmatpush1.bf16.msra.mxu0 0
  %567 = vmatprep.subr.bf16.mxu0 0
  %568 = vmatpush1.bf16.msra.mxu0 0
  %569 = vmatprep.subr.bf16.mxu0 0
  %570 = vmatpush1.bf16.msra.mxu0 0
  %571 = vmatprep.subr.bf16.mxu0 0
  %572 = vmatpush1.bf16.msra.mxu0 0
  %573 = vmatprep.subr.bf16.mxu0 0
  %574 = vmatpush1.bf16.msra.mxu0 0
  %575 = vmatprep.mubr.bf16.mxu0 %v448
  %576 = vmatmul.mubr.bf16.gmra.mrb[0].mxu0 %v296
  %v577 = vpop.f32.mrb[0].mxu0
  %v578 = vadd.f32 %v102, %v577
  %v579 = vpop.f32.mrb[0].mxu0
  %v580 = vpop.f32.mrb[0].mxu0
  %v581 = vadd.f32 %v102, %v580
  %v582 = vpop.f32.mrb[0].mxu0
  %583 = vmatprep.mubr.bf16.mxu0 %v451
  %584 = vmatmul.mubr.bf16.gmra.mrb[0].mxu0 %v298
  %v585 = vpop.f32.mrb[0].mxu0
  %v586 = vadd.f32 %v102, %v585
  %v587 = vpop.f32.mrb[0].mxu0
  %v588 = vpop.f32.mrb[0].mxu0
  %v589 = vadd.f32 %v102, %v588
  %v590 = vpop.f32.mrb[0].mxu0
  %591 = vmatprep.mubr.bf16.mxu0 %v454
  %592 = vmatmul.mubr.bf16.gmra.mrb[0].mxu0 %v300
  %v593 = vpop.f32.mrb[0].mxu0
  %v594 = vadd.f32 %v102, %v593
  %v595 = vpop.f32.mrb[0].mxu0
  %v596 = vpop.f32.mrb[0].mxu0
  %v597 = vadd.f32 %v102, %v596
  %v598 = vpop.f32.mrb[0].mxu0
  %599 = vmatprep.mubr.bf16.mxu0 %v457
  %600 = vmatmul.mubr.bf16.gmra.mrb[0].mxu0 %v302
  %v601 = vpop.f32.mrb[0].mxu0
  %v602 = vadd.f32 %v102, %v601
  %v603 = vpop.f32.mrb[0].mxu0
  %v604 = vpop.f32.mrb[0].mxu0
  %v605 = vadd.f32 %v102, %v604
  %v606 = vpop.f32.mrb[0].mxu0
  %607 = vmatprep.mubr.bf16.mxu0 %v460
  %608 = vmatmul.mubr.bf16.gmra.mrb[0].mxu0 %v304
  %v609 = vpop.f32.mrb[0].mxu0
  %v610 = vadd.f32 %v102, %v609
  %v611 = vpop.f32.mrb[0].mxu0
  %v612 = vpop.f32.mrb[0].mxu0
  %v613 = vadd.f32 %v102, %v612
  %v614 = vpop.f32.mrb[0].mxu0
  %615 = vmatprep.mubr.bf16.mxu0 %v463
  %616 = vmatmul.mubr.bf16.gmra.mrb[0].mxu0 %v306
  %v617 = vpop.f32.mrb[0].mxu0
  %v618 = vadd.f32 %v102, %v617
  %v619 = vpop.f32.mrb[0].mxu0
  %v620 = vpop.f32.mrb[0].mxu0
  %v621 = vadd.f32 %v102, %v620
  %v622 = vpop.f32.mrb[0].mxu0
  %623 = vmatprep.mubr.bf16.mxu0 %v466
  %624 = vmatmul.mubr.bf16.gmra.mrb[0].mxu0 %v308
  %v625 = vpop.f32.mrb[0].mxu0
  %v626 = vadd.f32 %v102, %v625
  %v627 = vpop.f32.mrb[0].mxu0
  %v628 = vpop.f32.mrb[0].mxu0
  %v629 = vadd.f32 %v102, %v628
  %v630 = vpop.f32.mrb[0].mxu0
  %631 = vmatprep.mubr.bf16.mxu0 %v469
  %632 = vmatmul.mubr.bf16.gmra.mrb[0].mxu0 %v310
  %v633 = vpop.f32.mrb[0].mxu0
  %v634 = vadd.f32 %v102, %v633
  %v635 = vpop.f32.mrb[0].mxu0
  %v636 = vpop.f32.mrb[0].mxu0
  %v637 = vadd.f32 %v102, %v636
  %v638 = vpop.f32.mrb[0].mxu0
  %639 = vmatprep.mubr.bf16.mxu0 %v472
  %640 = vmatmul.mubr.bf16.gmra.mrb[0].mxu0 %v312
  %v641 = vpop.f32.mrb[0].mxu0
  %v642 = vadd.f32 %v102, %v641
  %v643 = vpop.f32.mrb[0].mxu0
  %v644 = vpop.f32.mrb[0].mxu0
  %v645 = vadd.f32 %v102, %v644
  %v646 = vpop.f32.mrb[0].mxu0
  %647 = vmatprep.mubr.bf16.mxu0 %v475
  %648 = vmatmul.mubr.bf16.gmra.mrb[0].mxu0 %v314
  %v649 = vpop.f32.mrb[0].mxu0
  %v650 = vadd.f32 %v102, %v649
  %v651 = vpop.f32.mrb[0].mxu0
  %v652 = vpop.f32.mrb[0].mxu0
  %v653 = vadd.f32 %v102, %v652
  %v654 = vpop.f32.mrb[0].mxu0
  %655 = vmatprep.mubr.bf16.mxu0 %v478
  %656 = vmatmul.mubr.bf16.gmra.mrb[0].mxu0 %v316
  %v657 = vpop.f32.mrb[0].mxu0
  %v658 = vadd.f32 %v102, %v657
  %v659 = vpop.f32.mrb[0].mxu0
  %v660 = vpop.f32.mrb[0].mxu0
  %v661 = vadd.f32 %v102, %v660
  %v662 = vpop.f32.mrb[0].mxu0
  %663 = vmatprep.mubr.bf16.mxu0 %v481
  %664 = vmatmul.mubr.bf16.gmra.mrb[0].mxu0 %v318
  %v665 = vpop.f32.mrb[0].mxu0
  %v666 = vadd.f32 %v102, %v665
  %v667 = vpop.f32.mrb[0].mxu0
  %v668 = vpop.f32.mrb[0].mxu0
  %v669 = vadd.f32 %v102, %v668
  %v670 = vpop.f32.mrb[0].mxu0
  %671 = vmatprep.mubr.bf16.mxu0 %v484
  %672 = vmatmul.mubr.bf16.gmra.mrb[0].mxu0 %v320
  %v673 = vpop.f32.mrb[0].mxu0
  %v674 = vadd.f32 %v102, %v673
  %v675 = vpop.f32.mrb[0].mxu0
  %v676 = vpop.f32.mrb[0].mxu0
  %v677 = vadd.f32 %v102, %v676
  %v678 = vpop.f32.mrb[0].mxu0
  %679 = vmatprep.mubr.bf16.mxu0 %v487
  %680 = vmatmul.mubr.bf16.gmra.mrb[0].mxu0 %v322
  %v681 = vpop.f32.mrb[0].mxu0
  %v682 = vadd.f32 %v102, %v681
  %v683 = vpop.f32.mrb[0].mxu0
  %v684 = vpop.f32.mrb[0].mxu0
  %v685 = vadd.f32 %v102, %v684
  %v686 = vpop.f32.mrb[0].mxu0
  %687 = vmatprep.mubr.bf16.mxu0 %v490
  %688 = vmatmul.mubr.bf16.gmra.mrb[0].mxu0 %v324
  %v689 = vpop.f32.mrb[0].mxu0
  %v690 = vadd.f32 %v102, %v689
  %v691 = vpop.f32.mrb[0].mxu0
  %v692 = vpop.f32.mrb[0].mxu0
  %v693 = vadd.f32 %v102, %v692
  %v694 = vpop.f32.mrb[0].mxu0
  %695 = vmatprep.mubr.bf16.mxu0 %v493
  %696 = vmatmul.mubr.bf16.gmra.mrb[0].mxu0 %v326
  %v697 = vpop.f32.mrb[0].mxu0
  %v698 = vadd.f32 %v102, %v697
  %v699 = vpop.f32.mrb[0].mxu0
  %v700 = vpop.f32.mrb[0].mxu0
  %v701 = vadd.f32 %v102, %v700
  %v702 = vpop.f32.mrb[0].mxu0
  %703 = vmatprep.mubr.bf16.mxu0 %v496
  %704 = vmatmul.mubr.bf16.gmra.mrb[0].mxu0 %v328
  %v705 = vpop.f32.mrb[0].mxu0
  %v706 = vadd.f32 %v102, %v705
  %v707 = vpop.f32.mrb[0].mxu0
  %v708 = vpop.f32.mrb[0].mxu0
  %v709 = vadd.f32 %v102, %v708
  %v710 = vpop.f32.mrb[0].mxu0
  %711 = vmatprep.mubr.bf16.mxu0 %v499
  %712 = vmatmul.mubr.bf16.gmra.mrb[0].mxu0 %v330
  %v713 = vpop.f32.mrb[0].mxu0
  %v714 = vadd.f32 %v102, %v713
  %v715 = vpop.f32.mrb[0].mxu0
  %v716 = vpop.f32.mrb[0].mxu0
  %v717 = vadd.f32 %v102, %v716
  %v718 = vpop.f32.mrb[0].mxu0
  %719 = vmatprep.mubr.bf16.mxu0 %v502
  %720 = vmatmul.mubr.bf16.gmra.mrb[0].mxu0 %v332
  %v721 = vpop.f32.mrb[0].mxu0
  %v722 = vadd.f32 %v102, %v721
  %v723 = vpop.f32.mrb[0].mxu0
  %v724 = vpop.f32.mrb[0].mxu0
  %v725 = vadd.f32 %v102, %v724
  %v726 = vpop.f32.mrb[0].mxu0
  %727 = vmatprep.mubr.bf16.mxu0 %v505
  %728 = vmatmul.mubr.bf16.gmra.mrb[0].mxu0 %v334
  %v729 = vpop.f32.mrb[0].mxu0
  %v730 = vadd.f32 %v102, %v729
  %v731 = vpop.f32.mrb[0].mxu0
  %v732 = vpop.f32.mrb[0].mxu0
  %v733 = vadd.f32 %v102, %v732
  %v734 = vpop.f32.mrb[0].mxu0
  %735 = vmatprep.mubr.bf16.mxu0 %v508
  %736 = vmatmul.mubr.bf16.gmra.mrb[0].mxu0 %v336
  %v737 = vpop.f32.mrb[0].mxu0
  %v738 = vadd.f32 %v102, %v737
  %v739 = vpop.f32.mrb[0].mxu0
  %v740 = vpop.f32.mrb[0].mxu0
  %v741 = vadd.f32 %v102, %v740
  %v742 = vpop.f32.mrb[0].mxu0
  %743 = vmatprep.mubr.bf16.mxu0 %v511
  %744 = vmatmul.mubr.bf16.gmra.mrb[0].mxu0 %v338
  %v745 = vpop.f32.mrb[0].mxu0
  %v746 = vadd.f32 %v102, %v745
  %v747 = vpop.f32.mrb[0].mxu0
  %v748 = vpop.f32.mrb[0].mxu0
  %v749 = vadd.f32 %v102, %v748
  %v750 = vpop.f32.mrb[0].mxu0
  %751 = vmatprep.mubr.bf16.mxu0 %v514
  %752 = vmatmul.mubr.bf16.gmra.mrb[0].mxu0 %v340
  %v753 = vpop.f32.mrb[0].mxu0
  %v754 = vadd.f32 %v102, %v753
  %v755 = vpop.f32.mrb[0].mxu0
  %v756 = vpop.f32.mrb[0].mxu0
  %v757 = vadd.f32 %v102, %v756
  %v758 = vpop.f32.mrb[0].mxu0
  %759 = vmatprep.mubr.bf16.mxu0 %v517
  %760 = vmatmul.mubr.bf16.gmra.mrb[0].mxu0 %v342
  %v761 = vpop.f32.mrb[0].mxu0
  %v762 = vadd.f32 %v102, %v761
  %v763 = vpop.f32.mrb[0].mxu0
  %v764 = vpop.f32.mrb[0].mxu0
  %v765 = vadd.f32 %v102, %v764
  %v766 = vpop.f32.mrb[0].mxu0
  %767 = vmatprep.mubr.bf16.mxu0 %v520
  %768 = vmatmul.mubr.bf16.gmra.mrb[0].mxu0 %v344
  %v769 = vpop.f32.mrb[0].mxu0
  %v770 = vadd.f32 %v102, %v769
  %v771 = vpop.f32.mrb[0].mxu0
  %v772 = vpop.f32.mrb[0].mxu0
  %v773 = vadd.f32 %v102, %v772
  %v774 = vpop.f32.mrb[0].mxu0
  %775 = vmatprep.mubr.bf16.mxu0 %v523
  %776 = vmatmul.mubr.bf16.gmra.mrb[0].mxu0 %v346
  %v777 = vpop.f32.mrb[0].mxu0
  %v778 = vadd.f32 %v102, %v777
  %v779 = vpop.f32.mrb[0].mxu0
  %v780 = vpop.f32.mrb[0].mxu0
  %v781 = vadd.f32 %v102, %v780
  %v782 = vpop.f32.mrb[0].mxu0
  %783 = vmatprep.mubr.bf16.mxu0 %v526
  %784 = vmatmul.mubr.bf16.gmra.mrb[0].mxu0 %v348
  %v785 = vpop.f32.mrb[0].mxu0
  %v786 = vadd.f32 %v102, %v785
  %v787 = vpop.f32.mrb[0].mxu0
  %v788 = vpop.f32.mrb[0].mxu0
  %v789 = vadd.f32 %v102, %v788
  %v790 = vpop.f32.mrb[0].mxu0
  %791 = vmatprep.mubr.bf16.mxu0 %v529
  %792 = vmatmul.mubr.bf16.gmra.mrb[0].mxu0 %v350
  %v793 = vpop.f32.mrb[0].mxu0
  %v794 = vadd.f32 %v102, %v793
  %v795 = vpop.f32.mrb[0].mxu0
  %v796 = vpop.f32.mrb[0].mxu0
  %v797 = vadd.f32 %v102, %v796
  %v798 = vpop.f32.mrb[0].mxu0
  %799 = vmatprep.mubr.bf16.mxu0 %v532
  %800 = vmatmul.mubr.bf16.gmra.mrb[0].mxu0 %v352
  %v801 = vpop.f32.mrb[0].mxu0
  %v802 = vadd.f32 %v102, %v801
  %v803 = vpop.f32.mrb[0].mxu0
  %v804 = vpop.f32.mrb[0].mxu0
  %v805 = vadd.f32 %v102, %v804
  %v806 = vpop.f32.mrb[0].mxu0
  %807 = vmatprep.mubr.bf16.mxu0 %v535
  %808 = vmatmul.mubr.bf16.gmra.mrb[0].mxu0 %v354
  %v809 = vpop.f32.mrb[0].mxu0
  %v810 = vadd.f32 %v102, %v809
  %v811 = vpop.f32.mrb[0].mxu0
  %v812 = vpop.f32.mrb[0].mxu0
  %v813 = vadd.f32 %v102, %v812
  %v814 = vpop.f32.mrb[0].mxu0
  %815 = vmatprep.mubr.bf16.mxu0 %v538
  %816 = vmatmul.mubr.bf16.gmra.mrb[0].mxu0 %v356
  %v817 = vpop.f32.mrb[0].mxu0
  %v818 = vadd.f32 %v102, %v817
  %v819 = vpop.f32.mrb[0].mxu0
  %v820 = vpop.f32.mrb[0].mxu0
  %v821 = vadd.f32 %v102, %v820
  %v822 = vpop.f32.mrb[0].mxu0
  %823 = vmatprep.mubr.bf16.mxu0 %v541
  %824 = vmatmul.mubr.bf16.gmra.mrb[0].mxu0 %v358
  %v825 = vpop.f32.mrb[0].mxu0
  %v826 = vadd.f32 %v102, %v825
  %v827 = vpop.f32.mrb[0].mxu0
  %v828 = vpop.f32.mrb[0].mxu0
  %v829 = vadd.f32 %v102, %v828
  %v830 = vpop.f32.mrb[0].mxu0
  %831 = vdwg.mxu0
  %v832 = vmax.f32 %v578, 0.0
  %v833 = vmax.f32 %v581, 0.0
  %v834 = vmax.f32 %v586, 0.0
  %v835 = vmax.f32 %v589, 0.0
  %v836 = vmax.f32 %v594, 0.0
  %v837 = vmax.f32 %v597, 0.0
  %v838 = vmax.f32 %v602, 0.0
  %v839 = vmax.f32 %v605, 0.0
  %v840 = vmax.f32 %v610, 0.0
  %v841 = vmax.f32 %v613, 0.0
  %v842 = vmax.f32 %v618, 0.0
  %v843 = vmax.f32 %v621, 0.0
  %v844 = vmax.f32 %v626, 0.0
  %v845 = vmax.f32 %v629, 0.0
  %v846 = vmax.f32 %v634, 0.0
  %v847 = vmax.f32 %v637, 0.0
  %v848 = vmax.f32 %v642, 0.0
  %v849 = vmax.f32 %v645, 0.0
  %v850 = vmax.f32 %v650, 0.0
  %v851 = vmax.f32 %v653, 0.0
  %v852 = vmax.f32 %v658, 0.0
  %v853 = vmax.f32 %v661, 0.0
  %v854 = vmax.f32 %v666, 0.0
  %v855 = vmax.f32 %v669, 0.0
  %v856 = vmax.f32 %v674, 0.0
  %v857 = vmax.f32 %v677, 0.0
  %v858 = vmax.f32 %v682, 0.0
  %v859 = vmax.f32 %v685, 0.0
  %v860 = vmax.f32 %v690, 0.0
  %v861 = vmax.f32 %v693, 0.0
  %v862 = vmax.f32 %v698, 0.0
  %v863 = vmax.f32 %v701, 0.0
  %v864 = vmax.f32 %v706, 0.0
  %v865 = vmax.f32 %v709, 0.0
  %v866 = vmax.f32 %v714, 0.0
  %v867 = vmax.f32 %v717, 0.0
  %v868 = vmax.f32 %v722, 0.0
  %v869 = vmax.f32 %v725, 0.0
  %v870 = vmax.f32 %v730, 0.0
  %v871 = vmax.f32 %v733, 0.0
  %v872 = vmax.f32 %v738, 0.0
  %v873 = vmax.f32 %v741, 0.0
  %v874 = vmax.f32 %v746, 0.0
  %v875 = vmax.f32 %v749, 0.0
  %v876 = vmax.f32 %v754, 0.0
  %v877 = vmax.f32 %v757, 0.0
  %v878 = vmax.f32 %v762, 0.0
  %v879 = vmax.f32 %v765, 0.0
  %v880 = vmax.f32 %v770, 0.0
  %v881 = vmax.f32 %v773, 0.0
  %v882 = vmax.f32 %v778, 0.0
  %v883 = vmax.f32 %v781, 0.0
  %v884 = vmax.f32 %v786, 0.0
  %v885 = vmax.f32 %v789, 0.0
  %v886 = vmax.f32 %v794, 0.0
  %v887 = vmax.f32 %v797, 0.0
  %v888 = vmax.f32 %v802, 0.0
  %v889 = vmax.f32 %v805, 0.0
  %v890 = vmax.f32 %v810, 0.0
  %v891 = vmax.f32 %v813, 0.0
  %v892 = vmax.f32 %v818, 0.0
  %v893 = vmax.f32 %v821, 0.0
  %v894 = vmax.f32 %v826, 0.0
  %v895 = vmax.f32 %v829, 0.0
  %896 = vst.msk [vmem:[%s3] sm:$0xff] %vm446, %v832
  %897 = vst.msk [vmem:[%s3 + $0x8] sm:$0xff] %vm446, %v833
  %898 = vst.msk [vmem:[%s3 + $0x10] sm:$0xff] %vm446, %v834
  %899 = vst.msk [vmem:[%s3 + $0x18] sm:$0xff] %vm446, %v835
  %900 = vst.msk [vmem:[%s3 + $0x20] sm:$0xff] %vm446, %v836
  %901 = vst.msk [vmem:[%s3 + $0x28] sm:$0xff] %vm446, %v837
  %902 = vst.msk [vmem:[%s3 + $0x30] sm:$0xff] %vm446, %v838
  %903 = vst.msk [vmem:[%s3 + $0x38] sm:$0xff] %vm446, %v839
  %904 = vst.msk [vmem:[%s3 + $0x40] sm:$0xff] %vm446, %v840
  %905 = vst.msk [vmem:[%s3 + $0x48] sm:$0xff] %vm446, %v841
  %906 = vst.msk [vmem:[%s3 + $0x50] sm:$0xff] %vm446, %v842
  %907 = vst.msk [vmem:[%s3 + $0x58] sm:$0xff] %vm446, %v843
  %908 = vst.msk [vmem:[%s3 + $0x60] sm:$0xff] %vm446, %v844
  %909 = vst.msk [vmem:[%s3 + $0x68] sm:$0xff] %vm446, %v845
  %910 = vst.msk [vmem:[%s3 + $0x70] sm:$0xff] %vm446, %v846
  %911 = vst.msk [vmem:[%s3 + $0x78] sm:$0xff] %vm446, %v847
  %912 = vst.msk [vmem:[%s3 + $0x80] sm:$0xff] %vm446, %v848
  %913 = vst.msk [vmem:[%s3 + $0x88] sm:$0xff] %vm446, %v849
  %914 = vst.msk [vmem:[%s3 + $0x90] sm:$0xff] %vm446, %v850
  %915 = vst.msk [vmem:[%s3 + $0x98] sm:$0xff] %vm446, %v851
  %916 = vst.msk [vmem:[%s3 + $0xa0] sm:$0xff] %vm446, %v852
  %917 = vst.msk [vmem:[%s3 + $0xa8] sm:$0xff] %vm446, %v853
  %918 = vst.msk [vmem:[%s3 + $0xb0] sm:$0xff] %vm446, %v854
  %919 = vst.msk [vmem:[%s3 + $0xb8] sm:$0xff] %vm446, %v855
  %920 = vst.msk [vmem:[%s3 + $0xc0] sm:$0xff] %vm446, %v856
  %921 = vst.msk [vmem:[%s3 + $0xc8] sm:$0xff] %vm446, %v857
  %922 = vst.msk [vmem:[%s3 + $0xd0] sm:$0xff] %vm446, %v858
  %923 = vst.msk [vmem:[%s3 + $0xd8] sm:$0xff] %vm446, %v859
  %924 = vst.msk [vmem:[%s3 + $0xe0] sm:$0xff] %vm446, %v860
  %925 = vst.msk [vmem:[%s3 + $0xe8] sm:$0xff] %vm446, %v861
  %926 = vst.msk [vmem:[%s3 + $0xf0] sm:$0xff] %vm446, %v862
  %927 = vst.msk [vmem:[%s3 + $0xf8] sm:$0xff] %vm446, %v863
  %928 = vst.msk [vmem:[%s3 + $0x100] sm:$0xff] %vm446, %v864
  %929 = vst.msk [vmem:[%s3 + $0x108] sm:$0xff] %vm446, %v865
  %930 = vst.msk [vmem:[%s3 + $0x110] sm:$0xff] %vm446, %v866
  %931 = vst.msk [vmem:[%s3 + $0x118] sm:$0xff] %vm446, %v867
  %932 = vst.msk [vmem:[%s3 + $0x120] sm:$0xff] %vm446, %v868
  %933 = vst.msk [vmem:[%s3 + $0x128] sm:$0xff] %vm446, %v869
  %934 = vst.msk [vmem:[%s3 + $0x130] sm:$0xff] %vm446, %v870
  %935 = vst.msk [vmem:[%s3 + $0x138] sm:$0xff] %vm446, %v871
  %936 = vst.msk [vmem:[%s3 + $0x140] sm:$0xff] %vm446, %v872
  %937 = vst.msk [vmem:[%s3 + $0x148] sm:$0xff] %vm446, %v873
  %938 = vst.msk [vmem:[%s3 + $0x150] sm:$0xff] %vm446, %v874
  %939 = vst.msk [vmem:[%s3 + $0x158] sm:$0xff] %vm446, %v875
  %940 = vst.msk [vmem:[%s3 + $0x160] sm:$0xff] %vm446, %v876
  %941 = vst.msk [vmem:[%s3 + $0x168] sm:$0xff] %vm446, %v877
  %942 = vst.msk [vmem:[%s3 + $0x170] sm:$0xff] %vm446, %v878
  %943 = vst.msk [vmem:[%s3 + $0x178] sm:$0xff] %vm446, %v879
  %944 = vst.msk [vmem:[%s3 + $0x180] sm:$0xff] %vm446, %v880
  %945 = vst.msk [vmem:[%s3 + $0x188] sm:$0xff] %vm446, %v881
  %946 = vst.msk [vmem:[%s3 + $0x190] sm:$0xff] %vm446, %v882
  %947 = vst.msk [vmem:[%s3 + $0x198] sm:$0xff] %vm446, %v883
  %948 = vst.msk [vmem:[%s3 + $0x1a0] sm:$0xff] %vm446, %v884
  %949 = vst.msk [vmem:[%s3 + $0x1a8] sm:$0xff] %vm446, %v885
  %950 = vst.msk [vmem:[%s3 + $0x1b0] sm:$0xff] %vm446, %v886
  %951 = vst.msk [vmem:[%s3 + $0x1b8] sm:$0xff] %vm446, %v887
  %952 = vst.msk [vmem:[%s3 + $0x1c0] sm:$0xff] %vm446, %v888
  %953 = vst.msk [vmem:[%s3 + $0x1c8] sm:$0xff] %vm446, %v889
  %954 = vst.msk [vmem:[%s3 + $0x1d0] sm:$0xff] %vm446, %v890
  %955 = vst.msk [vmem:[%s3 + $0x1d8] sm:$0xff] %vm446, %v891
  %956 = vst.msk [vmem:[%s3 + $0x1e0] sm:$0xff] %vm446, %v892
  %957 = vst.msk [vmem:[%s3 + $0x1e8] sm:$0xff] %vm446, %v893
  %958 = vst.msk [vmem:[%s3 + $0x1f0] sm:$0xff] %vm446, %v894
  %959 = vst.msk [vmem:[%s3 + $0x1f8] sm:$0xff] %vm446, %v895
  // Predicated region
  $region14: #{forward.7} parent=0 // pred_check
    _
  $region15: #{forward.7} parent=0 // pred_check_branch
    %961 = sbr.rel (0) target = $region17
  $region16: #{forward.7} parent=0 // pred_region
    _
  $region17: #{forward.7} parent=0 // pred_fallthru
    _
  // Predicated region
  $region18: #{forward.7} parent=0 // pred_check
    _
  $region19: #{forward.7} parent=0 // pred_check_branch
    %963 = sbr.rel (0) target = $region21
  $region20: #{forward.7} parent=0 // pred_region
    _
  $region21: #{forward.7} parent=0 // pred_fallthru
    _

// kernel: forward.8
$region0: #{forward.8}
  #allocation0 [shape = 'u32[]', space=smem, size = 0x4, offset = 0x4, fixed_abs, tag = 'smem constant byte address 0x4 - core index']
  #allocation1 [shape = 'u32[144,128]{1,0:T(1,128)}', space=vmem, size = 0x12000, scoped, tag = 'internal scratch']
  %s0 = inlined_call_operand.vmem [shape: bf16[2,256,16], index: 0, kind: input, shape index: {}]
  %s1 = inlined_call_operand.vmem [shape: f32[2,1,128], index: 1, kind: input, shape index: {}]
  %s2 = inlined_call_operand.vmem [shape: f32[2,256], index: 2, kind: output, shape index: {}]
  %s3 = sld [smem:[#allocation0]]
  $region18: #{forward.8} parent=0
    _
  %s5 = ssub.s32 1, %s3
  %s6 = scalar_select 0, %s5, %s3
  // Predicated region
  $region2: #{forward.8} parent=0 // pred_check
    _
  $region3: #{forward.8} parent=0 // pred_check_branch
    %8 = sbr.rel (0) target = $region5
  $region4: #{forward.8} parent=0 // pred_region
    _
  $region5: #{forward.8} parent=0 // pred_fallthru
    _
  // Predicated region
  $region6: #{forward.8} parent=0 // pred_check
    _
  $region7: #{forward.8} parent=0 // pred_check_branch
    %10 = sbr.rel (0) target = $region9
  $region8: #{forward.8} parent=0 // pred_region
    _
  $region9: #{forward.8} parent=0 // pred_fallthru
    _
  %v12 = vld [vmem:[%s0] sm:$0xf]
  %v13 = vld [vmem:[%s0 + $0x4] sm:$0xf]
  %v14 = vld [vmem:[%s0 + $0x8] sm:$0xf]
  %v15 = vld [vmem:[%s0 + $0xc] sm:$0xf]
  %v16 = vld [vmem:[%s0 + $0x10] sm:$0xf]
  %v17 = vld [vmem:[%s0 + $0x14] sm:$0xf]
  %v18 = vld [vmem:[%s0 + $0x18] sm:$0xf]
  %v19 = vld [vmem:[%s0 + $0x1c] sm:$0xf]
  %v20 = vld [vmem:[%s0 + $0x20] sm:$0xf]
  %v21 = vld [vmem:[%s0 + $0x24] sm:$0xf]
  %v22 = vld [vmem:[%s0 + $0x28] sm:$0xf]
  %v23 = vld [vmem:[%s0 + $0x2c] sm:$0xf]
  %v24 = vld [vmem:[%s0 + $0x30] sm:$0xf]
  %v25 = vld [vmem:[%s0 + $0x34] sm:$0xf]
  %v26 = vld [vmem:[%s0 + $0x38] sm:$0xf]
  %v27 = vld [vmem:[%s0 + $0x3c] sm:$0xf]
  %v28 = vld [vmem:[%s0 + $0x40] sm:$0xf]
  %v29 = vld [vmem:[%s0 + $0x44] sm:$0xf]
  %v30 = vld [vmem:[%s0 + $0x48] sm:$0xf]
  %v31 = vld [vmem:[%s0 + $0x4c] sm:$0xf]
  %v32 = vld [vmem:[%s0 + $0x50] sm:$0xf]
  %v33 = vld [vmem:[%s0 + $0x54] sm:$0xf]
  %v34 = vld [vmem:[%s0 + $0x58] sm:$0xf]
  %v35 = vld [vmem:[%s0 + $0x5c] sm:$0xf]
  %v36 = vld [vmem:[%s0 + $0x60] sm:$0xf]
  %v37 = vld [vmem:[%s0 + $0x64] sm:$0xf]
  %v38 = vld [vmem:[%s0 + $0x68] sm:$0xf]
  %v39 = vld [vmem:[%s0 + $0x6c] sm:$0xf]
  %v40 = vld [vmem:[%s0 + $0x70] sm:$0xf]
  %v41 = vld [vmem:[%s0 + $0x74] sm:$0xf]
  %v42 = vld [vmem:[%s0 + $0x78] sm:$0xf]
  %v43 = vld [vmem:[%s0 + $0x7c] sm:$0xf]
  %v44 = vld [vmem:[%s1] sm:$0x1]
  %vm45 = vcmask 1040384
  %v46 = vsel %vm45, %v44, 0.0
  %47 = vadd.xlane.f32.xlu0 %v46
  %v48 = vpop.xlane.xlu0 %47
  %v49 = vrot.slane %v48, 4
  %v50 = vadd.f32 %v48, %v49
  %v51 = vrot.slane %v50, 2
  %v52 = vadd.f32 %v50, %v51
  %v53 = vrot.slane %v52, 1
  %v54 = vadd.f32 %v52, %v53
  %s55 = vtos %v54
  %s56 = sadd.f32 %s55, 1e-06
  %v57 = vpack.c.bf16 %v44, %v44
  %v74 = vunpack.c.l.b16 %v12
  %v75 = vunpack.c.l.b16 %v13
  %v76 = vunpack.c.l.b16 %v14
  %v77 = vunpack.c.l.b16 %v15
  %v78 = vunpack.c.l.b16 %v16
  %v79 = vunpack.c.l.b16 %v17
  %v80 = vunpack.c.l.b16 %v18
  %v81 = vunpack.c.l.b16 %v19
  %v82 = vunpack.c.l.b16 %v20
  %v83 = vunpack.c.l.b16 %v21
  %v84 = vunpack.c.l.b16 %v22
  %v85 = vunpack.c.l.b16 %v23
  %v86 = vunpack.c.l.b16 %v24
  %v87 = vunpack.c.l.b16 %v25
  %v88 = vunpack.c.l.b16 %v26
  %v89 = vunpack.c.l.b16 %v27
  %v90 = vpack.c.b16 %v75, %v74
  %v91 = vpack.c.b16 %v77, %v76
  %v92 = vpack.c.b16 %v79, %v78
  %v93 = vpack.c.b16 %v81, %v80
  %v94 = vpack.c.b16 %v83, %v82
  %v95 = vpack.c.b16 %v85, %v84
  %v96 = vpack.c.b16 %v87, %v86
  %v97 = vpack.c.b16 %v89, %v88
  %106 = vmatprep.subr.bf16.mxu0 0
  %107 = vmatpush1.bf16.msra.mxu0 %v90
  %108 = vmatprep.subr.bf16.mxu0 0
  %109 = vmatpush1.bf16.msra.mxu0 %v91
  %110 = vmatprep.subr.bf16.mxu0 0
  %111 = vmatpush1.bf16.msra.mxu0 %v92
  %112 = vmatprep.subr.bf16.mxu0 0
  %113 = vmatpush1.bf16.msra.mxu0 %v93
  %114 = vmatprep.subr.bf16.mxu0 0
  %115 = vmatpush1.bf16.msra.mxu0 %v94
  %116 = vmatprep.subr.bf16.mxu0 0
  %117 = vmatpush1.bf16.msra.mxu0 %v95
  %118 = vmatprep.subr.bf16.mxu0 0
  %119 = vmatpush1.bf16.msra.mxu0 %v96
  %120 = vmatprep.subr.bf16.mxu0 0
  %121 = vmatpush1.bf16.msra.mxu0 %v97
  %122 = vmatprep.subr.bf16.mxu0 0
  %123 = vmatpush1.bf16.msra.mxu0 0
  %124 = vmatprep.subr.bf16.mxu0 0
  %125 = vmatpush1.bf16.msra.mxu0 0
  %126 = vmatprep.subr.bf16.mxu0 0
  %127 = vmatpush1.bf16.msra.mxu0 0
  %128 = vmatprep.subr.bf16.mxu0 0
  %129 = vmatpush1.bf16.msra.mxu0 0
  %130 = vmatprep.subr.bf16.mxu0 0
  %131 = vmatpush1.bf16.msra.mxu0 0
  %132 = vmatprep.subr.bf16.mxu0 0
  %133 = vmatpush1.bf16.msra.mxu0 0
  %134 = vmatprep.subr.bf16.mxu0 0
  %135 = vmatpush1.bf16.msra.mxu0 0
  %136 = vmatprep.subr.bf16.mxu0 0
  %137 = vmatpush1.bf16.msra.mxu0 0
  %138 = vmatprep.mubr.bf16.mxu0 0
  %139 = vmatmul.mubr.bf16.gmra.mrb[0].mxu0 %v57
  %v140 = vpop.f32.mrb[0].mxu0
  %v141 = vadd.f32 0.0, %v140
  %v142 = vpop.f32.mrb[0].mxu0
  %v143 = vpop.f32.mrb[0].mxu0
  %v144 = vpop.f32.mrb[0].mxu0
  %145 = vdwg.mxu0
  %v146 = vstv %s56
  %v147 = vrcp.pop %v146
  %v148 = vmul.f32 %v141, %v147
  %v149 = vpack.c.bf16 %v148, %v148
  %v166 = vunpack.c.l.b16 %v28
  %v167 = vunpack.c.l.b16 %v29
  %v168 = vunpack.c.l.b16 %v30
  %v169 = vunpack.c.l.b16 %v31
  %v170 = vunpack.c.l.b16 %v32
  %v171 = vunpack.c.l.b16 %v33
  %v172 = vunpack.c.l.b16 %v34
  %v173 = vunpack.c.l.b16 %v35
  %v174 = vunpack.c.l.b16 %v36
  %v175 = vunpack.c.l.b16 %v37
  %v176 = vunpack.c.l.b16 %v38
  %v177 = vunpack.c.l.b16 %v39
  %v178 = vunpack.c.l.b16 %v40
  %v179 = vunpack.c.l.b16 %v41
  %v180 = vunpack.c.l.b16 %v42
  %v181 = vunpack.c.l.b16 %v43
  %v182 = vpack.c.b16 %v167, %v166
  %v183 = vpack.c.b16 %v169, %v168
  %v184 = vpack.c.b16 %v171, %v170
  %v185 = vpack.c.b16 %v173, %v172
  %v186 = vpack.c.b16 %v175, %v174
  %v187 = vpack.c.b16 %v177, %v176
  %v188 = vpack.c.b16 %v179, %v178
  %v189 = vpack.c.b16 %v181, %v180
  %vm190 = vcmask 130048
  %v192 = vsel %vm190, %v149, 0
  %v195 = vsel %vm190, %v90, 0
  %v198 = vsel %vm190, %v91, 0
  %v201 = vsel %vm190, %v92, 0
  %v204 = vsel %vm190, %v93, 0
  %v207 = vsel %vm190, %v94, 0
  %v210 = vsel %vm190, %v95, 0
  %v213 = vsel %vm190, %v96, 0
  %v216 = vsel %vm190, %v97, 0
  %v219 = vsel %vm190, %v182, 0
  %v222 = vsel %vm190, %v183, 0
  %v225 = vsel %vm190, %v184, 0
  %v228 = vsel %vm190, %v185, 0
  %v231 = vsel %vm190, %v186, 0
  %v234 = vsel %vm190, %v187, 0
  %v237 = vsel %vm190, %v188, 0
  %v240 = vsel %vm190, %v189, 0
  %242 = vmatprep.subr.bf16.mxu0 0
  %243 = vmatpush1.bf16.xpose.msra.mxu0 %v195
  %244 = vmatprep.subr.bf16.mxu0 0
  %245 = vmatpush1.bf16.xpose.msra.mxu0 %v198
  %246 = vmatprep.subr.bf16.mxu0 0
  %247 = vmatpush1.bf16.xpose.msra.mxu0 %v201
  %248 = vmatprep.subr.bf16.mxu0 0
  %249 = vmatpush1.bf16.xpose.msra.mxu0 %v204
  %250 = vmatprep.subr.bf16.mxu0 0
  %251 = vmatpush1.bf16.xpose.msra.mxu0 %v207
  %252 = vmatprep.subr.bf16.mxu0 0
  %253 = vmatpush1.bf16.xpose.msra.mxu0 %v210
  %254 = vmatprep.subr.bf16.mxu0 0
  %255 = vmatpush1.bf16.xpose.msra.mxu0 %v213
  %256 = vmatprep.subr.bf16.mxu0 0
  %257 = vmatpush1.bf16.xpose.msra.mxu0 %v216
  %258 = vmatprep.subr.bf16.mxu0 0
  %259 = vmatpush1.bf16.xpose.msra.mxu0 %v219
  %260 = vmatprep.subr.bf16.mxu0 0
  %261 = vmatpush1.bf16.xpose.msra.mxu0 %v222
  %262 = vmatprep.subr.bf16.mxu0 0
  %263 = vmatpush1.bf16.xpose.msra.mxu0 %v225
  %264 = vmatprep.subr.bf16.mxu0 0
  %265 = vmatpush1.bf16.xpose.msra.mxu0 %v228
  %266 = vmatprep.subr.bf16.mxu0 0
  %267 = vmatpush1.bf16.xpose.msra.mxu0 %v231
  %268 = vmatprep.subr.bf16.mxu0 0
  %269 = vmatpush1.bf16.xpose.msra.mxu0 %v234
  %270 = vmatprep.subr.bf16.mxu0 0
  %271 = vmatpush1.bf16.xpose.msra.mxu0 %v237
  %272 = vmatprep.subr.bf16.mxu0 0
  %273 = vmatpush1.bf16.xpose.msra.mxu0 %v240
  %274 = vmatprep.mubr.bf16.mxu0 0
  %275 = vmatmul.mubr.bf16.gmra.mrb[0].mxu0 %v192
  %v276 = vpop.f32.mrb[0].mxu0
  %v277 = vadd.f32 0.0, %v276
  %v278 = vpop.f32.mrb[0].mxu0
  %v279 = vadd.f32 0.0, %v278
  %v280 = vpop.f32.mrb[0].mxu0
  %v281 = vpop.f32.mrb[0].mxu0
  %282 = vdwg.mxu0
  %s283 = scalar_lea.vmem %s0, 128
  %v284 = vld [vmem:[%s283] sm:$0xf]
  %v285 = vld [vmem:[%s283 + $0x4] sm:$0xf]
  %v286 = vld [vmem:[%s283 + $0x8] sm:$0xf]
  %v287 = vld [vmem:[%s283 + $0xc] sm:$0xf]
  %v288 = vld [vmem:[%s283 + $0x10] sm:$0xf]
  %v289 = vld [vmem:[%s283 + $0x14] sm:$0xf]
  %v290 = vld [vmem:[%s283 + $0x18] sm:$0xf]
  %v291 = vld [vmem:[%s283 + $0x1c] sm:$0xf]
  %v292 = vld [vmem:[%s283 + $0x20] sm:$0xf]
  %v293 = vld [vmem:[%s283 + $0x24] sm:$0xf]
  %v294 = vld [vmem:[%s283 + $0x28] sm:$0xf]
  %v295 = vld [vmem:[%s283 + $0x2c] sm:$0xf]
  %v296 = vld [vmem:[%s283 + $0x30] sm:$0xf]
  %v297 = vld [vmem:[%s283 + $0x34] sm:$0xf]
  %v298 = vld [vmem:[%s283 + $0x38] sm:$0xf]
  %v299 = vld [vmem:[%s283 + $0x3c] sm:$0xf]
  %v300 = vld [vmem:[%s283 + $0x40] sm:$0xf]
  %v301 = vld [vmem:[%s283 + $0x44] sm:$0xf]
  %v302 = vld [vmem:[%s283 + $0x48] sm:$0xf]
  %v303 = vld [vmem:[%s283 + $0x4c] sm:$0xf]
  %v304 = vld [vmem:[%s283 + $0x50] sm:$0xf]
  %v305 = vld [vmem:[%s283 + $0x54] sm:$0xf]
  %v306 = vld [vmem:[%s283 + $0x58] sm:$0xf]
  %v307 = vld [vmem:[%s283 + $0x5c] sm:$0xf]
  %v308 = vld [vmem:[%s283 + $0x60] sm:$0xf]
  %v309 = vld [vmem:[%s283 + $0x64] sm:$0xf]
  %v310 = vld [vmem:[%s283 + $0x68] sm:$0xf]
  %v311 = vld [vmem:[%s283 + $0x6c] sm:$0xf]
  %v312 = vld [vmem:[%s283 + $0x70] sm:$0xf]
  %v313 = vld [vmem:[%s283 + $0x74] sm:$0xf]
  %v314 = vld [vmem:[%s283 + $0x78] sm:$0xf]
  %v315 = vld [vmem:[%s283 + $0x7c] sm:$0xf]
  %s316 = scalar_lea.vmem %s1, 1
  %v317 = vld [vmem:[%s316] sm:$0x1]
  %v318 = vsel %vm45, %v317, 0.0
  %319 = vadd.xlane.f32.xlu0 %v318
  %v320 = vpop.xlane.xlu0 %319
  %v321 = vrot.slane %v320, 4
  %v322 = vadd.f32 %v320, %v321
  %v323 = vrot.slane %v322, 2
  %v324 = vadd.f32 %v322, %v323
  %v325 = vrot.slane %v324, 1
  %v326 = vadd.f32 %v324, %v325
  %s327 = vtos %v326
  %s328 = sadd.f32 %s327, 1e-06
  %v329 = vpack.c.bf16 %v317, %v317
  %v346 = vunpack.c.l.b16 %v284
  %v347 = vunpack.c.l.b16 %v285
  %v348 = vunpack.c.l.b16 %v286
  %v349 = vunpack.c.l.b16 %v287
  %v350 = vunpack.c.l.b16 %v288
  %v351 = vunpack.c.l.b16 %v289
  %v352 = vunpack.c.l.b16 %v290
  %v353 = vunpack.c.l.b16 %v291
  %v354 = vunpack.c.l.b16 %v292
  %v355 = vunpack.c.l.b16 %v293
  %v356 = vunpack.c.l.b16 %v294
  %v357 = vunpack.c.l.b16 %v295
  %v358 = vunpack.c.l.b16 %v296
  %v359 = vunpack.c.l.b16 %v297
  %v360 = vunpack.c.l.b16 %v298
  %v361 = vunpack.c.l.b16 %v299
  %v362 = vpack.c.b16 %v347, %v346
  %v363 = vpack.c.b16 %v349, %v348
  %v364 = vpack.c.b16 %v351, %v350
  %v365 = vpack.c.b16 %v353, %v352
  %v366 = vpack.c.b16 %v355, %v354
  %v367 = vpack.c.b16 %v357, %v356
  %v368 = vpack.c.b16 %v359, %v358
  %v369 = vpack.c.b16 %v361, %v360
  %378 = vmatprep.subr.bf16.mxu0 0
  %379 = vmatpush1.bf16.msra.mxu0 %v362
  %380 = vmatprep.subr.bf16.mxu0 0
  %381 = vmatpush1.bf16.msra.mxu0 %v363
  %382 = vmatprep.subr.bf16.mxu0 0
  %383 = vmatpush1.bf16.msra.mxu0 %v364
  %384 = vmatprep.subr.bf16.mxu0 0
  %385 = vmatpush1.bf16.msra.mxu0 %v365
  %386 = vmatprep.subr.bf16.mxu0 0
  %387 = vmatpush1.bf16.msra.mxu0 %v366
  %388 = vmatprep.subr.bf16.mxu0 0
  %389 = vmatpush1.bf16.msra.mxu0 %v367
  %390 = vmatprep.subr.bf16.mxu0 0
  %391 = vmatpush1.bf16.msra.mxu0 %v368
  %392 = vmatprep.subr.bf16.mxu0 0
  %393 = vmatpush1.bf16.msra.mxu0 %v369
  %394 = vmatprep.subr.bf16.mxu0 0
  %395 = vmatpush1.bf16.msra.mxu0 0
  %396 = vmatprep.subr.bf16.mxu0 0
  %397 = vmatpush1.bf16.msra.mxu0 0
  %398 = vmatprep.subr.bf16.mxu0 0
  %399 = vmatpush1.bf16.msra.mxu0 0
  %400 = vmatprep.subr.bf16.mxu0 0
  %401 = vmatpush1.bf16.msra.mxu0 0
  %402 = vmatprep.subr.bf16.mxu0 0
  %403 = vmatpush1.bf16.msra.mxu0 0
  %404 = vmatprep.subr.bf16.mxu0 0
  %405 = vmatpush1.bf16.msra.mxu0 0
  %406 = vmatprep.subr.bf16.mxu0 0
  %407 = vmatpush1.bf16.msra.mxu0 0
  %408 = vmatprep.subr.bf16.mxu0 0
  %409 = vmatpush1.bf16.msra.mxu0 0
  %410 = vmatprep.mubr.bf16.mxu0 0
  %411 = vmatmul.mubr.bf16.gmra.mrb[0].mxu0 %v329
  %v412 = vpop.f32.mrb[0].mxu0
  %v413 = vadd.f32 0.0, %v412
  %v414 = vpop.f32.mrb[0].mxu0
  %v415 = vpop.f32.mrb[0].mxu0
  %v416 = vpop.f32.mrb[0].mxu0
  %417 = vdwg.mxu0
  %v418 = vstv %s328
  %v419 = vrcp.pop %v418
  %v420 = vmul.f32 %v413, %v419
  %v421 = vpack.c.bf16 %v420, %v420
  %v438 = vunpack.c.l.b16 %v300
  %v439 = vunpack.c.l.b16 %v301
  %v440 = vunpack.c.l.b16 %v302
  %v441 = vunpack.c.l.b16 %v303
  %v442 = vunpack.c.l.b16 %v304
  %v443 = vunpack.c.l.b16 %v305
  %v444 = vunpack.c.l.b16 %v306
  %v445 = vunpack.c.l.b16 %v307
  %v446 = vunpack.c.l.b16 %v308
  %v447 = vunpack.c.l.b16 %v309
  %v448 = vunpack.c.l.b16 %v310
  %v449 = vunpack.c.l.b16 %v311
  %v450 = vunpack.c.l.b16 %v312
  %v451 = vunpack.c.l.b16 %v313
  %v452 = vunpack.c.l.b16 %v314
  %v453 = vunpack.c.l.b16 %v315
  %v454 = vpack.c.b16 %v439, %v438
  %v455 = vpack.c.b16 %v441, %v440
  %v456 = vpack.c.b16 %v443, %v442
  %v457 = vpack.c.b16 %v445, %v444
  %v458 = vpack.c.b16 %v447, %v446
  %v459 = vpack.c.b16 %v449, %v448
  %v460 = vpack.c.b16 %v451, %v450
  %v461 = vpack.c.b16 %v453, %v452
  %v463 = vsel %vm190, %v421, 0
  %v466 = vsel %vm190, %v362, 0
  %v469 = vsel %vm190, %v363, 0
  %v472 = vsel %vm190, %v364, 0
  %v475 = vsel %vm190, %v365, 0
  %v478 = vsel %vm190, %v366, 0
  %v481 = vsel %vm190, %v367, 0
  %v484 = vsel %vm190, %v368, 0
  %v487 = vsel %vm190, %v369, 0
  %v490 = vsel %vm190, %v454, 0
  %v493 = vsel %vm190, %v455, 0
  %v496 = vsel %vm190, %v456, 0
  %v499 = vsel %vm190, %v457, 0
  %v502 = vsel %vm190, %v458, 0
  %v505 = vsel %vm190, %v459, 0
  %v508 = vsel %vm190, %v460, 0
  %v511 = vsel %vm190, %v461, 0
  %513 = vmatprep.subr.bf16.mxu0 0
  %514 = vmatpush1.bf16.xpose.msra.mxu0 %v466
  %515 = vmatprep.subr.bf16.mxu0 0
  %516 = vmatpush1.bf16.xpose.msra.mxu0 %v469
  %517 = vmatprep.subr.bf16.mxu0 0
  %518 = vmatpush1.bf16.xpose.msra.mxu0 %v472
  %519 = vmatprep.subr.bf16.mxu0 0
  %520 = vmatpush1.bf16.xpose.msra.mxu0 %v475
  %521 = vmatprep.subr.bf16.mxu0 0
  %522 = vmatpush1.bf16.xpose.msra.mxu0 %v478
  %523 = vmatprep.subr.bf16.mxu0 0
  %524 = vmatpush1.bf16.xpose.msra.mxu0 %v481
  %525 = vmatprep.subr.bf16.mxu0 0
  %526 = vmatpush1.bf16.xpose.msra.mxu0 %v484
  %527 = vmatprep.subr.bf16.mxu0 0
  %528 = vmatpush1.bf16.xpose.msra.mxu0 %v487
  %529 = vmatprep.subr.bf16.mxu0 0
  %530 = vmatpush1.bf16.xpose.msra.mxu0 %v490
  %531 = vmatprep.subr.bf16.mxu0 0
  %532 = vmatpush1.bf16.xpose.msra.mxu0 %v493
  %533 = vmatprep.subr.bf16.mxu0 0
  %534 = vmatpush1.bf16.xpose.msra.mxu0 %v496
  %535 = vmatprep.subr.bf16.mxu0 0
  %536 = vmatpush1.bf16.xpose.msra.mxu0 %v499
  %537 = vmatprep.subr.bf16.mxu0 0
  %538 = vmatpush1.bf16.xpose.msra.mxu0 %v502
  %539 = vmatprep.subr.bf16.mxu0 0
  %540 = vmatpush1.bf16.xpose.msra.mxu0 %v505
  %541 = vmatprep.subr.bf16.mxu0 0
  %542 = vmatpush1.bf16.xpose.msra.mxu0 %v508
  %543 = vmatprep.subr.bf16.mxu0 0
  %544 = vmatpush1.bf16.xpose.msra.mxu0 %v511
  %545 = vmatprep.mubr.bf16.mxu0 0
  %546 = vmatmul.mubr.bf16.gmra.mrb[0].mxu0 %v463
  %v547 = vpop.f32.mrb[0].mxu0
  %v548 = vadd.f32 0.0, %v547
  %v549 = vpop.f32.mrb[0].mxu0
  %v550 = vadd.f32 0.0, %v549
  %v551 = vpop.f32.mrb[0].mxu0
  %v552 = vpop.f32.mrb[0].mxu0
  %553 = vdwg.mxu0
  %v556 = vrot.slane %v548, 7
  %v557 = vrot.slane %v550, 7
  %v560 = vsel %vm45, %v277, %v556
  %v561 = vsel %vm45, %v279, %v557
  %v564 = vcombine.low %v560, %v561
  %v566 = vunpack.c.l.s4 1983009808
  %v567 = vunpack.c.0.s8 %v566
  %v568 = vlaneseq
  %v569 = vshrl.u32 %v568, 7
  %v570 = vsub.s32 %v567, %v569
  %v571 = vrot.slane %v564, %v570
  %573 = vst [vmem:[%s2] sm:$0xf] %v571
  // Predicated region
  $region10: #{forward.8} parent=0 // pred_check
    _
  $region11: #{forward.8} parent=0 // pred_check_branch
    %575 = sbr.rel (0) target = $region13
  $region12: #{forward.8} parent=0 // pred_region
    _
  $region13: #{forward.8} parent=0 // pred_fallthru
    _
  // Predicated region
  $region14: #{forward.8} parent=0 // pred_check
    _
  $region15: #{forward.8} parent=0 // pred_check_branch
    %577 = sbr.rel (0) target = $region17
  $region16: #{forward.8} parent=0 // pred_region
    _
  $region17: #{forward.8} parent=0 // pred_fallthru
    _

</llo_original>
